<compile_context>
chip_gen: v6e
topology: v6e:2x2x1
jax: 0.10.0
libtpu: 0.0.40
codegen_flags: <defaults>
</compile_context>

<pallas_src>
import jax
import jax.numpy as jnp
from jax.experimental import pallas as pl
from jax.experimental.pallas import tpu as pltpu


def _round_up(a, b):
    return (a + b - 1) // b * b


def _inherited_fc_kernel(x_ref, o_ref, y_ref):
    # x_ref: (tm, K)        per-sample inputs
    # o_ref: (tm, K+1, tn)  per-sample [weights | bias] slab
    # y_ref: (tm, tn)       output tile
    k_dim = x_ref.shape[1]
    acc = o_ref[:, k_dim, :].astype(jnp.float32)  # per-sample bias
    # Static unroll over in_features (small for this layer); each step is a
    # column broadcast (tm,1) * a (tm,tn) weight slab -> VPU multiply-add,
    # hidden under the HBM stream of the weight tile.
    for k in range(k_dim):
        acc = acc + (
            x_ref[:, k : k + 1].astype(jnp.float32)
            * o_ref[:, k, :].astype(jnp.float32)
        )
    y_ref[...] = acc.astype(y_ref.dtype)


def inherited_fc(x, o, out_features, *, o_tile_budget_bytes=8 << 20):
    """y = b + per-sample(x @ W), with W/b taken from `o` (torch forward())."""
    lead = x.shape[:-1]
    K = int(x.shape[-1])
    N = int(out_features)
    assert o.shape[:-1] == lead, "x and o must share leading dims"
    assert o.shape[-1] >= (K + 1) * N, "o too small for (K+1)*N parameters"

    x2 = x.reshape(-1, K)
    M = x2.shape[0]
    # First (K+1)*N trailing entries of o are [W (K*N) | b (N)] per sample;
    # row-major reshape to (M, K+1, N) is layout-preserving (no HBM copy).
    o3 = o.reshape(M, -1)[:, : (K + 1) * N].reshape(M, K + 1, N)

    out_dtype = jnp.result_type(x.dtype, o.dtype)
    itemsize = 4  # compute stream is f32

    # ---- tile sizes -------------------------------------------------------
    # Lane-dense output: tile N with a multiple of 128 when it divides N and
    # N is large; otherwise take the full (always-legal) extent.
    if N % 128 == 0 and N > 512:
        tn = next(c for c in (512, 256, 128) if N % c == 0)
    else:
        tn = N
    n_blocks = max(1, N // tn)

    # M tile: as large as possible (amortize per-step pipeline overhead) while
    # keeping the double-buffered o tile inside the VMEM budget.
    per_row = (K + 1) * tn * itemsize
    tm = max(8, min(1024, (o_tile_budget_bytes // max(per_row, 1)) // 8 * 8))
    tm = M if M < 8 else min(tm, M)
    # Keep >= 2 grid blocks when possible so v7x's 2 TensorCores both work.
    if n_blocks * pl.cdiv(M, tm) == 1 and M >= 16:
        tm = max(8, _round_up(pl.cdiv(M, 2), 8))
    m_blocks = pl.cdiv(M, tm)

    cost = pl.CostEstimate(
        flops=2 * M * K * N,
        transcendentals=0,
        bytes_accessed=itemsize * (M * K + M * (K + 1) * N + M * N),
    )

    y = pl.pallas_call(
        _inherited_fc_kernel,
        out_shape=jax.ShapeDtypeStruct((M, N), out_dtype),
        grid_spec=pltpu.PrefetchScalarGridSpec(
            num_scalar_prefetch=0,
            grid=(m_blocks, n_blocks),
            in_specs=[
                # x tile: constant across the inner j axis -> not re-fetched
                pl.BlockSpec((tm, K), lambda i, j: (i, 0)),
                # per-sample [weights|bias] tile (the dominant HBM stream)
                pl.BlockSpec((tm, K + 1, tn), lambda i, j: (i, 0, j)),
            ],
            out_specs=pl.BlockSpec((tm, tn), lambda i, j: (i, j)),
        ),
        compiler_params=pltpu.CompilerParams(
            dimension_semantics=("parallel", "parallel"),
        ),
        cost_estimate=cost,
    )(x2, o3)

    return y.reshape(*lead, N)


if __name__ == "__main__":
    # Small shapes consistent with the module: few in_features coordinates,
    # lane-dense out_features.
    in_features, out_features, batch = 8, 128, 256

    key = jax.random.PRNGKey(0)
    kx, ko = jax.random.split(key)
    x = jax.random.normal(kx, (batch, in_features), jnp.float32)
    o = jax.random.normal(ko, (batch, (in_features + 1) * out_features), jnp.float32)

    y = inherited_fc(x, o, out_features)
    jax.block_until_ready(y)

    # Pure-JAX reference mirroring the torch forward() exactly.
    N = out_features
    y_ref = o[:, in_features * N : (in_features + 1) * N]
    for n in range(in_features):
        y_ref = y_ref + x[:, n : n + 1] * o[:, n * N : (n + 1) * N]

    assert y.shape == y_ref.shape
    assert jnp.allclose(y, y_ref, atol=1e-4, rtol=1e-4), "mismatch vs reference"
    print("KERNEL_OK")
</pallas_src>

<mosaic_0001>
module attributes {stable_mosaic.version = 11 : i64} {
  func.func @_inherited_fc_kernel(%arg0: i32, %arg1: i32, %arg2: memref<128x8xf32, #tpu.memory_space<vmem>>, %arg3: memref<128x9x128xf32, #tpu.memory_space<vmem>>, %arg4: memref<128x128xf32, #tpu.memory_space<vmem>>) attributes {dimension_semantics = [#tpu.dimension_semantics<parallel>, #tpu.dimension_semantics<parallel>], iteration_bounds = array<i64: 2, 1>, scalar_prefetch = 0 : i64, scratch_operands = 0 : i64, tpu.core_type = #tpu.core_type<tc>, window_params = [{transform_indices = @transform_0, window_bounds = array<i64: 128, 8>}, {transform_indices = @transform_1, window_bounds = array<i64: 128, 9, 128>}, {transform_indices = @transform_2, window_bounds = array<i64: 128, 128>}]} {
    %c0 = arith.constant 0 : index
    %c8 = arith.constant 8 : index
    %c0_0 = arith.constant 0 : index
    %0 = vector.load %arg3[%c0, %c8, %c0_0] : memref<128x9x128xf32, #tpu.memory_space<vmem>>, vector<128x1x128xf32>
    %1 = vector.shape_cast %0 : vector<128x1x128xf32> to vector<128x128xf32>
    %c0_1 = arith.constant 0 : index
    %c0_2 = arith.constant 0 : index
    %2 = vector.load %arg2[%c0_1, %c0_2] : memref<128x8xf32, #tpu.memory_space<vmem>>, vector<128x1xf32>
    %c0_3 = arith.constant 0 : index
    %c0_4 = arith.constant 0 : index
    %c0_5 = arith.constant 0 : index
    %3 = vector.load %arg3[%c0_3, %c0_4, %c0_5] : memref<128x9x128xf32, #tpu.memory_space<vmem>>, vector<128x1x128xf32>
    %4 = vector.shape_cast %3 : vector<128x1x128xf32> to vector<128x128xf32>
    %5 = vector.broadcast %2 : vector<128x1xf32> to vector<128x128xf32>
    %6 = arith.mulf %5, %4 : vector<128x128xf32>
    %7 = arith.addf %1, %6 : vector<128x128xf32>
    %c0_6 = arith.constant 0 : index
    %c1 = arith.constant 1 : index
    %8 = vector.load %arg2[%c0_6, %c1] : memref<128x8xf32, #tpu.memory_space<vmem>>, vector<128x1xf32>
    %c0_7 = arith.constant 0 : index
    %c1_8 = arith.constant 1 : index
    %c0_9 = arith.constant 0 : index
    %9 = vector.load %arg3[%c0_7, %c1_8, %c0_9] : memref<128x9x128xf32, #tpu.memory_space<vmem>>, vector<128x1x128xf32>
    %10 = vector.shape_cast %9 : vector<128x1x128xf32> to vector<128x128xf32>
    %11 = vector.broadcast %8 : vector<128x1xf32> to vector<128x128xf32>
    %12 = arith.mulf %11, %10 : vector<128x128xf32>
    %13 = arith.addf %7, %12 : vector<128x128xf32>
    %c0_10 = arith.constant 0 : index
    %c2 = arith.constant 2 : index
    %14 = vector.load %arg2[%c0_10, %c2] : memref<128x8xf32, #tpu.memory_space<vmem>>, vector<128x1xf32>
    %c0_11 = arith.constant 0 : index
    %c2_12 = arith.constant 2 : index
    %c0_13 = arith.constant 0 : index
    %15 = vector.load %arg3[%c0_11, %c2_12, %c0_13] : memref<128x9x128xf32, #tpu.memory_space<vmem>>, vector<128x1x128xf32>
    %16 = vector.shape_cast %15 : vector<128x1x128xf32> to vector<128x128xf32>
    %17 = vector.broadcast %14 : vector<128x1xf32> to vector<128x128xf32>
    %18 = arith.mulf %17, %16 : vector<128x128xf32>
    %19 = arith.addf %13, %18 : vector<128x128xf32>
    %c0_14 = arith.constant 0 : index
    %c3 = arith.constant 3 : index
    %20 = vector.load %arg2[%c0_14, %c3] : memref<128x8xf32, #tpu.memory_space<vmem>>, vector<128x1xf32>
    %c0_15 = arith.constant 0 : index
    %c3_16 = arith.constant 3 : index
    %c0_17 = arith.constant 0 : index
    %21 = vector.load %arg3[%c0_15, %c3_16, %c0_17] : memref<128x9x128xf32, #tpu.memory_space<vmem>>, vector<128x1x128xf32>
    %22 = vector.shape_cast %21 : vector<128x1x128xf32> to vector<128x128xf32>
    %23 = vector.broadcast %20 : vector<128x1xf32> to vector<128x128xf32>
    %24 = arith.mulf %23, %22 : vector<128x128xf32>
    %25 = arith.addf %19, %24 : vector<128x128xf32>
    %c0_18 = arith.constant 0 : index
    %c4 = arith.constant 4 : index
    %26 = vector.load %arg2[%c0_18, %c4] : memref<128x8xf32, #tpu.memory_space<vmem>>, vector<128x1xf32>
    %c0_19 = arith.constant 0 : index
    %c4_20 = arith.constant 4 : index
    %c0_21 = arith.constant 0 : index
    %27 = vector.load %arg3[%c0_19, %c4_20, %c0_21] : memref<128x9x128xf32, #tpu.memory_space<vmem>>, vector<128x1x128xf32>
    %28 = vector.shape_cast %27 : vector<128x1x128xf32> to vector<128x128xf32>
    %29 = vector.broadcast %26 : vector<128x1xf32> to vector<128x128xf32>
    %30 = arith.mulf %29, %28 : vector<128x128xf32>
    %31 = arith.addf %25, %30 : vector<128x128xf32>
    %c0_22 = arith.constant 0 : index
    %c5 = arith.constant 5 : index
    %32 = vector.load %arg2[%c0_22, %c5] : memref<128x8xf32, #tpu.memory_space<vmem>>, vector<128x1xf32>
    %c0_23 = arith.constant 0 : index
    %c5_24 = arith.constant 5 : index
    %c0_25 = arith.constant 0 : index
    %33 = vector.load %arg3[%c0_23, %c5_24, %c0_25] : memref<128x9x128xf32, #tpu.memory_space<vmem>>, vector<128x1x128xf32>
    %34 = vector.shape_cast %33 : vector<128x1x128xf32> to vector<128x128xf32>
    %35 = vector.broadcast %32 : vector<128x1xf32> to vector<128x128xf32>
    %36 = arith.mulf %35, %34 : vector<128x128xf32>
    %37 = arith.addf %31, %36 : vector<128x128xf32>
    %c0_26 = arith.constant 0 : index
    %c6 = arith.constant 6 : index
    %38 = vector.load %arg2[%c0_26, %c6] : memref<128x8xf32, #tpu.memory_space<vmem>>, vector<128x1xf32>
    %c0_27 = arith.constant 0 : index
    %c6_28 = arith.constant 6 : index
    %c0_29 = arith.constant 0 : index
    %39 = vector.load %arg3[%c0_27, %c6_28, %c0_29] : memref<128x9x128xf32, #tpu.memory_space<vmem>>, vector<128x1x128xf32>
    %40 = vector.shape_cast %39 : vector<128x1x128xf32> to vector<128x128xf32>
    %41 = vector.broadcast %38 : vector<128x1xf32> to vector<128x128xf32>
    %42 = arith.mulf %41, %40 : vector<128x128xf32>
    %43 = arith.addf %37, %42 : vector<128x128xf32>
    %c0_30 = arith.constant 0 : index
    %c7 = arith.constant 7 : index
    %44 = vector.load %arg2[%c0_30, %c7] : memref<128x8xf32, #tpu.memory_space<vmem>>, vector<128x1xf32>
    %c0_31 = arith.constant 0 : index
    %c7_32 = arith.constant 7 : index
    %c0_33 = arith.constant 0 : index
    %45 = vector.load %arg3[%c0_31, %c7_32, %c0_33] : memref<128x9x128xf32, #tpu.memory_space<vmem>>, vector<128x1x128xf32>
    %46 = vector.shape_cast %45 : vector<128x1x128xf32> to vector<128x128xf32>
    %47 = vector.broadcast %44 : vector<128x1xf32> to vector<128x128xf32>
    %48 = arith.mulf %47, %46 : vector<128x128xf32>
    %49 = arith.addf %43, %48 : vector<128x128xf32>
    %c0_34 = arith.constant 0 : index
    %c0_35 = arith.constant 0 : index
    %50 = vector.load %arg4[%c0_34, %c0_35] : memref<128x128xf32, #tpu.memory_space<vmem>>, vector<128x128xf32>
    tpu.vector_store %arg4[%c0_34, %c0_35], %49 {strides = array<i32>} : memref<128x128xf32, #tpu.memory_space<vmem>>, vector<128x128xf32>,
    return
  }
  func.func @transform_0(%arg0: i32, %arg1: i32) -> (i32, i32) {
    %c0_i32 = arith.constant 0 : i32
    %c0_i32_0 = arith.constant 0 : i32
    return %arg0, %c0_i32 : i32, i32
  }
  func.func @transform_1(%arg0: i32, %arg1: i32) -> (i32, i32, i32) {
    %c0_i32 = arith.constant 0 : i32
    %c0_i32_0 = arith.constant 0 : i32
    return %arg0, %c0_i32, %arg1 : i32, i32, i32
  }
  func.func @transform_2(%arg0: i32, %arg1: i32) -> (i32, i32) {
    %c0_i32 = arith.constant 0 : i32
    return %arg0, %arg1 : i32, i32
  }
}

</mosaic_0001>

<llo_original>
// kernel: tpu_custom_call.1
$region0: #{tpu_custom_call.1}
  #allocation0 [shape = 'u32[]', space=smem, size = 0x4, offset = 0x4, fixed_abs, tag = 'smem constant byte address 0x4 - core index']
  #allocation1 [shape = 'u32[144,128]{1,0:T(1,128)}', space=vmem, size = 0x12000, scoped, tag = 'internal scratch']
  %s0 = inlined_call_operand.vmem [shape: f32[256,8], index: 0, kind: input, shape index: {}]
  %s1 = inlined_call_operand.vmem [shape: f32[256,9,128], index: 1, kind: input, shape index: {}]
  %s2 = inlined_call_operand.hbm [shape: f32[256,128], index: 2, kind: output, shape index: {}]
  %s3 = sld [smem:[#allocation0]]
  $region41: #{tpu_custom_call.1} parent=0
    _
  %s5 = ssub.s32 1, %s3
  %s6 = scalar_select 0, %s5, %s3
  $region1: #{tpu_custom_call.1} parent=0
    #allocation2 [shape = 'u8[131072]{0}', space=vmem, size = 0x20000, scoped, tag = 'output window, operand 0']
    #allocation3 [shape = 's32[2]{0}', space=sflag, size = 0x8, scoped, tag = 'scoped memory for tpu_custom_call.1']
    %7 = vsyncpa [#allocation3], 0
    %s8 = scalar_lea.sflag [#allocation3], 1
    %9 = vsyncpa %s8, 0
    loop: start=0, step=1, limit=4
    $region2: #{tpu_custom_call.1} parent=1 // loop_pre_header
      _
    $region3: #{tpu_custom_call.1} parent=1 // loop_header
      %s11 = sphi 0, %s15
      %p12 = scmp.ge.s32.totalorder %s11, 4
      %s18 = sphi 0, %s30
      %s19 = sphi 0, %s26
      %s20 = sphi 0, %s18
      %s21 = sphi 0, %s19
      %s22 = sphi 0, %s20
      %s23 = sphi 0, %s21
      %s33 = sphi 0, %s35
      %s36 = sphi 0, %s33
      %s37 = sphi 0, %s36
      %s53 = sphi 0, %s37
      %s61 = sphi 0, %s63
      %s64 = sphi 0, %s61
      %s65 = sphi 0, %s64
      %s81 = sphi 0, %s65
      %s89 = sphi 0, %s91
      %s92 = sphi 0, %s89
      %s93 = sphi 0, %s92
      %s109 = sphi 0, %s93
    $region4: #{tpu_custom_call.1} parent=1 // loop_header_branch
      %14 = sbr.rel (%p12) target = $region8
    $region5: #{tpu_custom_call.1} parent=1 // loop_body
      %s16 = ssub.s32 %s11, 1
      %s17 = ssub.s32 %s11, 2
      %s24 = sadd.s32 1, %s19
      %p25 = scmp.ge.s32.totalorder %s24, 1
      %s26 = scalar_select %p25, 0, %s24
      %s27 = sadd.s32 1, %s18
      %s28 = scalar_select %p25, %s27, %s18
      %p29 = scmp.ge.s32.totalorder %s28, 2
      %s30 = scalar_select %p29, 0, %s28
      %s31 = ssub.s32 %s18, %s30
      %p32 = scmp.eq.s32.totalorder %s31, 0
      %s34 = sadd.s32 %s33, 1
      %s35 = scalar_select %p32, %s33, %s34
      %p38 = pneg %p32
      %p39 = scmp.eq.s32.totalorder %s11, 1
      %p40 = por %p38, %p39
      %p41 = scmp.ne.s32.totalorder %s33, %s36
      %p42 = scmp.eq.s32.totalorder %s11, 0
      %p43 = por %p41, %p42
      %p44 = scmp.ne.s32.totalorder %s33, %s36
      %p45 = scmp.eq.s32.totalorder %s16, 1
      %p46 = por %p44, %p45
      %p47 = scmp.ne.s32.totalorder %s36, %s37
      %p48 = scmp.eq.s32.totalorder %s16, 0
      %p49 = por %p47, %p48
      %p50 = scmp.ne.s32.totalorder %s36, %s37
      %p51 = scmp.eq.s32.totalorder %s17, 1
      %p52 = por %p50, %p51
      %p54 = scmp.ne.s32.totalorder %s37, %s53
      %p55 = scmp.eq.s32.totalorder %s17, 0
      %p56 = por %p54, %p55
      %s57 = ssub.s32 %s18, %s30
      %s58 = ssub.s32 %s19, %s26
      %s59 = sor.u32 %s57, %s58
      %p60 = scmp.eq.s32.totalorder %s59, 0
      %s62 = sadd.s32 %s61, 1
      %s63 = scalar_select %p60, %s61, %s62
      %p66 = pneg %p60
      %p67 = scmp.eq.s32.totalorder %s11, 1
      %p68 = por %p66, %p67
      %p69 = scmp.ne.s32.totalorder %s61, %s64
      %p70 = scmp.eq.s32.totalorder %s11, 0
      %p71 = por %p69, %p70
      %p72 = scmp.ne.s32.totalorder %s61, %s64
      %p73 = scmp.eq.s32.totalorder %s16, 1
      %p74 = por %p72, %p73
      %p75 = scmp.ne.s32.totalorder %s64, %s65
      %p76 = scmp.eq.s32.totalorder %s16, 0
      %p77 = por %p75, %p76
      %p78 = scmp.ne.s32.totalorder %s64, %s65
      %p79 = scmp.eq.s32.totalorder %s17, 1
      %p80 = por %p78, %p79
      %p82 = scmp.ne.s32.totalorder %s65, %s81
      %p83 = scmp.eq.s32.totalorder %s17, 0
      %p84 = por %p82, %p83
      %s85 = ssub.s32 %s18, %s30
      %s86 = ssub.s32 %s19, %s26
      %s87 = sor.u32 %s85, %s86
      %p88 = scmp.eq.s32.totalorder %s87, 0
      %s90 = sadd.s32 %s89, 1
      %s91 = scalar_select %p88, %s89, %s90
      %p94 = pneg %p88
      %p95 = scmp.eq.s32.totalorder %s11, 1
      %p96 = por %p94, %p95
      %p97 = scmp.ne.s32.totalorder %s89, %s92
      %p98 = scmp.eq.s32.totalorder %s11, 0
      %p99 = por %p97, %p98
      %p100 = scmp.ne.s32.totalorder %s89, %s92
      %p101 = scmp.eq.s32.totalorder %s16, 1
      %p102 = por %p100, %p101
      %p103 = scmp.ne.s32.totalorder %s92, %s93
      %p104 = scmp.eq.s32.totalorder %s16, 0
      %p105 = por %p103, %p104
      %p106 = scmp.ne.s32.totalorder %s92, %s93
      %p107 = scmp.eq.s32.totalorder %s17, 1
      %p108 = por %p106, %p107
      %p110 = scmp.ne.s32.totalorder %s93, %s109
      %p111 = scmp.eq.s32.totalorder %s17, 0
      %p112 = por %p110, %p111
      %p113 = scmp.le.s32.totalorder 1, %s11
      %p114 = scmp.lt.s32.totalorder %s11, 3
      %p115 = pnand %p113, %p114
      %p116 = pneg %p115
      // Predicated region
      $region9: #{tpu_custom_call.1} parent=5 // pred_check
        _
      $region10: #{tpu_custom_call.1} parent=5 // pred_check_branch
        %118 = sbr.rel (%p115) target = $region12
      $region11: #{tpu_custom_call.1} parent=5 // pred_region
        %s119 = ssub.s32 %s11, 1
      $region12: #{tpu_custom_call.1} parent=5 // pred_fallthru
        _
      %p120 = scmp.lt.s32.totalorder %s11, 2
      // Predicated region
      $region13: #{tpu_custom_call.1} parent=5 // pred_check
        %p121 = pneg %p120
      $region14: #{tpu_custom_call.1} parent=5 // pred_check_branch
        %123 = sbr.rel (%p121) target = $region16
      $region15: #{tpu_custom_call.1} parent=5 // pred_region
        // Predicated region
        $region17: #{tpu_custom_call.1} parent=15 // pred_check
          %p124 = pneg %p43
        $region18: #{tpu_custom_call.1} parent=15 // pred_check_branch
          %126 = sbr.rel (%p124) target = $region20
        $region19: #{tpu_custom_call.1} parent=15 // pred_region
          %s127 = smul.u32 16, %s18
          %p128 = scmp.lt.s32.totalorder %s127, 31
          %s129 = scalar_select %p128, %s127, 31
          %s130 = smul.addr %s129, 8
          %s131 = scalar_lea.vmem %s0, %s130
          %s132 = smul.u32 16, %s18
        $region20: #{tpu_custom_call.1} parent=15 // pred_fallthru
          _
        // Predicated region
        $region21: #{tpu_custom_call.1} parent=15 // pred_check
          %p133 = pneg %p71
        $region22: #{tpu_custom_call.1} parent=15 // pred_check_branch
          %135 = sbr.rel (%p133) target = $region24
        $region23: #{tpu_custom_call.1} parent=15 // pred_region
          %s136 = smul.u32 128, %s18
          %p137 = scmp.lt.s32.totalorder %s136, 255
          %s138 = scalar_select %p137, %s136, 255
          %p139 = scmp.lt.s32.totalorder %s19, 0
          %s140 = scalar_select %p139, %s19, 0
          %s141 = smul.addr %s138, 2
          %s142 = sadd.s32 %s140, %s141
          %s143 = smul.addr %s142, 8
          %s144 = scalar_lea.vmem %s1, %s143
          %s145 = smul.u32 128, %s18
        $region24: #{tpu_custom_call.1} parent=15 // pred_fallthru
          _
      $region16: #{tpu_custom_call.1} parent=5 // pred_fallthru
        _
      %p146 = scmp.le.s32.totalorder 1, %s11
      %p147 = scmp.lt.s32.totalorder %s11, 3
      %p148 = pnand %p146, %p147
      %p149 = pneg %p148
      // Predicated region
      $region25: #{tpu_custom_call.1} parent=5 // pred_check
        _
      $region26: #{tpu_custom_call.1} parent=5 // pred_check_branch
        %151 = sbr.rel (%p148) target = $region28
      $region27: #{tpu_custom_call.1} parent=5 // pred_region
        %s152 = ssub.s32 %s11, 1
        %s153 = smul.u32 16, %s20
        %p154 = scmp.lt.s32.totalorder %s153, 31
        %s155 = scalar_select %p154, %s153, 31
        %s156 = smul.addr %s155, 8
        %s157 = scalar_lea.vmem %s0, %s156
        %p158 = pneg %p49
        %p159 = pneg %p46
        %s160 = smul.u32 128, %s20
        %p161 = scmp.lt.s32.totalorder %s160, 255
        %s162 = scalar_select %p161, %s160, 255
        %p163 = scmp.lt.s32.totalorder %s21, 0
        %s164 = scalar_select %p163, %s21, 0
        %s165 = smul.addr %s162, 2
        %s166 = sadd.s32 %s164, %s165
        %s167 = smul.addr %s166, 8
        %s168 = scalar_lea.vmem %s1, %s167
        %p169 = pneg %p77
        %p170 = pneg %p74
        %p171 = pneg %p105
        %p172 = pneg %p102
        %s173 = sand.u32 %s92, 1
        %s174 = scalar_lea.sflag [#allocation3], %s173
        %s175 = sand.u32 %s92, 1
        %s176 = smul.addr %s175, 128
        %s177 = scalar_lea.vmem [#allocation2], %s176
        %s178 = smul.u32 16, %s20
        %p179 = scmp.lt.s32.totalorder %s178, 31
        %s180 = scalar_select %p179, %s178, 31
        %s181 = smul.addr %s180, 8
        %s182 = scalar_lea.vmem %s0, %s181
        %s183 = smul.u32 16, %s20
        %s184 = smul.u32 128, %s20
        %p185 = scmp.lt.s32.totalorder %s184, 255
        %s186 = scalar_select %p185, %s184, 255
        %p187 = scmp.lt.s32.totalorder %s21, 0
        %s188 = scalar_select %p187, %s21, 0
        %s189 = smul.addr %s186, 2
        %s190 = sadd.s32 %s188, %s189
        %s191 = smul.addr %s190, 8
        %s192 = scalar_lea.vmem %s1, %s191
        %s193 = smul.u32 128, %s20
        %s194 = smul.u32 16, %s20
        %v195 = vld [vmem:[%s192 + $0x8] sm:$0x1]
        %v196 = vld [vmem:[%s192 + $0x18] sm:$0x1]
        %v197 = vld [vmem:[%s192 + $0x28] sm:$0x1]
        %v198 = vld [vmem:[%s192 + $0x38] sm:$0x1]
        %v199 = vld [vmem:[%s192 + $0x48] sm:$0x1]
        %v200 = vld [vmem:[%s192 + $0x58] sm:$0x1]
        %v201 = vld [vmem:[%s192 + $0x68] sm:$0x1]
        %v202 = vld [vmem:[%s192 + $0x78] sm:$0x1]
        %v203 = vld [vmem:[%s192 + $0x88] sm:$0x1]
        %v204 = vld [vmem:[%s192 + $0x98] sm:$0x1]
        %v205 = vld [vmem:[%s192 + $0xa8] sm:$0x1]
        %v206 = vld [vmem:[%s192 + $0xb8] sm:$0x1]
        %v207 = vld [vmem:[%s192 + $0xc8] sm:$0x1]
        %v208 = vld [vmem:[%s192 + $0xd8] sm:$0x1]
        %v209 = vld [vmem:[%s192 + $0xe8] sm:$0x1]
        %v210 = vld [vmem:[%s192 + $0xf8] sm:$0x1]
        %v211 = vld [vmem:[%s192 + $0x108] sm:$0x1]
        %v212 = vld [vmem:[%s192 + $0x118] sm:$0x1]
        %v213 = vld [vmem:[%s192 + $0x128] sm:$0x1]
        %v214 = vld [vmem:[%s192 + $0x138] sm:$0x1]
        %v215 = vld [vmem:[%s192 + $0x148] sm:$0x1]
        %v216 = vld [vmem:[%s192 + $0x158] sm:$0x1]
        %v217 = vld [vmem:[%s192 + $0x168] sm:$0x1]
        %v218 = vld [vmem:[%s192 + $0x178] sm:$0x1]
        %v219 = vld [vmem:[%s192 + $0x188] sm:$0x1]
        %v220 = vld [vmem:[%s192 + $0x198] sm:$0x1]
        %v221 = vld [vmem:[%s192 + $0x1a8] sm:$0x1]
        %v222 = vld [vmem:[%s192 + $0x1b8] sm:$0x1]
        %v223 = vld [vmem:[%s192 + $0x1c8] sm:$0x1]
        %v224 = vld [vmem:[%s192 + $0x1d8] sm:$0x1]
        %v225 = vld [vmem:[%s192 + $0x1e8] sm:$0x1]
        %v226 = vld [vmem:[%s192 + $0x1f8] sm:$0x1]
        %v227 = vld [vmem:[%s192 + $0x208] sm:$0x1]
        %v228 = vld [vmem:[%s192 + $0x218] sm:$0x1]
        %v229 = vld [vmem:[%s192 + $0x228] sm:$0x1]
        %v230 = vld [vmem:[%s192 + $0x238] sm:$0x1]
        %v231 = vld [vmem:[%s192 + $0x248] sm:$0x1]
        %v232 = vld [vmem:[%s192 + $0x258] sm:$0x1]
        %v233 = vld [vmem:[%s192 + $0x268] sm:$0x1]
        %v234 = vld [vmem:[%s192 + $0x278] sm:$0x1]
        %v235 = vld [vmem:[%s192 + $0x288] sm:$0x1]
        %v236 = vld [vmem:[%s192 + $0x298] sm:$0x1]
        %v237 = vld [vmem:[%s192 + $0x2a8] sm:$0x1]
        %v238 = vld [vmem:[%s192 + $0x2b8] sm:$0x1]
        %v239 = vld [vmem:[%s192 + $0x2c8] sm:$0x1]
        %v240 = vld [vmem:[%s192 + $0x2d8] sm:$0x1]
        %v241 = vld [vmem:[%s192 + $0x2e8] sm:$0x1]
        %v242 = vld [vmem:[%s192 + $0x2f8] sm:$0x1]
        %v243 = vld [vmem:[%s192 + $0x308] sm:$0x1]
        %v244 = vld [vmem:[%s192 + $0x318] sm:$0x1]
        %v245 = vld [vmem:[%s192 + $0x328] sm:$0x1]
        %v246 = vld [vmem:[%s192 + $0x338] sm:$0x1]
        %v247 = vld [vmem:[%s192 + $0x348] sm:$0x1]
        %v248 = vld [vmem:[%s192 + $0x358] sm:$0x1]
        %v249 = vld [vmem:[%s192 + $0x368] sm:$0x1]
        %v250 = vld [vmem:[%s192 + $0x378] sm:$0x1]
        %v251 = vld [vmem:[%s192 + $0x388] sm:$0x1]
        %v252 = vld [vmem:[%s192 + $0x398] sm:$0x1]
        %v253 = vld [vmem:[%s192 + $0x3a8] sm:$0x1]
        %v254 = vld [vmem:[%s192 + $0x3b8] sm:$0x1]
        %v255 = vld [vmem:[%s192 + $0x3c8] sm:$0x1]
        %v256 = vld [vmem:[%s192 + $0x3d8] sm:$0x1]
        %v257 = vld [vmem:[%s192 + $0x3e8] sm:$0x1]
        %v258 = vld [vmem:[%s192 + $0x3f8] sm:$0x1]
        %v259 = vld [vmem:[%s192 + $0x408] sm:$0x1]
        %v260 = vld [vmem:[%s192 + $0x418] sm:$0x1]
        %v261 = vld [vmem:[%s192 + $0x428] sm:$0x1]
        %v262 = vld [vmem:[%s192 + $0x438] sm:$0x1]
        %v263 = vld [vmem:[%s192 + $0x448] sm:$0x1]
        %v264 = vld [vmem:[%s192 + $0x458] sm:$0x1]
        %v265 = vld [vmem:[%s192 + $0x468] sm:$0x1]
        %v266 = vld [vmem:[%s192 + $0x478] sm:$0x1]
        %v267 = vld [vmem:[%s192 + $0x488] sm:$0x1]
        %v268 = vld [vmem:[%s192 + $0x498] sm:$0x1]
        %v269 = vld [vmem:[%s192 + $0x4a8] sm:$0x1]
        %v270 = vld [vmem:[%s192 + $0x4b8] sm:$0x1]
        %v271 = vld [vmem:[%s192 + $0x4c8] sm:$0x1]
        %v272 = vld [vmem:[%s192 + $0x4d8] sm:$0x1]
        %v273 = vld [vmem:[%s192 + $0x4e8] sm:$0x1]
        %v274 = vld [vmem:[%s192 + $0x4f8] sm:$0x1]
        %v275 = vld [vmem:[%s192 + $0x508] sm:$0x1]
        %v276 = vld [vmem:[%s192 + $0x518] sm:$0x1]
        %v277 = vld [vmem:[%s192 + $0x528] sm:$0x1]
        %v278 = vld [vmem:[%s192 + $0x538] sm:$0x1]
        %v279 = vld [vmem:[%s192 + $0x548] sm:$0x1]
        %v280 = vld [vmem:[%s192 + $0x558] sm:$0x1]
        %v281 = vld [vmem:[%s192 + $0x568] sm:$0x1]
        %v282 = vld [vmem:[%s192 + $0x578] sm:$0x1]
        %v283 = vld [vmem:[%s192 + $0x588] sm:$0x1]
        %v284 = vld [vmem:[%s192 + $0x598] sm:$0x1]
        %v285 = vld [vmem:[%s192 + $0x5a8] sm:$0x1]
        %v286 = vld [vmem:[%s192 + $0x5b8] sm:$0x1]
        %v287 = vld [vmem:[%s192 + $0x5c8] sm:$0x1]
        %v288 = vld [vmem:[%s192 + $0x5d8] sm:$0x1]
        %v289 = vld [vmem:[%s192 + $0x5e8] sm:$0x1]
        %v290 = vld [vmem:[%s192 + $0x5f8] sm:$0x1]
        %v291 = vld [vmem:[%s192 + $0x608] sm:$0x1]
        %v292 = vld [vmem:[%s192 + $0x618] sm:$0x1]
        %v293 = vld [vmem:[%s192 + $0x628] sm:$0x1]
        %v294 = vld [vmem:[%s192 + $0x638] sm:$0x1]
        %v295 = vld [vmem:[%s192 + $0x648] sm:$0x1]
        %v296 = vld [vmem:[%s192 + $0x658] sm:$0x1]
        %v297 = vld [vmem:[%s192 + $0x668] sm:$0x1]
        %v298 = vld [vmem:[%s192 + $0x678] sm:$0x1]
        %v299 = vld [vmem:[%s192 + $0x688] sm:$0x1]
        %v300 = vld [vmem:[%s192 + $0x698] sm:$0x1]
        %v301 = vld [vmem:[%s192 + $0x6a8] sm:$0x1]
        %v302 = vld [vmem:[%s192 + $0x6b8] sm:$0x1]
        %v303 = vld [vmem:[%s192 + $0x6c8] sm:$0x1]
        %v304 = vld [vmem:[%s192 + $0x6d8] sm:$0x1]
        %v305 = vld [vmem:[%s192 + $0x6e8] sm:$0x1]
        %v306 = vld [vmem:[%s192 + $0x6f8] sm:$0x1]
        %v307 = vld [vmem:[%s192 + $0x708] sm:$0x1]
        %v308 = vld [vmem:[%s192 + $0x718] sm:$0x1]
        %v309 = vld [vmem:[%s192 + $0x728] sm:$0x1]
        %v310 = vld [vmem:[%s192 + $0x738] sm:$0x1]
        %v311 = vld [vmem:[%s192 + $0x748] sm:$0x1]
        %v312 = vld [vmem:[%s192 + $0x758] sm:$0x1]
        %v313 = vld [vmem:[%s192 + $0x768] sm:$0x1]
        %v314 = vld [vmem:[%s192 + $0x778] sm:$0x1]
        %v315 = vld [vmem:[%s192 + $0x788] sm:$0x1]
        %v316 = vld [vmem:[%s192 + $0x798] sm:$0x1]
        %v317 = vld [vmem:[%s192 + $0x7a8] sm:$0x1]
        %v318 = vld [vmem:[%s192 + $0x7b8] sm:$0x1]
        %v319 = vld [vmem:[%s192 + $0x7c8] sm:$0x1]
        %v320 = vld [vmem:[%s192 + $0x7d8] sm:$0x1]
        %v321 = vld [vmem:[%s192 + $0x7e8] sm:$0x1]
        %v322 = vld [vmem:[%s192 + $0x7f8] sm:$0x1]
        %v323 = vld [vmem:[%s182] sm:$0xff]
        %v324 = vld [vmem:[%s182 + $0x8] sm:$0xff]
        %v325 = vld [vmem:[%s182 + $0x10] sm:$0xff]
        %v326 = vld [vmem:[%s182 + $0x18] sm:$0xff]
        %v327 = vld [vmem:[%s182 + $0x20] sm:$0xff]
        %v328 = vld [vmem:[%s182 + $0x28] sm:$0xff]
        %v329 = vld [vmem:[%s182 + $0x30] sm:$0xff]
        %v330 = vld [vmem:[%s182 + $0x38] sm:$0xff]
        %v331 = vld [vmem:[%s182 + $0x40] sm:$0xff]
        %v332 = vld [vmem:[%s182 + $0x48] sm:$0xff]
        %v333 = vld [vmem:[%s182 + $0x50] sm:$0xff]
        %v334 = vld [vmem:[%s182 + $0x58] sm:$0xff]
        %v335 = vld [vmem:[%s182 + $0x60] sm:$0xff]
        %v336 = vld [vmem:[%s182 + $0x68] sm:$0xff]
        %v337 = vld [vmem:[%s182 + $0x70] sm:$0xff]
        %v338 = vld [vmem:[%s182 + $0x78] sm:$0xff]
        %v339 = vld [vmem:[%s192] sm:$0x1]
        %v340 = vld [vmem:[%s192 + $0x10] sm:$0x1]
        %v341 = vld [vmem:[%s192 + $0x20] sm:$0x1]
        %v342 = vld [vmem:[%s192 + $0x30] sm:$0x1]
        %v343 = vld [vmem:[%s192 + $0x40] sm:$0x1]
        %v344 = vld [vmem:[%s192 + $0x50] sm:$0x1]
        %v345 = vld [vmem:[%s192 + $0x60] sm:$0x1]
        %v346 = vld [vmem:[%s192 + $0x70] sm:$0x1]
        %v347 = vld [vmem:[%s192 + $0x80] sm:$0x1]
        %v348 = vld [vmem:[%s192 + $0x90] sm:$0x1]
        %v349 = vld [vmem:[%s192 + $0xa0] sm:$0x1]
        %v350 = vld [vmem:[%s192 + $0xb0] sm:$0x1]
        %v351 = vld [vmem:[%s192 + $0xc0] sm:$0x1]
        %v352 = vld [vmem:[%s192 + $0xd0] sm:$0x1]
        %v353 = vld [vmem:[%s192 + $0xe0] sm:$0x1]
        %v354 = vld [vmem:[%s192 + $0xf0] sm:$0x1]
        %v355 = vld [vmem:[%s192 + $0x100] sm:$0x1]
        %v356 = vld [vmem:[%s192 + $0x110] sm:$0x1]
        %v357 = vld [vmem:[%s192 + $0x120] sm:$0x1]
        %v358 = vld [vmem:[%s192 + $0x130] sm:$0x1]
        %v359 = vld [vmem:[%s192 + $0x140] sm:$0x1]
        %v360 = vld [vmem:[%s192 + $0x150] sm:$0x1]
        %v361 = vld [vmem:[%s192 + $0x160] sm:$0x1]
        %v362 = vld [vmem:[%s192 + $0x170] sm:$0x1]
        %v363 = vld [vmem:[%s192 + $0x180] sm:$0x1]
        %v364 = vld [vmem:[%s192 + $0x190] sm:$0x1]
        %v365 = vld [vmem:[%s192 + $0x1a0] sm:$0x1]
        %v366 = vld [vmem:[%s192 + $0x1b0] sm:$0x1]
        %v367 = vld [vmem:[%s192 + $0x1c0] sm:$0x1]
        %v368 = vld [vmem:[%s192 + $0x1d0] sm:$0x1]
        %v369 = vld [vmem:[%s192 + $0x1e0] sm:$0x1]
        %v370 = vld [vmem:[%s192 + $0x1f0] sm:$0x1]
        %v371 = vld [vmem:[%s192 + $0x200] sm:$0x1]
        %v372 = vld [vmem:[%s192 + $0x210] sm:$0x1]
        %v373 = vld [vmem:[%s192 + $0x220] sm:$0x1]
        %v374 = vld [vmem:[%s192 + $0x230] sm:$0x1]
        %v375 = vld [vmem:[%s192 + $0x240] sm:$0x1]
        %v376 = vld [vmem:[%s192 + $0x250] sm:$0x1]
        %v377 = vld [vmem:[%s192 + $0x260] sm:$0x1]
        %v378 = vld [vmem:[%s192 + $0x270] sm:$0x1]
        %v379 = vld [vmem:[%s192 + $0x280] sm:$0x1]
        %v380 = vld [vmem:[%s192 + $0x290] sm:$0x1]
        %v381 = vld [vmem:[%s192 + $0x2a0] sm:$0x1]
        %v382 = vld [vmem:[%s192 + $0x2b0] sm:$0x1]
        %v383 = vld [vmem:[%s192 + $0x2c0] sm:$0x1]
        %v384 = vld [vmem:[%s192 + $0x2d0] sm:$0x1]
        %v385 = vld [vmem:[%s192 + $0x2e0] sm:$0x1]
        %v386 = vld [vmem:[%s192 + $0x2f0] sm:$0x1]
        %v387 = vld [vmem:[%s192 + $0x300] sm:$0x1]
        %v388 = vld [vmem:[%s192 + $0x310] sm:$0x1]
        %v389 = vld [vmem:[%s192 + $0x320] sm:$0x1]
        %v390 = vld [vmem:[%s192 + $0x330] sm:$0x1]
        %v391 = vld [vmem:[%s192 + $0x340] sm:$0x1]
        %v392 = vld [vmem:[%s192 + $0x350] sm:$0x1]
        %v393 = vld [vmem:[%s192 + $0x360] sm:$0x1]
        %v394 = vld [vmem:[%s192 + $0x370] sm:$0x1]
        %v395 = vld [vmem:[%s192 + $0x380] sm:$0x1]
        %v396 = vld [vmem:[%s192 + $0x390] sm:$0x1]
        %v397 = vld [vmem:[%s192 + $0x3a0] sm:$0x1]
        %v398 = vld [vmem:[%s192 + $0x3b0] sm:$0x1]
        %v399 = vld [vmem:[%s192 + $0x3c0] sm:$0x1]
        %v400 = vld [vmem:[%s192 + $0x3d0] sm:$0x1]
        %v401 = vld [vmem:[%s192 + $0x3e0] sm:$0x1]
        %v402 = vld [vmem:[%s192 + $0x3f0] sm:$0x1]
        %v403 = vld [vmem:[%s192 + $0x400] sm:$0x1]
        %v404 = vld [vmem:[%s192 + $0x410] sm:$0x1]
        %v405 = vld [vmem:[%s192 + $0x420] sm:$0x1]
        %v406 = vld [vmem:[%s192 + $0x430] sm:$0x1]
        %v407 = vld [vmem:[%s192 + $0x440] sm:$0x1]
        %v408 = vld [vmem:[%s192 + $0x450] sm:$0x1]
        %v409 = vld [vmem:[%s192 + $0x460] sm:$0x1]
        %v410 = vld [vmem:[%s192 + $0x470] sm:$0x1]
        %v411 = vld [vmem:[%s192 + $0x480] sm:$0x1]
        %v412 = vld [vmem:[%s192 + $0x490] sm:$0x1]
        %v413 = vld [vmem:[%s192 + $0x4a0] sm:$0x1]
        %v414 = vld [vmem:[%s192 + $0x4b0] sm:$0x1]
        %v415 = vld [vmem:[%s192 + $0x4c0] sm:$0x1]
        %v416 = vld [vmem:[%s192 + $0x4d0] sm:$0x1]
        %v417 = vld [vmem:[%s192 + $0x4e0] sm:$0x1]
        %v418 = vld [vmem:[%s192 + $0x4f0] sm:$0x1]
        %v419 = vld [vmem:[%s192 + $0x500] sm:$0x1]
        %v420 = vld [vmem:[%s192 + $0x510] sm:$0x1]
        %v421 = vld [vmem:[%s192 + $0x520] sm:$0x1]
        %v422 = vld [vmem:[%s192 + $0x530] sm:$0x1]
        %v423 = vld [vmem:[%s192 + $0x540] sm:$0x1]
        %v424 = vld [vmem:[%s192 + $0x550] sm:$0x1]
        %v425 = vld [vmem:[%s192 + $0x560] sm:$0x1]
        %v426 = vld [vmem:[%s192 + $0x570] sm:$0x1]
        %v427 = vld [vmem:[%s192 + $0x580] sm:$0x1]
        %v428 = vld [vmem:[%s192 + $0x590] sm:$0x1]
        %v429 = vld [vmem:[%s192 + $0x5a0] sm:$0x1]
        %v430 = vld [vmem:[%s192 + $0x5b0] sm:$0x1]
        %v431 = vld [vmem:[%s192 + $0x5c0] sm:$0x1]
        %v432 = vld [vmem:[%s192 + $0x5d0] sm:$0x1]
        %v433 = vld [vmem:[%s192 + $0x5e0] sm:$0x1]
        %v434 = vld [vmem:[%s192 + $0x5f0] sm:$0x1]
        %v435 = vld [vmem:[%s192 + $0x600] sm:$0x1]
        %v436 = vld [vmem:[%s192 + $0x610] sm:$0x1]
        %v437 = vld [vmem:[%s192 + $0x620] sm:$0x1]
        %v438 = vld [vmem:[%s192 + $0x630] sm:$0x1]
        %v439 = vld [vmem:[%s192 + $0x640] sm:$0x1]
        %v440 = vld [vmem:[%s192 + $0x650] sm:$0x1]
        %v441 = vld [vmem:[%s192 + $0x660] sm:$0x1]
        %v442 = vld [vmem:[%s192 + $0x670] sm:$0x1]
        %v443 = vld [vmem:[%s192 + $0x680] sm:$0x1]
        %v444 = vld [vmem:[%s192 + $0x690] sm:$0x1]
        %v445 = vld [vmem:[%s192 + $0x6a0] sm:$0x1]
        %v446 = vld [vmem:[%s192 + $0x6b0] sm:$0x1]
        %v447 = vld [vmem:[%s192 + $0x6c0] sm:$0x1]
        %v448 = vld [vmem:[%s192 + $0x6d0] sm:$0x1]
        %v449 = vld [vmem:[%s192 + $0x6e0] sm:$0x1]
        %v450 = vld [vmem:[%s192 + $0x6f0] sm:$0x1]
        %v451 = vld [vmem:[%s192 + $0x700] sm:$0x1]
        %v452 = vld [vmem:[%s192 + $0x710] sm:$0x1]
        %v453 = vld [vmem:[%s192 + $0x720] sm:$0x1]
        %v454 = vld [vmem:[%s192 + $0x730] sm:$0x1]
        %v455 = vld [vmem:[%s192 + $0x740] sm:$0x1]
        %v456 = vld [vmem:[%s192 + $0x750] sm:$0x1]
        %v457 = vld [vmem:[%s192 + $0x760] sm:$0x1]
        %v458 = vld [vmem:[%s192 + $0x770] sm:$0x1]
        %v459 = vld [vmem:[%s192 + $0x780] sm:$0x1]
        %v460 = vld [vmem:[%s192 + $0x790] sm:$0x1]
        %v461 = vld [vmem:[%s192 + $0x7a0] sm:$0x1]
        %v462 = vld [vmem:[%s192 + $0x7b0] sm:$0x1]
        %v463 = vld [vmem:[%s192 + $0x7c0] sm:$0x1]
        %v464 = vld [vmem:[%s192 + $0x7d0] sm:$0x1]
        %v465 = vld [vmem:[%s192 + $0x7e0] sm:$0x1]
        %v466 = vld [vmem:[%s192 + $0x7f0] sm:$0x1]
        %468 = vset.pattern.permute.xlu0 0
        %469 = vperm.xlu0 %468, %v323
        %v470 = vpop.permute.xlu0 %469
        %473 = vset.pattern.permute.xlu0 0
        %474 = vperm.xlu0 %473, %v324
        %v475 = vpop.permute.xlu0 %474
        %478 = vset.pattern.permute.xlu0 0
        %479 = vperm.xlu0 %478, %v325
        %v480 = vpop.permute.xlu0 %479
        %483 = vset.pattern.permute.xlu0 0
        %484 = vperm.xlu0 %483, %v326
        %v485 = vpop.permute.xlu0 %484
        %488 = vset.pattern.permute.xlu0 0
        %489 = vperm.xlu0 %488, %v327
        %v490 = vpop.permute.xlu0 %489
        %493 = vset.pattern.permute.xlu0 0
        %494 = vperm.xlu0 %493, %v328
        %v495 = vpop.permute.xlu0 %494
        %498 = vset.pattern.permute.xlu0 0
        %499 = vperm.xlu0 %498, %v329
        %v500 = vpop.permute.xlu0 %499
        %503 = vset.pattern.permute.xlu0 0
        %504 = vperm.xlu0 %503, %v330
        %v505 = vpop.permute.xlu0 %504
        %508 = vset.pattern.permute.xlu0 0
        %509 = vperm.xlu0 %508, %v331
        %v510 = vpop.permute.xlu0 %509
        %513 = vset.pattern.permute.xlu0 0
        %514 = vperm.xlu0 %513, %v332
        %v515 = vpop.permute.xlu0 %514
        %518 = vset.pattern.permute.xlu0 0
        %519 = vperm.xlu0 %518, %v333
        %v520 = vpop.permute.xlu0 %519
        %523 = vset.pattern.permute.xlu0 0
        %524 = vperm.xlu0 %523, %v334
        %v525 = vpop.permute.xlu0 %524
        %528 = vset.pattern.permute.xlu0 0
        %529 = vperm.xlu0 %528, %v335
        %v530 = vpop.permute.xlu0 %529
        %533 = vset.pattern.permute.xlu0 0
        %534 = vperm.xlu0 %533, %v336
        %v535 = vpop.permute.xlu0 %534
        %538 = vset.pattern.permute.xlu0 0
        %539 = vperm.xlu0 %538, %v337
        %v540 = vpop.permute.xlu0 %539
        %543 = vset.pattern.permute.xlu0 0
        %544 = vperm.xlu0 %543, %v338
        %v545 = vpop.permute.xlu0 %544
        %v675 = vrot.slane %v340, 7
        %vm676 = vcmask 1041409
        %v677 = vsel %vm676, %v675, %v339
        %v678 = vrot.slane %v341, 6
        %vm679 = vcmask 1042434
        %v680 = vsel %vm679, %v678, %v677
        %v681 = vrot.slane %v342, 5
        %vm682 = vcmask 1043459
        %v683 = vsel %vm682, %v681, %v680
        %v684 = vrot.slane %v343, 4
        %vm685 = vcmask 1044484
        %v686 = vsel %vm685, %v684, %v683
        %v687 = vrot.slane %v344, 3
        %vm688 = vcmask 1045509
        %v689 = vsel %vm688, %v687, %v686
        %v690 = vrot.slane %v345, 2
        %vm691 = vcmask 1046534
        %v692 = vsel %vm691, %v690, %v689
        %v693 = vrot.slane %v346, 1
        %vm694 = vcmask 1047559
        %v695 = vsel %vm694, %v693, %v692
        %v696 = vrot.slane %v348, 7
        %v697 = vsel %vm676, %v696, %v347
        %v698 = vrot.slane %v349, 6
        %v699 = vsel %vm679, %v698, %v697
        %v700 = vrot.slane %v350, 5
        %v701 = vsel %vm682, %v700, %v699
        %v702 = vrot.slane %v351, 4
        %v703 = vsel %vm685, %v702, %v701
        %v704 = vrot.slane %v352, 3
        %v705 = vsel %vm688, %v704, %v703
        %v706 = vrot.slane %v353, 2
        %v707 = vsel %vm691, %v706, %v705
        %v708 = vrot.slane %v354, 1
        %v709 = vsel %vm694, %v708, %v707
        %v710 = vrot.slane %v356, 7
        %v711 = vsel %vm676, %v710, %v355
        %v712 = vrot.slane %v357, 6
        %v713 = vsel %vm679, %v712, %v711
        %v714 = vrot.slane %v358, 5
        %v715 = vsel %vm682, %v714, %v713
        %v716 = vrot.slane %v359, 4
        %v717 = vsel %vm685, %v716, %v715
        %v718 = vrot.slane %v360, 3
        %v719 = vsel %vm688, %v718, %v717
        %v720 = vrot.slane %v361, 2
        %v721 = vsel %vm691, %v720, %v719
        %v722 = vrot.slane %v362, 1
        %v723 = vsel %vm694, %v722, %v721
        %v724 = vrot.slane %v364, 7
        %v725 = vsel %vm676, %v724, %v363
        %v726 = vrot.slane %v365, 6
        %v727 = vsel %vm679, %v726, %v725
        %v728 = vrot.slane %v366, 5
        %v729 = vsel %vm682, %v728, %v727
        %v730 = vrot.slane %v367, 4
        %v731 = vsel %vm685, %v730, %v729
        %v732 = vrot.slane %v368, 3
        %v733 = vsel %vm688, %v732, %v731
        %v734 = vrot.slane %v369, 2
        %v735 = vsel %vm691, %v734, %v733
        %v736 = vrot.slane %v370, 1
        %v737 = vsel %vm694, %v736, %v735
        %v738 = vrot.slane %v372, 7
        %v739 = vsel %vm676, %v738, %v371
        %v740 = vrot.slane %v373, 6
        %v741 = vsel %vm679, %v740, %v739
        %v742 = vrot.slane %v374, 5
        %v743 = vsel %vm682, %v742, %v741
        %v744 = vrot.slane %v375, 4
        %v745 = vsel %vm685, %v744, %v743
        %v746 = vrot.slane %v376, 3
        %v747 = vsel %vm688, %v746, %v745
        %v748 = vrot.slane %v377, 2
        %v749 = vsel %vm691, %v748, %v747
        %v750 = vrot.slane %v378, 1
        %v751 = vsel %vm694, %v750, %v749
        %v752 = vrot.slane %v380, 7
        %v753 = vsel %vm676, %v752, %v379
        %v754 = vrot.slane %v381, 6
        %v755 = vsel %vm679, %v754, %v753
        %v756 = vrot.slane %v382, 5
        %v757 = vsel %vm682, %v756, %v755
        %v758 = vrot.slane %v383, 4
        %v759 = vsel %vm685, %v758, %v757
        %v760 = vrot.slane %v384, 3
        %v761 = vsel %vm688, %v760, %v759
        %v762 = vrot.slane %v385, 2
        %v763 = vsel %vm691, %v762, %v761
        %v764 = vrot.slane %v386, 1
        %v765 = vsel %vm694, %v764, %v763
        %v766 = vrot.slane %v388, 7
        %v767 = vsel %vm676, %v766, %v387
        %v768 = vrot.slane %v389, 6
        %v769 = vsel %vm679, %v768, %v767
        %v770 = vrot.slane %v390, 5
        %v771 = vsel %vm682, %v770, %v769
        %v772 = vrot.slane %v391, 4
        %v773 = vsel %vm685, %v772, %v771
        %v774 = vrot.slane %v392, 3
        %v775 = vsel %vm688, %v774, %v773
        %v776 = vrot.slane %v393, 2
        %v777 = vsel %vm691, %v776, %v775
        %v778 = vrot.slane %v394, 1
        %v779 = vsel %vm694, %v778, %v777
        %v780 = vrot.slane %v396, 7
        %v781 = vsel %vm676, %v780, %v395
        %v782 = vrot.slane %v397, 6
        %v783 = vsel %vm679, %v782, %v781
        %v784 = vrot.slane %v398, 5
        %v785 = vsel %vm682, %v784, %v783
        %v786 = vrot.slane %v399, 4
        %v787 = vsel %vm685, %v786, %v785
        %v788 = vrot.slane %v400, 3
        %v789 = vsel %vm688, %v788, %v787
        %v790 = vrot.slane %v401, 2
        %v791 = vsel %vm691, %v790, %v789
        %v792 = vrot.slane %v402, 1
        %v793 = vsel %vm694, %v792, %v791
        %v794 = vrot.slane %v404, 7
        %v795 = vsel %vm676, %v794, %v403
        %v796 = vrot.slane %v405, 6
        %v797 = vsel %vm679, %v796, %v795
        %v798 = vrot.slane %v406, 5
        %v799 = vsel %vm682, %v798, %v797
        %v800 = vrot.slane %v407, 4
        %v801 = vsel %vm685, %v800, %v799
        %v802 = vrot.slane %v408, 3
        %v803 = vsel %vm688, %v802, %v801
        %v804 = vrot.slane %v409, 2
        %v805 = vsel %vm691, %v804, %v803
        %v806 = vrot.slane %v410, 1
        %v807 = vsel %vm694, %v806, %v805
        %v808 = vrot.slane %v412, 7
        %v809 = vsel %vm676, %v808, %v411
        %v810 = vrot.slane %v413, 6
        %v811 = vsel %vm679, %v810, %v809
        %v812 = vrot.slane %v414, 5
        %v813 = vsel %vm682, %v812, %v811
        %v814 = vrot.slane %v415, 4
        %v815 = vsel %vm685, %v814, %v813
        %v816 = vrot.slane %v416, 3
        %v817 = vsel %vm688, %v816, %v815
        %v818 = vrot.slane %v417, 2
        %v819 = vsel %vm691, %v818, %v817
        %v820 = vrot.slane %v418, 1
        %v821 = vsel %vm694, %v820, %v819
        %v822 = vrot.slane %v420, 7
        %v823 = vsel %vm676, %v822, %v419
        %v824 = vrot.slane %v421, 6
        %v825 = vsel %vm679, %v824, %v823
        %v826 = vrot.slane %v422, 5
        %v827 = vsel %vm682, %v826, %v825
        %v828 = vrot.slane %v423, 4
        %v829 = vsel %vm685, %v828, %v827
        %v830 = vrot.slane %v424, 3
        %v831 = vsel %vm688, %v830, %v829
        %v832 = vrot.slane %v425, 2
        %v833 = vsel %vm691, %v832, %v831
        %v834 = vrot.slane %v426, 1
        %v835 = vsel %vm694, %v834, %v833
        %v836 = vrot.slane %v428, 7
        %v837 = vsel %vm676, %v836, %v427
        %v838 = vrot.slane %v429, 6
        %v839 = vsel %vm679, %v838, %v837
        %v840 = vrot.slane %v430, 5
        %v841 = vsel %vm682, %v840, %v839
        %v842 = vrot.slane %v431, 4
        %v843 = vsel %vm685, %v842, %v841
        %v844 = vrot.slane %v432, 3
        %v845 = vsel %vm688, %v844, %v843
        %v846 = vrot.slane %v433, 2
        %v847 = vsel %vm691, %v846, %v845
        %v848 = vrot.slane %v434, 1
        %v849 = vsel %vm694, %v848, %v847
        %v850 = vrot.slane %v436, 7
        %v851 = vsel %vm676, %v850, %v435
        %v852 = vrot.slane %v437, 6
        %v853 = vsel %vm679, %v852, %v851
        %v854 = vrot.slane %v438, 5
        %v855 = vsel %vm682, %v854, %v853
        %v856 = vrot.slane %v439, 4
        %v857 = vsel %vm685, %v856, %v855
        %v858 = vrot.slane %v440, 3
        %v859 = vsel %vm688, %v858, %v857
        %v860 = vrot.slane %v441, 2
        %v861 = vsel %vm691, %v860, %v859
        %v862 = vrot.slane %v442, 1
        %v863 = vsel %vm694, %v862, %v861
        %v864 = vrot.slane %v444, 7
        %v865 = vsel %vm676, %v864, %v443
        %v866 = vrot.slane %v445, 6
        %v867 = vsel %vm679, %v866, %v865
        %v868 = vrot.slane %v446, 5
        %v869 = vsel %vm682, %v868, %v867
        %v870 = vrot.slane %v447, 4
        %v871 = vsel %vm685, %v870, %v869
        %v872 = vrot.slane %v448, 3
        %v873 = vsel %vm688, %v872, %v871
        %v874 = vrot.slane %v449, 2
        %v875 = vsel %vm691, %v874, %v873
        %v876 = vrot.slane %v450, 1
        %v877 = vsel %vm694, %v876, %v875
        %v878 = vrot.slane %v452, 7
        %v879 = vsel %vm676, %v878, %v451
        %v880 = vrot.slane %v453, 6
        %v881 = vsel %vm679, %v880, %v879
        %v882 = vrot.slane %v454, 5
        %v883 = vsel %vm682, %v882, %v881
        %v884 = vrot.slane %v455, 4
        %v885 = vsel %vm685, %v884, %v883
        %v886 = vrot.slane %v456, 3
        %v887 = vsel %vm688, %v886, %v885
        %v888 = vrot.slane %v457, 2
        %v889 = vsel %vm691, %v888, %v887
        %v890 = vrot.slane %v458, 1
        %v891 = vsel %vm694, %v890, %v889
        %v892 = vrot.slane %v460, 7
        %v893 = vsel %vm676, %v892, %v459
        %v894 = vrot.slane %v461, 6
        %v895 = vsel %vm679, %v894, %v893
        %v896 = vrot.slane %v462, 5
        %v897 = vsel %vm682, %v896, %v895
        %v898 = vrot.slane %v463, 4
        %v899 = vsel %vm685, %v898, %v897
        %v900 = vrot.slane %v464, 3
        %v901 = vsel %vm688, %v900, %v899
        %v902 = vrot.slane %v465, 2
        %v903 = vsel %vm691, %v902, %v901
        %v904 = vrot.slane %v466, 1
        %v905 = vsel %vm694, %v904, %v903
        %v922 = vmul.f32 %v470, %v695
        %v923 = vmul.f32 %v475, %v709
        %v924 = vmul.f32 %v480, %v723
        %v925 = vmul.f32 %v485, %v737
        %v926 = vmul.f32 %v490, %v751
        %v927 = vmul.f32 %v495, %v765
        %v928 = vmul.f32 %v500, %v779
        %v929 = vmul.f32 %v505, %v793
        %v930 = vmul.f32 %v510, %v807
        %v931 = vmul.f32 %v515, %v821
        %v932 = vmul.f32 %v520, %v835
        %v933 = vmul.f32 %v525, %v849
        %v934 = vmul.f32 %v530, %v863
        %v935 = vmul.f32 %v535, %v877
        %v936 = vmul.f32 %v540, %v891
        %v937 = vmul.f32 %v545, %v905
        %v954 = vrot.slane %v922, 1
        %v955 = vrot.slane %v922, 2
        %v956 = vrot.slane %v922, 3
        %v957 = vrot.slane %v922, 4
        %v958 = vrot.slane %v922, 5
        %v959 = vrot.slane %v922, 6
        %v960 = vrot.slane %v922, 7
        %v961 = vrot.slane %v923, 1
        %v962 = vrot.slane %v923, 2
        %v963 = vrot.slane %v923, 3
        %v964 = vrot.slane %v923, 4
        %v965 = vrot.slane %v923, 5
        %v966 = vrot.slane %v923, 6
        %v967 = vrot.slane %v923, 7
        %v968 = vrot.slane %v924, 1
        %v969 = vrot.slane %v924, 2
        %v970 = vrot.slane %v924, 3
        %v971 = vrot.slane %v924, 4
        %v972 = vrot.slane %v924, 5
        %v973 = vrot.slane %v924, 6
        %v974 = vrot.slane %v924, 7
        %v975 = vrot.slane %v925, 1
        %v976 = vrot.slane %v925, 2
        %v977 = vrot.slane %v925, 3
        %v978 = vrot.slane %v925, 4
        %v979 = vrot.slane %v925, 5
        %v980 = vrot.slane %v925, 6
        %v981 = vrot.slane %v925, 7
        %v982 = vrot.slane %v926, 1
        %v983 = vrot.slane %v926, 2
        %v984 = vrot.slane %v926, 3
        %v985 = vrot.slane %v926, 4
        %v986 = vrot.slane %v926, 5
        %v987 = vrot.slane %v926, 6
        %v988 = vrot.slane %v926, 7
        %v989 = vrot.slane %v927, 1
        %v990 = vrot.slane %v927, 2
        %v991 = vrot.slane %v927, 3
        %v992 = vrot.slane %v927, 4
        %v993 = vrot.slane %v927, 5
        %v994 = vrot.slane %v927, 6
        %v995 = vrot.slane %v927, 7
        %v996 = vrot.slane %v928, 1
        %v997 = vrot.slane %v928, 2
        %v998 = vrot.slane %v928, 3
        %v999 = vrot.slane %v928, 4
        %v1000 = vrot.slane %v928, 5
        %v1001 = vrot.slane %v928, 6
        %v1002 = vrot.slane %v928, 7
        %v1003 = vrot.slane %v929, 1
        %v1004 = vrot.slane %v929, 2
        %v1005 = vrot.slane %v929, 3
        %v1006 = vrot.slane %v929, 4
        %v1007 = vrot.slane %v929, 5
        %v1008 = vrot.slane %v929, 6
        %v1009 = vrot.slane %v929, 7
        %v1010 = vrot.slane %v930, 1
        %v1011 = vrot.slane %v930, 2
        %v1012 = vrot.slane %v930, 3
        %v1013 = vrot.slane %v930, 4
        %v1014 = vrot.slane %v930, 5
        %v1015 = vrot.slane %v930, 6
        %v1016 = vrot.slane %v930, 7
        %v1017 = vrot.slane %v931, 1
        %v1018 = vrot.slane %v931, 2
        %v1019 = vrot.slane %v931, 3
        %v1020 = vrot.slane %v931, 4
        %v1021 = vrot.slane %v931, 5
        %v1022 = vrot.slane %v931, 6
        %v1023 = vrot.slane %v931, 7
        %v1024 = vrot.slane %v932, 1
        %v1025 = vrot.slane %v932, 2
        %v1026 = vrot.slane %v932, 3
        %v1027 = vrot.slane %v932, 4
        %v1028 = vrot.slane %v932, 5
        %v1029 = vrot.slane %v932, 6
        %v1030 = vrot.slane %v932, 7
        %v1031 = vrot.slane %v933, 1
        %v1032 = vrot.slane %v933, 2
        %v1033 = vrot.slane %v933, 3
        %v1034 = vrot.slane %v933, 4
        %v1035 = vrot.slane %v933, 5
        %v1036 = vrot.slane %v933, 6
        %v1037 = vrot.slane %v933, 7
        %v1038 = vrot.slane %v934, 1
        %v1039 = vrot.slane %v934, 2
        %v1040 = vrot.slane %v934, 3
        %v1041 = vrot.slane %v934, 4
        %v1042 = vrot.slane %v934, 5
        %v1043 = vrot.slane %v934, 6
        %v1044 = vrot.slane %v934, 7
        %v1045 = vrot.slane %v935, 1
        %v1046 = vrot.slane %v935, 2
        %v1047 = vrot.slane %v935, 3
        %v1048 = vrot.slane %v935, 4
        %v1049 = vrot.slane %v935, 5
        %v1050 = vrot.slane %v935, 6
        %v1051 = vrot.slane %v935, 7
        %v1052 = vrot.slane %v936, 1
        %v1053 = vrot.slane %v936, 2
        %v1054 = vrot.slane %v936, 3
        %v1055 = vrot.slane %v936, 4
        %v1056 = vrot.slane %v936, 5
        %v1057 = vrot.slane %v936, 6
        %v1058 = vrot.slane %v936, 7
        %v1059 = vrot.slane %v937, 1
        %v1060 = vrot.slane %v937, 2
        %v1061 = vrot.slane %v937, 3
        %v1062 = vrot.slane %v937, 4
        %v1063 = vrot.slane %v937, 5
        %v1064 = vrot.slane %v937, 6
        %v1065 = vrot.slane %v937, 7
        %v1194 = vadd.f32 %v195, %v922
        %v1195 = vadd.f32 %v196, %v954
        %v1196 = vadd.f32 %v197, %v955
        %v1197 = vadd.f32 %v198, %v956
        %v1198 = vadd.f32 %v199, %v957
        %v1199 = vadd.f32 %v200, %v958
        %v1200 = vadd.f32 %v201, %v959
        %v1201 = vadd.f32 %v202, %v960
        %v1202 = vadd.f32 %v203, %v923
        %v1203 = vadd.f32 %v204, %v961
        %v1204 = vadd.f32 %v205, %v962
        %v1205 = vadd.f32 %v206, %v963
        %v1206 = vadd.f32 %v207, %v964
        %v1207 = vadd.f32 %v208, %v965
        %v1208 = vadd.f32 %v209, %v966
        %v1209 = vadd.f32 %v210, %v967
        %v1210 = vadd.f32 %v211, %v924
        %v1211 = vadd.f32 %v212, %v968
        %v1212 = vadd.f32 %v213, %v969
        %v1213 = vadd.f32 %v214, %v970
        %v1214 = vadd.f32 %v215, %v971
        %v1215 = vadd.f32 %v216, %v972
        %v1216 = vadd.f32 %v217, %v973
        %v1217 = vadd.f32 %v218, %v974
        %v1218 = vadd.f32 %v219, %v925
        %v1219 = vadd.f32 %v220, %v975
        %v1220 = vadd.f32 %v221, %v976
        %v1221 = vadd.f32 %v222, %v977
        %v1222 = vadd.f32 %v223, %v978
        %v1223 = vadd.f32 %v224, %v979
        %v1224 = vadd.f32 %v225, %v980
        %v1225 = vadd.f32 %v226, %v981
        %v1226 = vadd.f32 %v227, %v926
        %v1227 = vadd.f32 %v228, %v982
        %v1228 = vadd.f32 %v229, %v983
        %v1229 = vadd.f32 %v230, %v984
        %v1230 = vadd.f32 %v231, %v985
        %v1231 = vadd.f32 %v232, %v986
        %v1232 = vadd.f32 %v233, %v987
        %v1233 = vadd.f32 %v234, %v988
        %v1234 = vadd.f32 %v235, %v927
        %v1235 = vadd.f32 %v236, %v989
        %v1236 = vadd.f32 %v237, %v990
        %v1237 = vadd.f32 %v238, %v991
        %v1238 = vadd.f32 %v239, %v992
        %v1239 = vadd.f32 %v240, %v993
        %v1240 = vadd.f32 %v241, %v994
        %v1241 = vadd.f32 %v242, %v995
        %v1242 = vadd.f32 %v243, %v928
        %v1243 = vadd.f32 %v244, %v996
        %v1244 = vadd.f32 %v245, %v997
        %v1245 = vadd.f32 %v246, %v998
        %v1246 = vadd.f32 %v247, %v999
        %v1247 = vadd.f32 %v248, %v1000
        %v1248 = vadd.f32 %v249, %v1001
        %v1249 = vadd.f32 %v250, %v1002
        %v1250 = vadd.f32 %v251, %v929
        %v1251 = vadd.f32 %v252, %v1003
        %v1252 = vadd.f32 %v253, %v1004
        %v1253 = vadd.f32 %v254, %v1005
        %v1254 = vadd.f32 %v255, %v1006
        %v1255 = vadd.f32 %v256, %v1007
        %v1256 = vadd.f32 %v257, %v1008
        %v1257 = vadd.f32 %v258, %v1009
        %v1258 = vadd.f32 %v259, %v930
        %v1259 = vadd.f32 %v260, %v1010
        %v1260 = vadd.f32 %v261, %v1011
        %v1261 = vadd.f32 %v262, %v1012
        %v1262 = vadd.f32 %v263, %v1013
        %v1263 = vadd.f32 %v264, %v1014
        %v1264 = vadd.f32 %v265, %v1015
        %v1265 = vadd.f32 %v266, %v1016
        %v1266 = vadd.f32 %v267, %v931
        %v1267 = vadd.f32 %v268, %v1017
        %v1268 = vadd.f32 %v269, %v1018
        %v1269 = vadd.f32 %v270, %v1019
        %v1270 = vadd.f32 %v271, %v1020
        %v1271 = vadd.f32 %v272, %v1021
        %v1272 = vadd.f32 %v273, %v1022
        %v1273 = vadd.f32 %v274, %v1023
        %v1274 = vadd.f32 %v275, %v932
        %v1275 = vadd.f32 %v276, %v1024
        %v1276 = vadd.f32 %v277, %v1025
        %v1277 = vadd.f32 %v278, %v1026
        %v1278 = vadd.f32 %v279, %v1027
        %v1279 = vadd.f32 %v280, %v1028
        %v1280 = vadd.f32 %v281, %v1029
        %v1281 = vadd.f32 %v282, %v1030
        %v1282 = vadd.f32 %v283, %v933
        %v1283 = vadd.f32 %v284, %v1031
        %v1284 = vadd.f32 %v285, %v1032
        %v1285 = vadd.f32 %v286, %v1033
        %v1286 = vadd.f32 %v287, %v1034
        %v1287 = vadd.f32 %v288, %v1035
        %v1288 = vadd.f32 %v289, %v1036
        %v1289 = vadd.f32 %v290, %v1037
        %v1290 = vadd.f32 %v291, %v934
        %v1291 = vadd.f32 %v292, %v1038
        %v1292 = vadd.f32 %v293, %v1039
        %v1293 = vadd.f32 %v294, %v1040
        %v1294 = vadd.f32 %v295, %v1041
        %v1295 = vadd.f32 %v296, %v1042
        %v1296 = vadd.f32 %v297, %v1043
        %v1297 = vadd.f32 %v298, %v1044
        %v1298 = vadd.f32 %v299, %v935
        %v1299 = vadd.f32 %v300, %v1045
        %v1300 = vadd.f32 %v301, %v1046
        %v1301 = vadd.f32 %v302, %v1047
        %v1302 = vadd.f32 %v303, %v1048
        %v1303 = vadd.f32 %v304, %v1049
        %v1304 = vadd.f32 %v305, %v1050
        %v1305 = vadd.f32 %v306, %v1051
        %v1306 = vadd.f32 %v307, %v936
        %v1307 = vadd.f32 %v308, %v1052
        %v1308 = vadd.f32 %v309, %v1053
        %v1309 = vadd.f32 %v310, %v1054
        %v1310 = vadd.f32 %v311, %v1055
        %v1311 = vadd.f32 %v312, %v1056
        %v1312 = vadd.f32 %v313, %v1057
        %v1313 = vadd.f32 %v314, %v1058
        %v1314 = vadd.f32 %v315, %v937
        %v1315 = vadd.f32 %v316, %v1059
        %v1316 = vadd.f32 %v317, %v1060
        %v1317 = vadd.f32 %v318, %v1061
        %v1318 = vadd.f32 %v319, %v1062
        %v1319 = vadd.f32 %v320, %v1063
        %v1320 = vadd.f32 %v321, %v1064
        %v1321 = vadd.f32 %v322, %v1065
        %v1322 = vld [vmem:[%s192 + $0x1] sm:$0x1]
        %v1323 = vld [vmem:[%s192 + $0x11] sm:$0x1]
        %v1324 = vld [vmem:[%s192 + $0x21] sm:$0x1]
        %v1325 = vld [vmem:[%s192 + $0x31] sm:$0x1]
        %v1326 = vld [vmem:[%s192 + $0x41] sm:$0x1]
        %v1327 = vld [vmem:[%s192 + $0x51] sm:$0x1]
        %v1328 = vld [vmem:[%s192 + $0x61] sm:$0x1]
        %v1329 = vld [vmem:[%s192 + $0x71] sm:$0x1]
        %v1330 = vld [vmem:[%s192 + $0x81] sm:$0x1]
        %v1331 = vld [vmem:[%s192 + $0x91] sm:$0x1]
        %v1332 = vld [vmem:[%s192 + $0xa1] sm:$0x1]
        %v1333 = vld [vmem:[%s192 + $0xb1] sm:$0x1]
        %v1334 = vld [vmem:[%s192 + $0xc1] sm:$0x1]
        %v1335 = vld [vmem:[%s192 + $0xd1] sm:$0x1]
        %v1336 = vld [vmem:[%s192 + $0xe1] sm:$0x1]
        %v1337 = vld [vmem:[%s192 + $0xf1] sm:$0x1]
        %v1338 = vld [vmem:[%s192 + $0x101] sm:$0x1]
        %v1339 = vld [vmem:[%s192 + $0x111] sm:$0x1]
        %v1340 = vld [vmem:[%s192 + $0x121] sm:$0x1]
        %v1341 = vld [vmem:[%s192 + $0x131] sm:$0x1]
        %v1342 = vld [vmem:[%s192 + $0x141] sm:$0x1]
        %v1343 = vld [vmem:[%s192 + $0x151] sm:$0x1]
        %v1344 = vld [vmem:[%s192 + $0x161] sm:$0x1]
        %v1345 = vld [vmem:[%s192 + $0x171] sm:$0x1]
        %v1346 = vld [vmem:[%s192 + $0x181] sm:$0x1]
        %v1347 = vld [vmem:[%s192 + $0x191] sm:$0x1]
        %v1348 = vld [vmem:[%s192 + $0x1a1] sm:$0x1]
        %v1349 = vld [vmem:[%s192 + $0x1b1] sm:$0x1]
        %v1350 = vld [vmem:[%s192 + $0x1c1] sm:$0x1]
        %v1351 = vld [vmem:[%s192 + $0x1d1] sm:$0x1]
        %v1352 = vld [vmem:[%s192 + $0x1e1] sm:$0x1]
        %v1353 = vld [vmem:[%s192 + $0x1f1] sm:$0x1]
        %v1354 = vld [vmem:[%s192 + $0x201] sm:$0x1]
        %v1355 = vld [vmem:[%s192 + $0x211] sm:$0x1]
        %v1356 = vld [vmem:[%s192 + $0x221] sm:$0x1]
        %v1357 = vld [vmem:[%s192 + $0x231] sm:$0x1]
        %v1358 = vld [vmem:[%s192 + $0x241] sm:$0x1]
        %v1359 = vld [vmem:[%s192 + $0x251] sm:$0x1]
        %v1360 = vld [vmem:[%s192 + $0x261] sm:$0x1]
        %v1361 = vld [vmem:[%s192 + $0x271] sm:$0x1]
        %v1362 = vld [vmem:[%s192 + $0x281] sm:$0x1]
        %v1363 = vld [vmem:[%s192 + $0x291] sm:$0x1]
        %v1364 = vld [vmem:[%s192 + $0x2a1] sm:$0x1]
        %v1365 = vld [vmem:[%s192 + $0x2b1] sm:$0x1]
        %v1366 = vld [vmem:[%s192 + $0x2c1] sm:$0x1]
        %v1367 = vld [vmem:[%s192 + $0x2d1] sm:$0x1]
        %v1368 = vld [vmem:[%s192 + $0x2e1] sm:$0x1]
        %v1369 = vld [vmem:[%s192 + $0x2f1] sm:$0x1]
        %v1370 = vld [vmem:[%s192 + $0x301] sm:$0x1]
        %v1371 = vld [vmem:[%s192 + $0x311] sm:$0x1]
        %v1372 = vld [vmem:[%s192 + $0x321] sm:$0x1]
        %v1373 = vld [vmem:[%s192 + $0x331] sm:$0x1]
        %v1374 = vld [vmem:[%s192 + $0x341] sm:$0x1]
        %v1375 = vld [vmem:[%s192 + $0x351] sm:$0x1]
        %v1376 = vld [vmem:[%s192 + $0x361] sm:$0x1]
        %v1377 = vld [vmem:[%s192 + $0x371] sm:$0x1]
        %v1378 = vld [vmem:[%s192 + $0x381] sm:$0x1]
        %v1379 = vld [vmem:[%s192 + $0x391] sm:$0x1]
        %v1380 = vld [vmem:[%s192 + $0x3a1] sm:$0x1]
        %v1381 = vld [vmem:[%s192 + $0x3b1] sm:$0x1]
        %v1382 = vld [vmem:[%s192 + $0x3c1] sm:$0x1]
        %v1383 = vld [vmem:[%s192 + $0x3d1] sm:$0x1]
        %v1384 = vld [vmem:[%s192 + $0x3e1] sm:$0x1]
        %v1385 = vld [vmem:[%s192 + $0x3f1] sm:$0x1]
        %v1386 = vld [vmem:[%s192 + $0x401] sm:$0x1]
        %v1387 = vld [vmem:[%s192 + $0x411] sm:$0x1]
        %v1388 = vld [vmem:[%s192 + $0x421] sm:$0x1]
        %v1389 = vld [vmem:[%s192 + $0x431] sm:$0x1]
        %v1390 = vld [vmem:[%s192 + $0x441] sm:$0x1]
        %v1391 = vld [vmem:[%s192 + $0x451] sm:$0x1]
        %v1392 = vld [vmem:[%s192 + $0x461] sm:$0x1]
        %v1393 = vld [vmem:[%s192 + $0x471] sm:$0x1]
        %v1394 = vld [vmem:[%s192 + $0x481] sm:$0x1]
        %v1395 = vld [vmem:[%s192 + $0x491] sm:$0x1]
        %v1396 = vld [vmem:[%s192 + $0x4a1] sm:$0x1]
        %v1397 = vld [vmem:[%s192 + $0x4b1] sm:$0x1]
        %v1398 = vld [vmem:[%s192 + $0x4c1] sm:$0x1]
        %v1399 = vld [vmem:[%s192 + $0x4d1] sm:$0x1]
        %v1400 = vld [vmem:[%s192 + $0x4e1] sm:$0x1]
        %v1401 = vld [vmem:[%s192 + $0x4f1] sm:$0x1]
        %v1402 = vld [vmem:[%s192 + $0x501] sm:$0x1]
        %v1403 = vld [vmem:[%s192 + $0x511] sm:$0x1]
        %v1404 = vld [vmem:[%s192 + $0x521] sm:$0x1]
        %v1405 = vld [vmem:[%s192 + $0x531] sm:$0x1]
        %v1406 = vld [vmem:[%s192 + $0x541] sm:$0x1]
        %v1407 = vld [vmem:[%s192 + $0x551] sm:$0x1]
        %v1408 = vld [vmem:[%s192 + $0x561] sm:$0x1]
        %v1409 = vld [vmem:[%s192 + $0x571] sm:$0x1]
        %v1410 = vld [vmem:[%s192 + $0x581] sm:$0x1]
        %v1411 = vld [vmem:[%s192 + $0x591] sm:$0x1]
        %v1412 = vld [vmem:[%s192 + $0x5a1] sm:$0x1]
        %v1413 = vld [vmem:[%s192 + $0x5b1] sm:$0x1]
        %v1414 = vld [vmem:[%s192 + $0x5c1] sm:$0x1]
        %v1415 = vld [vmem:[%s192 + $0x5d1] sm:$0x1]
        %v1416 = vld [vmem:[%s192 + $0x5e1] sm:$0x1]
        %v1417 = vld [vmem:[%s192 + $0x5f1] sm:$0x1]
        %v1418 = vld [vmem:[%s192 + $0x601] sm:$0x1]
        %v1419 = vld [vmem:[%s192 + $0x611] sm:$0x1]
        %v1420 = vld [vmem:[%s192 + $0x621] sm:$0x1]
        %v1421 = vld [vmem:[%s192 + $0x631] sm:$0x1]
        %v1422 = vld [vmem:[%s192 + $0x641] sm:$0x1]
        %v1423 = vld [vmem:[%s192 + $0x651] sm:$0x1]
        %v1424 = vld [vmem:[%s192 + $0x661] sm:$0x1]
        %v1425 = vld [vmem:[%s192 + $0x671] sm:$0x1]
        %v1426 = vld [vmem:[%s192 + $0x681] sm:$0x1]
        %v1427 = vld [vmem:[%s192 + $0x691] sm:$0x1]
        %v1428 = vld [vmem:[%s192 + $0x6a1] sm:$0x1]
        %v1429 = vld [vmem:[%s192 + $0x6b1] sm:$0x1]
        %v1430 = vld [vmem:[%s192 + $0x6c1] sm:$0x1]
        %v1431 = vld [vmem:[%s192 + $0x6d1] sm:$0x1]
        %v1432 = vld [vmem:[%s192 + $0x6e1] sm:$0x1]
        %v1433 = vld [vmem:[%s192 + $0x6f1] sm:$0x1]
        %v1434 = vld [vmem:[%s192 + $0x701] sm:$0x1]
        %v1435 = vld [vmem:[%s192 + $0x711] sm:$0x1]
        %v1436 = vld [vmem:[%s192 + $0x721] sm:$0x1]
        %v1437 = vld [vmem:[%s192 + $0x731] sm:$0x1]
        %v1438 = vld [vmem:[%s192 + $0x741] sm:$0x1]
        %v1439 = vld [vmem:[%s192 + $0x751] sm:$0x1]
        %v1440 = vld [vmem:[%s192 + $0x761] sm:$0x1]
        %v1441 = vld [vmem:[%s192 + $0x771] sm:$0x1]
        %v1442 = vld [vmem:[%s192 + $0x781] sm:$0x1]
        %v1443 = vld [vmem:[%s192 + $0x791] sm:$0x1]
        %v1444 = vld [vmem:[%s192 + $0x7a1] sm:$0x1]
        %v1445 = vld [vmem:[%s192 + $0x7b1] sm:$0x1]
        %v1446 = vld [vmem:[%s192 + $0x7c1] sm:$0x1]
        %v1447 = vld [vmem:[%s192 + $0x7d1] sm:$0x1]
        %v1448 = vld [vmem:[%s192 + $0x7e1] sm:$0x1]
        %v1449 = vld [vmem:[%s192 + $0x7f1] sm:$0x1]
        %1450 = vset.pattern.permute.xlu0 1
        %1451 = vperm.xlu0 %1450, %v323
        %v1452 = vpop.permute.xlu0 %1451
        %1454 = vset.pattern.permute.xlu0 1
        %1455 = vperm.xlu0 %1454, %v324
        %v1456 = vpop.permute.xlu0 %1455
        %1458 = vset.pattern.permute.xlu0 1
        %1459 = vperm.xlu0 %1458, %v325
        %v1460 = vpop.permute.xlu0 %1459
        %1462 = vset.pattern.permute.xlu0 1
        %1463 = vperm.xlu0 %1462, %v326
        %v1464 = vpop.permute.xlu0 %1463
        %1466 = vset.pattern.permute.xlu0 1
        %1467 = vperm.xlu0 %1466, %v327
        %v1468 = vpop.permute.xlu0 %1467
        %1470 = vset.pattern.permute.xlu0 1
        %1471 = vperm.xlu0 %1470, %v328
        %v1472 = vpop.permute.xlu0 %1471
        %1474 = vset.pattern.permute.xlu0 1
        %1475 = vperm.xlu0 %1474, %v329
        %v1476 = vpop.permute.xlu0 %1475
        %1478 = vset.pattern.permute.xlu0 1
        %1479 = vperm.xlu0 %1478, %v330
        %v1480 = vpop.permute.xlu0 %1479
        %1482 = vset.pattern.permute.xlu0 1
        %1483 = vperm.xlu0 %1482, %v331
        %v1484 = vpop.permute.xlu0 %1483
        %1486 = vset.pattern.permute.xlu0 1
        %1487 = vperm.xlu0 %1486, %v332
        %v1488 = vpop.permute.xlu0 %1487
        %1490 = vset.pattern.permute.xlu0 1
        %1491 = vperm.xlu0 %1490, %v333
        %v1492 = vpop.permute.xlu0 %1491
        %1494 = vset.pattern.permute.xlu0 1
        %1495 = vperm.xlu0 %1494, %v334
        %v1496 = vpop.permute.xlu0 %1495
        %1498 = vset.pattern.permute.xlu0 1
        %1499 = vperm.xlu0 %1498, %v335
        %v1500 = vpop.permute.xlu0 %1499
        %1502 = vset.pattern.permute.xlu0 1
        %1503 = vperm.xlu0 %1502, %v336
        %v1504 = vpop.permute.xlu0 %1503
        %1506 = vset.pattern.permute.xlu0 1
        %1507 = vperm.xlu0 %1506, %v337
        %v1508 = vpop.permute.xlu0 %1507
        %1510 = vset.pattern.permute.xlu0 1
        %1511 = vperm.xlu0 %1510, %v338
        %v1512 = vpop.permute.xlu0 %1511
        %v1642 = vrot.slane %v1323, 7
        %v1643 = vsel %vm676, %v1642, %v1322
        %v1644 = vrot.slane %v1324, 6
        %v1645 = vsel %vm679, %v1644, %v1643
        %v1646 = vrot.slane %v1325, 5
        %v1647 = vsel %vm682, %v1646, %v1645
        %v1648 = vrot.slane %v1326, 4
        %v1649 = vsel %vm685, %v1648, %v1647
        %v1650 = vrot.slane %v1327, 3
        %v1651 = vsel %vm688, %v1650, %v1649
        %v1652 = vrot.slane %v1328, 2
        %v1653 = vsel %vm691, %v1652, %v1651
        %v1654 = vrot.slane %v1329, 1
        %v1655 = vsel %vm694, %v1654, %v1653
        %v1656 = vrot.slane %v1331, 7
        %v1657 = vsel %vm676, %v1656, %v1330
        %v1658 = vrot.slane %v1332, 6
        %v1659 = vsel %vm679, %v1658, %v1657
        %v1660 = vrot.slane %v1333, 5
        %v1661 = vsel %vm682, %v1660, %v1659
        %v1662 = vrot.slane %v1334, 4
        %v1663 = vsel %vm685, %v1662, %v1661
        %v1664 = vrot.slane %v1335, 3
        %v1665 = vsel %vm688, %v1664, %v1663
        %v1666 = vrot.slane %v1336, 2
        %v1667 = vsel %vm691, %v1666, %v1665
        %v1668 = vrot.slane %v1337, 1
        %v1669 = vsel %vm694, %v1668, %v1667
        %v1670 = vrot.slane %v1339, 7
        %v1671 = vsel %vm676, %v1670, %v1338
        %v1672 = vrot.slane %v1340, 6
        %v1673 = vsel %vm679, %v1672, %v1671
        %v1674 = vrot.slane %v1341, 5
        %v1675 = vsel %vm682, %v1674, %v1673
        %v1676 = vrot.slane %v1342, 4
        %v1677 = vsel %vm685, %v1676, %v1675
        %v1678 = vrot.slane %v1343, 3
        %v1679 = vsel %vm688, %v1678, %v1677
        %v1680 = vrot.slane %v1344, 2
        %v1681 = vsel %vm691, %v1680, %v1679
        %v1682 = vrot.slane %v1345, 1
        %v1683 = vsel %vm694, %v1682, %v1681
        %v1684 = vrot.slane %v1347, 7
        %v1685 = vsel %vm676, %v1684, %v1346
        %v1686 = vrot.slane %v1348, 6
        %v1687 = vsel %vm679, %v1686, %v1685
        %v1688 = vrot.slane %v1349, 5
        %v1689 = vsel %vm682, %v1688, %v1687
        %v1690 = vrot.slane %v1350, 4
        %v1691 = vsel %vm685, %v1690, %v1689
        %v1692 = vrot.slane %v1351, 3
        %v1693 = vsel %vm688, %v1692, %v1691
        %v1694 = vrot.slane %v1352, 2
        %v1695 = vsel %vm691, %v1694, %v1693
        %v1696 = vrot.slane %v1353, 1
        %v1697 = vsel %vm694, %v1696, %v1695
        %v1698 = vrot.slane %v1355, 7
        %v1699 = vsel %vm676, %v1698, %v1354
        %v1700 = vrot.slane %v1356, 6
        %v1701 = vsel %vm679, %v1700, %v1699
        %v1702 = vrot.slane %v1357, 5
        %v1703 = vsel %vm682, %v1702, %v1701
        %v1704 = vrot.slane %v1358, 4
        %v1705 = vsel %vm685, %v1704, %v1703
        %v1706 = vrot.slane %v1359, 3
        %v1707 = vsel %vm688, %v1706, %v1705
        %v1708 = vrot.slane %v1360, 2
        %v1709 = vsel %vm691, %v1708, %v1707
        %v1710 = vrot.slane %v1361, 1
        %v1711 = vsel %vm694, %v1710, %v1709
        %v1712 = vrot.slane %v1363, 7
        %v1713 = vsel %vm676, %v1712, %v1362
        %v1714 = vrot.slane %v1364, 6
        %v1715 = vsel %vm679, %v1714, %v1713
        %v1716 = vrot.slane %v1365, 5
        %v1717 = vsel %vm682, %v1716, %v1715
        %v1718 = vrot.slane %v1366, 4
        %v1719 = vsel %vm685, %v1718, %v1717
        %v1720 = vrot.slane %v1367, 3
        %v1721 = vsel %vm688, %v1720, %v1719
        %v1722 = vrot.slane %v1368, 2
        %v1723 = vsel %vm691, %v1722, %v1721
        %v1724 = vrot.slane %v1369, 1
        %v1725 = vsel %vm694, %v1724, %v1723
        %v1726 = vrot.slane %v1371, 7
        %v1727 = vsel %vm676, %v1726, %v1370
        %v1728 = vrot.slane %v1372, 6
        %v1729 = vsel %vm679, %v1728, %v1727
        %v1730 = vrot.slane %v1373, 5
        %v1731 = vsel %vm682, %v1730, %v1729
        %v1732 = vrot.slane %v1374, 4
        %v1733 = vsel %vm685, %v1732, %v1731
        %v1734 = vrot.slane %v1375, 3
        %v1735 = vsel %vm688, %v1734, %v1733
        %v1736 = vrot.slane %v1376, 2
        %v1737 = vsel %vm691, %v1736, %v1735
        %v1738 = vrot.slane %v1377, 1
        %v1739 = vsel %vm694, %v1738, %v1737
        %v1740 = vrot.slane %v1379, 7
        %v1741 = vsel %vm676, %v1740, %v1378
        %v1742 = vrot.slane %v1380, 6
        %v1743 = vsel %vm679, %v1742, %v1741
        %v1744 = vrot.slane %v1381, 5
        %v1745 = vsel %vm682, %v1744, %v1743
        %v1746 = vrot.slane %v1382, 4
        %v1747 = vsel %vm685, %v1746, %v1745
        %v1748 = vrot.slane %v1383, 3
        %v1749 = vsel %vm688, %v1748, %v1747
        %v1750 = vrot.slane %v1384, 2
        %v1751 = vsel %vm691, %v1750, %v1749
        %v1752 = vrot.slane %v1385, 1
        %v1753 = vsel %vm694, %v1752, %v1751
        %v1754 = vrot.slane %v1387, 7
        %v1755 = vsel %vm676, %v1754, %v1386
        %v1756 = vrot.slane %v1388, 6
        %v1757 = vsel %vm679, %v1756, %v1755
        %v1758 = vrot.slane %v1389, 5
        %v1759 = vsel %vm682, %v1758, %v1757
        %v1760 = vrot.slane %v1390, 4
        %v1761 = vsel %vm685, %v1760, %v1759
        %v1762 = vrot.slane %v1391, 3
        %v1763 = vsel %vm688, %v1762, %v1761
        %v1764 = vrot.slane %v1392, 2
        %v1765 = vsel %vm691, %v1764, %v1763
        %v1766 = vrot.slane %v1393, 1
        %v1767 = vsel %vm694, %v1766, %v1765
        %v1768 = vrot.slane %v1395, 7
        %v1769 = vsel %vm676, %v1768, %v1394
        %v1770 = vrot.slane %v1396, 6
        %v1771 = vsel %vm679, %v1770, %v1769
        %v1772 = vrot.slane %v1397, 5
        %v1773 = vsel %vm682, %v1772, %v1771
        %v1774 = vrot.slane %v1398, 4
        %v1775 = vsel %vm685, %v1774, %v1773
        %v1776 = vrot.slane %v1399, 3
        %v1777 = vsel %vm688, %v1776, %v1775
        %v1778 = vrot.slane %v1400, 2
        %v1779 = vsel %vm691, %v1778, %v1777
        %v1780 = vrot.slane %v1401, 1
        %v1781 = vsel %vm694, %v1780, %v1779
        %v1782 = vrot.slane %v1403, 7
        %v1783 = vsel %vm676, %v1782, %v1402
        %v1784 = vrot.slane %v1404, 6
        %v1785 = vsel %vm679, %v1784, %v1783
        %v1786 = vrot.slane %v1405, 5
        %v1787 = vsel %vm682, %v1786, %v1785
        %v1788 = vrot.slane %v1406, 4
        %v1789 = vsel %vm685, %v1788, %v1787
        %v1790 = vrot.slane %v1407, 3
        %v1791 = vsel %vm688, %v1790, %v1789
        %v1792 = vrot.slane %v1408, 2
        %v1793 = vsel %vm691, %v1792, %v1791
        %v1794 = vrot.slane %v1409, 1
        %v1795 = vsel %vm694, %v1794, %v1793
        %v1796 = vrot.slane %v1411, 7
        %v1797 = vsel %vm676, %v1796, %v1410
        %v1798 = vrot.slane %v1412, 6
        %v1799 = vsel %vm679, %v1798, %v1797
        %v1800 = vrot.slane %v1413, 5
        %v1801 = vsel %vm682, %v1800, %v1799
        %v1802 = vrot.slane %v1414, 4
        %v1803 = vsel %vm685, %v1802, %v1801
        %v1804 = vrot.slane %v1415, 3
        %v1805 = vsel %vm688, %v1804, %v1803
        %v1806 = vrot.slane %v1416, 2
        %v1807 = vsel %vm691, %v1806, %v1805
        %v1808 = vrot.slane %v1417, 1
        %v1809 = vsel %vm694, %v1808, %v1807
        %v1810 = vrot.slane %v1419, 7
        %v1811 = vsel %vm676, %v1810, %v1418
        %v1812 = vrot.slane %v1420, 6
        %v1813 = vsel %vm679, %v1812, %v1811
        %v1814 = vrot.slane %v1421, 5
        %v1815 = vsel %vm682, %v1814, %v1813
        %v1816 = vrot.slane %v1422, 4
        %v1817 = vsel %vm685, %v1816, %v1815
        %v1818 = vrot.slane %v1423, 3
        %v1819 = vsel %vm688, %v1818, %v1817
        %v1820 = vrot.slane %v1424, 2
        %v1821 = vsel %vm691, %v1820, %v1819
        %v1822 = vrot.slane %v1425, 1
        %v1823 = vsel %vm694, %v1822, %v1821
        %v1824 = vrot.slane %v1427, 7
        %v1825 = vsel %vm676, %v1824, %v1426
        %v1826 = vrot.slane %v1428, 6
        %v1827 = vsel %vm679, %v1826, %v1825
        %v1828 = vrot.slane %v1429, 5
        %v1829 = vsel %vm682, %v1828, %v1827
        %v1830 = vrot.slane %v1430, 4
        %v1831 = vsel %vm685, %v1830, %v1829
        %v1832 = vrot.slane %v1431, 3
        %v1833 = vsel %vm688, %v1832, %v1831
        %v1834 = vrot.slane %v1432, 2
        %v1835 = vsel %vm691, %v1834, %v1833
        %v1836 = vrot.slane %v1433, 1
        %v1837 = vsel %vm694, %v1836, %v1835
        %v1838 = vrot.slane %v1435, 7
        %v1839 = vsel %vm676, %v1838, %v1434
        %v1840 = vrot.slane %v1436, 6
        %v1841 = vsel %vm679, %v1840, %v1839
        %v1842 = vrot.slane %v1437, 5
        %v1843 = vsel %vm682, %v1842, %v1841
        %v1844 = vrot.slane %v1438, 4
        %v1845 = vsel %vm685, %v1844, %v1843
        %v1846 = vrot.slane %v1439, 3
        %v1847 = vsel %vm688, %v1846, %v1845
        %v1848 = vrot.slane %v1440, 2
        %v1849 = vsel %vm691, %v1848, %v1847
        %v1850 = vrot.slane %v1441, 1
        %v1851 = vsel %vm694, %v1850, %v1849
        %v1852 = vrot.slane %v1443, 7
        %v1853 = vsel %vm676, %v1852, %v1442
        %v1854 = vrot.slane %v1444, 6
        %v1855 = vsel %vm679, %v1854, %v1853
        %v1856 = vrot.slane %v1445, 5
        %v1857 = vsel %vm682, %v1856, %v1855
        %v1858 = vrot.slane %v1446, 4
        %v1859 = vsel %vm685, %v1858, %v1857
        %v1860 = vrot.slane %v1447, 3
        %v1861 = vsel %vm688, %v1860, %v1859
        %v1862 = vrot.slane %v1448, 2
        %v1863 = vsel %vm691, %v1862, %v1861
        %v1864 = vrot.slane %v1449, 1
        %v1865 = vsel %vm694, %v1864, %v1863
        %v1882 = vmul.f32 %v1452, %v1655
        %v1883 = vmul.f32 %v1456, %v1669
        %v1884 = vmul.f32 %v1460, %v1683
        %v1885 = vmul.f32 %v1464, %v1697
        %v1886 = vmul.f32 %v1468, %v1711
        %v1887 = vmul.f32 %v1472, %v1725
        %v1888 = vmul.f32 %v1476, %v1739
        %v1889 = vmul.f32 %v1480, %v1753
        %v1890 = vmul.f32 %v1484, %v1767
        %v1891 = vmul.f32 %v1488, %v1781
        %v1892 = vmul.f32 %v1492, %v1795
        %v1893 = vmul.f32 %v1496, %v1809
        %v1894 = vmul.f32 %v1500, %v1823
        %v1895 = vmul.f32 %v1504, %v1837
        %v1896 = vmul.f32 %v1508, %v1851
        %v1897 = vmul.f32 %v1512, %v1865
        %v1914 = vrot.slane %v1882, 1
        %v1915 = vrot.slane %v1882, 2
        %v1916 = vrot.slane %v1882, 3
        %v1917 = vrot.slane %v1882, 4
        %v1918 = vrot.slane %v1882, 5
        %v1919 = vrot.slane %v1882, 6
        %v1920 = vrot.slane %v1882, 7
        %v1921 = vrot.slane %v1883, 1
        %v1922 = vrot.slane %v1883, 2
        %v1923 = vrot.slane %v1883, 3
        %v1924 = vrot.slane %v1883, 4
        %v1925 = vrot.slane %v1883, 5
        %v1926 = vrot.slane %v1883, 6
        %v1927 = vrot.slane %v1883, 7
        %v1928 = vrot.slane %v1884, 1
        %v1929 = vrot.slane %v1884, 2
        %v1930 = vrot.slane %v1884, 3
        %v1931 = vrot.slane %v1884, 4
        %v1932 = vrot.slane %v1884, 5
        %v1933 = vrot.slane %v1884, 6
        %v1934 = vrot.slane %v1884, 7
        %v1935 = vrot.slane %v1885, 1
        %v1936 = vrot.slane %v1885, 2
        %v1937 = vrot.slane %v1885, 3
        %v1938 = vrot.slane %v1885, 4
        %v1939 = vrot.slane %v1885, 5
        %v1940 = vrot.slane %v1885, 6
        %v1941 = vrot.slane %v1885, 7
        %v1942 = vrot.slane %v1886, 1
        %v1943 = vrot.slane %v1886, 2
        %v1944 = vrot.slane %v1886, 3
        %v1945 = vrot.slane %v1886, 4
        %v1946 = vrot.slane %v1886, 5
        %v1947 = vrot.slane %v1886, 6
        %v1948 = vrot.slane %v1886, 7
        %v1949 = vrot.slane %v1887, 1
        %v1950 = vrot.slane %v1887, 2
        %v1951 = vrot.slane %v1887, 3
        %v1952 = vrot.slane %v1887, 4
        %v1953 = vrot.slane %v1887, 5
        %v1954 = vrot.slane %v1887, 6
        %v1955 = vrot.slane %v1887, 7
        %v1956 = vrot.slane %v1888, 1
        %v1957 = vrot.slane %v1888, 2
        %v1958 = vrot.slane %v1888, 3
        %v1959 = vrot.slane %v1888, 4
        %v1960 = vrot.slane %v1888, 5
        %v1961 = vrot.slane %v1888, 6
        %v1962 = vrot.slane %v1888, 7
        %v1963 = vrot.slane %v1889, 1
        %v1964 = vrot.slane %v1889, 2
        %v1965 = vrot.slane %v1889, 3
        %v1966 = vrot.slane %v1889, 4
        %v1967 = vrot.slane %v1889, 5
        %v1968 = vrot.slane %v1889, 6
        %v1969 = vrot.slane %v1889, 7
        %v1970 = vrot.slane %v1890, 1
        %v1971 = vrot.slane %v1890, 2
        %v1972 = vrot.slane %v1890, 3
        %v1973 = vrot.slane %v1890, 4
        %v1974 = vrot.slane %v1890, 5
        %v1975 = vrot.slane %v1890, 6
        %v1976 = vrot.slane %v1890, 7
        %v1977 = vrot.slane %v1891, 1
        %v1978 = vrot.slane %v1891, 2
        %v1979 = vrot.slane %v1891, 3
        %v1980 = vrot.slane %v1891, 4
        %v1981 = vrot.slane %v1891, 5
        %v1982 = vrot.slane %v1891, 6
        %v1983 = vrot.slane %v1891, 7
        %v1984 = vrot.slane %v1892, 1
        %v1985 = vrot.slane %v1892, 2
        %v1986 = vrot.slane %v1892, 3
        %v1987 = vrot.slane %v1892, 4
        %v1988 = vrot.slane %v1892, 5
        %v1989 = vrot.slane %v1892, 6
        %v1990 = vrot.slane %v1892, 7
        %v1991 = vrot.slane %v1893, 1
        %v1992 = vrot.slane %v1893, 2
        %v1993 = vrot.slane %v1893, 3
        %v1994 = vrot.slane %v1893, 4
        %v1995 = vrot.slane %v1893, 5
        %v1996 = vrot.slane %v1893, 6
        %v1997 = vrot.slane %v1893, 7
        %v1998 = vrot.slane %v1894, 1
        %v1999 = vrot.slane %v1894, 2
        %v2000 = vrot.slane %v1894, 3
        %v2001 = vrot.slane %v1894, 4
        %v2002 = vrot.slane %v1894, 5
        %v2003 = vrot.slane %v1894, 6
        %v2004 = vrot.slane %v1894, 7
        %v2005 = vrot.slane %v1895, 1
        %v2006 = vrot.slane %v1895, 2
        %v2007 = vrot.slane %v1895, 3
        %v2008 = vrot.slane %v1895, 4
        %v2009 = vrot.slane %v1895, 5
        %v2010 = vrot.slane %v1895, 6
        %v2011 = vrot.slane %v1895, 7
        %v2012 = vrot.slane %v1896, 1
        %v2013 = vrot.slane %v1896, 2
        %v2014 = vrot.slane %v1896, 3
        %v2015 = vrot.slane %v1896, 4
        %v2016 = vrot.slane %v1896, 5
        %v2017 = vrot.slane %v1896, 6
        %v2018 = vrot.slane %v1896, 7
        %v2019 = vrot.slane %v1897, 1
        %v2020 = vrot.slane %v1897, 2
        %v2021 = vrot.slane %v1897, 3
        %v2022 = vrot.slane %v1897, 4
        %v2023 = vrot.slane %v1897, 5
        %v2024 = vrot.slane %v1897, 6
        %v2025 = vrot.slane %v1897, 7
        %v2154 = vadd.f32 %v1194, %v1882
        %v2155 = vadd.f32 %v1195, %v1914
        %v2156 = vadd.f32 %v1196, %v1915
        %v2157 = vadd.f32 %v1197, %v1916
        %v2158 = vadd.f32 %v1198, %v1917
        %v2159 = vadd.f32 %v1199, %v1918
        %v2160 = vadd.f32 %v1200, %v1919
        %v2161 = vadd.f32 %v1201, %v1920
        %v2162 = vadd.f32 %v1202, %v1883
        %v2163 = vadd.f32 %v1203, %v1921
        %v2164 = vadd.f32 %v1204, %v1922
        %v2165 = vadd.f32 %v1205, %v1923
        %v2166 = vadd.f32 %v1206, %v1924
        %v2167 = vadd.f32 %v1207, %v1925
        %v2168 = vadd.f32 %v1208, %v1926
        %v2169 = vadd.f32 %v1209, %v1927
        %v2170 = vadd.f32 %v1210, %v1884
        %v2171 = vadd.f32 %v1211, %v1928
        %v2172 = vadd.f32 %v1212, %v1929
        %v2173 = vadd.f32 %v1213, %v1930
        %v2174 = vadd.f32 %v1214, %v1931
        %v2175 = vadd.f32 %v1215, %v1932
        %v2176 = vadd.f32 %v1216, %v1933
        %v2177 = vadd.f32 %v1217, %v1934
        %v2178 = vadd.f32 %v1218, %v1885
        %v2179 = vadd.f32 %v1219, %v1935
        %v2180 = vadd.f32 %v1220, %v1936
        %v2181 = vadd.f32 %v1221, %v1937
        %v2182 = vadd.f32 %v1222, %v1938
        %v2183 = vadd.f32 %v1223, %v1939
        %v2184 = vadd.f32 %v1224, %v1940
        %v2185 = vadd.f32 %v1225, %v1941
        %v2186 = vadd.f32 %v1226, %v1886
        %v2187 = vadd.f32 %v1227, %v1942
        %v2188 = vadd.f32 %v1228, %v1943
        %v2189 = vadd.f32 %v1229, %v1944
        %v2190 = vadd.f32 %v1230, %v1945
        %v2191 = vadd.f32 %v1231, %v1946
        %v2192 = vadd.f32 %v1232, %v1947
        %v2193 = vadd.f32 %v1233, %v1948
        %v2194 = vadd.f32 %v1234, %v1887
        %v2195 = vadd.f32 %v1235, %v1949
        %v2196 = vadd.f32 %v1236, %v1950
        %v2197 = vadd.f32 %v1237, %v1951
        %v2198 = vadd.f32 %v1238, %v1952
        %v2199 = vadd.f32 %v1239, %v1953
        %v2200 = vadd.f32 %v1240, %v1954
        %v2201 = vadd.f32 %v1241, %v1955
        %v2202 = vadd.f32 %v1242, %v1888
        %v2203 = vadd.f32 %v1243, %v1956
        %v2204 = vadd.f32 %v1244, %v1957
        %v2205 = vadd.f32 %v1245, %v1958
        %v2206 = vadd.f32 %v1246, %v1959
        %v2207 = vadd.f32 %v1247, %v1960
        %v2208 = vadd.f32 %v1248, %v1961
        %v2209 = vadd.f32 %v1249, %v1962
        %v2210 = vadd.f32 %v1250, %v1889
        %v2211 = vadd.f32 %v1251, %v1963
        %v2212 = vadd.f32 %v1252, %v1964
        %v2213 = vadd.f32 %v1253, %v1965
        %v2214 = vadd.f32 %v1254, %v1966
        %v2215 = vadd.f32 %v1255, %v1967
        %v2216 = vadd.f32 %v1256, %v1968
        %v2217 = vadd.f32 %v1257, %v1969
        %v2218 = vadd.f32 %v1258, %v1890
        %v2219 = vadd.f32 %v1259, %v1970
        %v2220 = vadd.f32 %v1260, %v1971
        %v2221 = vadd.f32 %v1261, %v1972
        %v2222 = vadd.f32 %v1262, %v1973
        %v2223 = vadd.f32 %v1263, %v1974
        %v2224 = vadd.f32 %v1264, %v1975
        %v2225 = vadd.f32 %v1265, %v1976
        %v2226 = vadd.f32 %v1266, %v1891
        %v2227 = vadd.f32 %v1267, %v1977
        %v2228 = vadd.f32 %v1268, %v1978
        %v2229 = vadd.f32 %v1269, %v1979
        %v2230 = vadd.f32 %v1270, %v1980
        %v2231 = vadd.f32 %v1271, %v1981
        %v2232 = vadd.f32 %v1272, %v1982
        %v2233 = vadd.f32 %v1273, %v1983
        %v2234 = vadd.f32 %v1274, %v1892
        %v2235 = vadd.f32 %v1275, %v1984
        %v2236 = vadd.f32 %v1276, %v1985
        %v2237 = vadd.f32 %v1277, %v1986
        %v2238 = vadd.f32 %v1278, %v1987
        %v2239 = vadd.f32 %v1279, %v1988
        %v2240 = vadd.f32 %v1280, %v1989
        %v2241 = vadd.f32 %v1281, %v1990
        %v2242 = vadd.f32 %v1282, %v1893
        %v2243 = vadd.f32 %v1283, %v1991
        %v2244 = vadd.f32 %v1284, %v1992
        %v2245 = vadd.f32 %v1285, %v1993
        %v2246 = vadd.f32 %v1286, %v1994
        %v2247 = vadd.f32 %v1287, %v1995
        %v2248 = vadd.f32 %v1288, %v1996
        %v2249 = vadd.f32 %v1289, %v1997
        %v2250 = vadd.f32 %v1290, %v1894
        %v2251 = vadd.f32 %v1291, %v1998
        %v2252 = vadd.f32 %v1292, %v1999
        %v2253 = vadd.f32 %v1293, %v2000
        %v2254 = vadd.f32 %v1294, %v2001
        %v2255 = vadd.f32 %v1295, %v2002
        %v2256 = vadd.f32 %v1296, %v2003
        %v2257 = vadd.f32 %v1297, %v2004
        %v2258 = vadd.f32 %v1298, %v1895
        %v2259 = vadd.f32 %v1299, %v2005
        %v2260 = vadd.f32 %v1300, %v2006
        %v2261 = vadd.f32 %v1301, %v2007
        %v2262 = vadd.f32 %v1302, %v2008
        %v2263 = vadd.f32 %v1303, %v2009
        %v2264 = vadd.f32 %v1304, %v2010
        %v2265 = vadd.f32 %v1305, %v2011
        %v2266 = vadd.f32 %v1306, %v1896
        %v2267 = vadd.f32 %v1307, %v2012
        %v2268 = vadd.f32 %v1308, %v2013
        %v2269 = vadd.f32 %v1309, %v2014
        %v2270 = vadd.f32 %v1310, %v2015
        %v2271 = vadd.f32 %v1311, %v2016
        %v2272 = vadd.f32 %v1312, %v2017
        %v2273 = vadd.f32 %v1313, %v2018
        %v2274 = vadd.f32 %v1314, %v1897
        %v2275 = vadd.f32 %v1315, %v2019
        %v2276 = vadd.f32 %v1316, %v2020
        %v2277 = vadd.f32 %v1317, %v2021
        %v2278 = vadd.f32 %v1318, %v2022
        %v2279 = vadd.f32 %v1319, %v2023
        %v2280 = vadd.f32 %v1320, %v2024
        %v2281 = vadd.f32 %v1321, %v2025
        %v2282 = vld [vmem:[%s192 + $0x2] sm:$0x1]
        %v2283 = vld [vmem:[%s192 + $0x12] sm:$0x1]
        %v2284 = vld [vmem:[%s192 + $0x22] sm:$0x1]
        %v2285 = vld [vmem:[%s192 + $0x32] sm:$0x1]
        %v2286 = vld [vmem:[%s192 + $0x42] sm:$0x1]
        %v2287 = vld [vmem:[%s192 + $0x52] sm:$0x1]
        %v2288 = vld [vmem:[%s192 + $0x62] sm:$0x1]
        %v2289 = vld [vmem:[%s192 + $0x72] sm:$0x1]
        %v2290 = vld [vmem:[%s192 + $0x82] sm:$0x1]
        %v2291 = vld [vmem:[%s192 + $0x92] sm:$0x1]
        %v2292 = vld [vmem:[%s192 + $0xa2] sm:$0x1]
        %v2293 = vld [vmem:[%s192 + $0xb2] sm:$0x1]
        %v2294 = vld [vmem:[%s192 + $0xc2] sm:$0x1]
        %v2295 = vld [vmem:[%s192 + $0xd2] sm:$0x1]
        %v2296 = vld [vmem:[%s192 + $0xe2] sm:$0x1]
        %v2297 = vld [vmem:[%s192 + $0xf2] sm:$0x1]
        %v2298 = vld [vmem:[%s192 + $0x102] sm:$0x1]
        %v2299 = vld [vmem:[%s192 + $0x112] sm:$0x1]
        %v2300 = vld [vmem:[%s192 + $0x122] sm:$0x1]
        %v2301 = vld [vmem:[%s192 + $0x132] sm:$0x1]
        %v2302 = vld [vmem:[%s192 + $0x142] sm:$0x1]
        %v2303 = vld [vmem:[%s192 + $0x152] sm:$0x1]
        %v2304 = vld [vmem:[%s192 + $0x162] sm:$0x1]
        %v2305 = vld [vmem:[%s192 + $0x172] sm:$0x1]
        %v2306 = vld [vmem:[%s192 + $0x182] sm:$0x1]
        %v2307 = vld [vmem:[%s192 + $0x192] sm:$0x1]
        %v2308 = vld [vmem:[%s192 + $0x1a2] sm:$0x1]
        %v2309 = vld [vmem:[%s192 + $0x1b2] sm:$0x1]
        %v2310 = vld [vmem:[%s192 + $0x1c2] sm:$0x1]
        %v2311 = vld [vmem:[%s192 + $0x1d2] sm:$0x1]
        %v2312 = vld [vmem:[%s192 + $0x1e2] sm:$0x1]
        %v2313 = vld [vmem:[%s192 + $0x1f2] sm:$0x1]
        %v2314 = vld [vmem:[%s192 + $0x202] sm:$0x1]
        %v2315 = vld [vmem:[%s192 + $0x212] sm:$0x1]
        %v2316 = vld [vmem:[%s192 + $0x222] sm:$0x1]
        %v2317 = vld [vmem:[%s192 + $0x232] sm:$0x1]
        %v2318 = vld [vmem:[%s192 + $0x242] sm:$0x1]
        %v2319 = vld [vmem:[%s192 + $0x252] sm:$0x1]
        %v2320 = vld [vmem:[%s192 + $0x262] sm:$0x1]
        %v2321 = vld [vmem:[%s192 + $0x272] sm:$0x1]
        %v2322 = vld [vmem:[%s192 + $0x282] sm:$0x1]
        %v2323 = vld [vmem:[%s192 + $0x292] sm:$0x1]
        %v2324 = vld [vmem:[%s192 + $0x2a2] sm:$0x1]
        %v2325 = vld [vmem:[%s192 + $0x2b2] sm:$0x1]
        %v2326 = vld [vmem:[%s192 + $0x2c2] sm:$0x1]
        %v2327 = vld [vmem:[%s192 + $0x2d2] sm:$0x1]
        %v2328 = vld [vmem:[%s192 + $0x2e2] sm:$0x1]
        %v2329 = vld [vmem:[%s192 + $0x2f2] sm:$0x1]
        %v2330 = vld [vmem:[%s192 + $0x302] sm:$0x1]
        %v2331 = vld [vmem:[%s192 + $0x312] sm:$0x1]
        %v2332 = vld [vmem:[%s192 + $0x322] sm:$0x1]
        %v2333 = vld [vmem:[%s192 + $0x332] sm:$0x1]
        %v2334 = vld [vmem:[%s192 + $0x342] sm:$0x1]
        %v2335 = vld [vmem:[%s192 + $0x352] sm:$0x1]
        %v2336 = vld [vmem:[%s192 + $0x362] sm:$0x1]
        %v2337 = vld [vmem:[%s192 + $0x372] sm:$0x1]
        %v2338 = vld [vmem:[%s192 + $0x382] sm:$0x1]
        %v2339 = vld [vmem:[%s192 + $0x392] sm:$0x1]
        %v2340 = vld [vmem:[%s192 + $0x3a2] sm:$0x1]
        %v2341 = vld [vmem:[%s192 + $0x3b2] sm:$0x1]
        %v2342 = vld [vmem:[%s192 + $0x3c2] sm:$0x1]
        %v2343 = vld [vmem:[%s192 + $0x3d2] sm:$0x1]
        %v2344 = vld [vmem:[%s192 + $0x3e2] sm:$0x1]
        %v2345 = vld [vmem:[%s192 + $0x3f2] sm:$0x1]
        %v2346 = vld [vmem:[%s192 + $0x402] sm:$0x1]
        %v2347 = vld [vmem:[%s192 + $0x412] sm:$0x1]
        %v2348 = vld [vmem:[%s192 + $0x422] sm:$0x1]
        %v2349 = vld [vmem:[%s192 + $0x432] sm:$0x1]
        %v2350 = vld [vmem:[%s192 + $0x442] sm:$0x1]
        %v2351 = vld [vmem:[%s192 + $0x452] sm:$0x1]
        %v2352 = vld [vmem:[%s192 + $0x462] sm:$0x1]
        %v2353 = vld [vmem:[%s192 + $0x472] sm:$0x1]
        %v2354 = vld [vmem:[%s192 + $0x482] sm:$0x1]
        %v2355 = vld [vmem:[%s192 + $0x492] sm:$0x1]
        %v2356 = vld [vmem:[%s192 + $0x4a2] sm:$0x1]
        %v2357 = vld [vmem:[%s192 + $0x4b2] sm:$0x1]
        %v2358 = vld [vmem:[%s192 + $0x4c2] sm:$0x1]
        %v2359 = vld [vmem:[%s192 + $0x4d2] sm:$0x1]
        %v2360 = vld [vmem:[%s192 + $0x4e2] sm:$0x1]
        %v2361 = vld [vmem:[%s192 + $0x4f2] sm:$0x1]
        %v2362 = vld [vmem:[%s192 + $0x502] sm:$0x1]
        %v2363 = vld [vmem:[%s192 + $0x512] sm:$0x1]
        %v2364 = vld [vmem:[%s192 + $0x522] sm:$0x1]
        %v2365 = vld [vmem:[%s192 + $0x532] sm:$0x1]
        %v2366 = vld [vmem:[%s192 + $0x542] sm:$0x1]
        %v2367 = vld [vmem:[%s192 + $0x552] sm:$0x1]
        %v2368 = vld [vmem:[%s192 + $0x562] sm:$0x1]
        %v2369 = vld [vmem:[%s192 + $0x572] sm:$0x1]
        %v2370 = vld [vmem:[%s192 + $0x582] sm:$0x1]
        %v2371 = vld [vmem:[%s192 + $0x592] sm:$0x1]
        %v2372 = vld [vmem:[%s192 + $0x5a2] sm:$0x1]
        %v2373 = vld [vmem:[%s192 + $0x5b2] sm:$0x1]
        %v2374 = vld [vmem:[%s192 + $0x5c2] sm:$0x1]
        %v2375 = vld [vmem:[%s192 + $0x5d2] sm:$0x1]
        %v2376 = vld [vmem:[%s192 + $0x5e2] sm:$0x1]
        %v2377 = vld [vmem:[%s192 + $0x5f2] sm:$0x1]
        %v2378 = vld [vmem:[%s192 + $0x602] sm:$0x1]
        %v2379 = vld [vmem:[%s192 + $0x612] sm:$0x1]
        %v2380 = vld [vmem:[%s192 + $0x622] sm:$0x1]
        %v2381 = vld [vmem:[%s192 + $0x632] sm:$0x1]
        %v2382 = vld [vmem:[%s192 + $0x642] sm:$0x1]
        %v2383 = vld [vmem:[%s192 + $0x652] sm:$0x1]
        %v2384 = vld [vmem:[%s192 + $0x662] sm:$0x1]
        %v2385 = vld [vmem:[%s192 + $0x672] sm:$0x1]
        %v2386 = vld [vmem:[%s192 + $0x682] sm:$0x1]
        %v2387 = vld [vmem:[%s192 + $0x692] sm:$0x1]
        %v2388 = vld [vmem:[%s192 + $0x6a2] sm:$0x1]
        %v2389 = vld [vmem:[%s192 + $0x6b2] sm:$0x1]
        %v2390 = vld [vmem:[%s192 + $0x6c2] sm:$0x1]
        %v2391 = vld [vmem:[%s192 + $0x6d2] sm:$0x1]
        %v2392 = vld [vmem:[%s192 + $0x6e2] sm:$0x1]
        %v2393 = vld [vmem:[%s192 + $0x6f2] sm:$0x1]
        %v2394 = vld [vmem:[%s192 + $0x702] sm:$0x1]
        %v2395 = vld [vmem:[%s192 + $0x712] sm:$0x1]
        %v2396 = vld [vmem:[%s192 + $0x722] sm:$0x1]
        %v2397 = vld [vmem:[%s192 + $0x732] sm:$0x1]
        %v2398 = vld [vmem:[%s192 + $0x742] sm:$0x1]
        %v2399 = vld [vmem:[%s192 + $0x752] sm:$0x1]
        %v2400 = vld [vmem:[%s192 + $0x762] sm:$0x1]
        %v2401 = vld [vmem:[%s192 + $0x772] sm:$0x1]
        %v2402 = vld [vmem:[%s192 + $0x782] sm:$0x1]
        %v2403 = vld [vmem:[%s192 + $0x792] sm:$0x1]
        %v2404 = vld [vmem:[%s192 + $0x7a2] sm:$0x1]
        %v2405 = vld [vmem:[%s192 + $0x7b2] sm:$0x1]
        %v2406 = vld [vmem:[%s192 + $0x7c2] sm:$0x1]
        %v2407 = vld [vmem:[%s192 + $0x7d2] sm:$0x1]
        %v2408 = vld [vmem:[%s192 + $0x7e2] sm:$0x1]
        %v2409 = vld [vmem:[%s192 + $0x7f2] sm:$0x1]
        %2410 = vset.pattern.permute.xlu0 2
        %2411 = vperm.xlu0 %2410, %v323
        %v2412 = vpop.permute.xlu0 %2411
        %2414 = vset.pattern.permute.xlu0 2
        %2415 = vperm.xlu0 %2414, %v324
        %v2416 = vpop.permute.xlu0 %2415
        %2418 = vset.pattern.permute.xlu0 2
        %2419 = vperm.xlu0 %2418, %v325
        %v2420 = vpop.permute.xlu0 %2419
        %2422 = vset.pattern.permute.xlu0 2
        %2423 = vperm.xlu0 %2422, %v326
        %v2424 = vpop.permute.xlu0 %2423
        %2426 = vset.pattern.permute.xlu0 2
        %2427 = vperm.xlu0 %2426, %v327
        %v2428 = vpop.permute.xlu0 %2427
        %2430 = vset.pattern.permute.xlu0 2
        %2431 = vperm.xlu0 %2430, %v328
        %v2432 = vpop.permute.xlu0 %2431
        %2434 = vset.pattern.permute.xlu0 2
        %2435 = vperm.xlu0 %2434, %v329
        %v2436 = vpop.permute.xlu0 %2435
        %2438 = vset.pattern.permute.xlu0 2
        %2439 = vperm.xlu0 %2438, %v330
        %v2440 = vpop.permute.xlu0 %2439
        %2442 = vset.pattern.permute.xlu0 2
        %2443 = vperm.xlu0 %2442, %v331
        %v2444 = vpop.permute.xlu0 %2443
        %2446 = vset.pattern.permute.xlu0 2
        %2447 = vperm.xlu0 %2446, %v332
        %v2448 = vpop.permute.xlu0 %2447
        %2450 = vset.pattern.permute.xlu0 2
        %2451 = vperm.xlu0 %2450, %v333
        %v2452 = vpop.permute.xlu0 %2451
        %2454 = vset.pattern.permute.xlu0 2
        %2455 = vperm.xlu0 %2454, %v334
        %v2456 = vpop.permute.xlu0 %2455
        %2458 = vset.pattern.permute.xlu0 2
        %2459 = vperm.xlu0 %2458, %v335
        %v2460 = vpop.permute.xlu0 %2459
        %2462 = vset.pattern.permute.xlu0 2
        %2463 = vperm.xlu0 %2462, %v336
        %v2464 = vpop.permute.xlu0 %2463
        %2466 = vset.pattern.permute.xlu0 2
        %2467 = vperm.xlu0 %2466, %v337
        %v2468 = vpop.permute.xlu0 %2467
        %2470 = vset.pattern.permute.xlu0 2
        %2471 = vperm.xlu0 %2470, %v338
        %v2472 = vpop.permute.xlu0 %2471
        %v2602 = vrot.slane %v2283, 7
        %v2603 = vsel %vm676, %v2602, %v2282
        %v2604 = vrot.slane %v2284, 6
        %v2605 = vsel %vm679, %v2604, %v2603
        %v2606 = vrot.slane %v2285, 5
        %v2607 = vsel %vm682, %v2606, %v2605
        %v2608 = vrot.slane %v2286, 4
        %v2609 = vsel %vm685, %v2608, %v2607
        %v2610 = vrot.slane %v2287, 3
        %v2611 = vsel %vm688, %v2610, %v2609
        %v2612 = vrot.slane %v2288, 2
        %v2613 = vsel %vm691, %v2612, %v2611
        %v2614 = vrot.slane %v2289, 1
        %v2615 = vsel %vm694, %v2614, %v2613
        %v2616 = vrot.slane %v2291, 7
        %v2617 = vsel %vm676, %v2616, %v2290
        %v2618 = vrot.slane %v2292, 6
        %v2619 = vsel %vm679, %v2618, %v2617
        %v2620 = vrot.slane %v2293, 5
        %v2621 = vsel %vm682, %v2620, %v2619
        %v2622 = vrot.slane %v2294, 4
        %v2623 = vsel %vm685, %v2622, %v2621
        %v2624 = vrot.slane %v2295, 3
        %v2625 = vsel %vm688, %v2624, %v2623
        %v2626 = vrot.slane %v2296, 2
        %v2627 = vsel %vm691, %v2626, %v2625
        %v2628 = vrot.slane %v2297, 1
        %v2629 = vsel %vm694, %v2628, %v2627
        %v2630 = vrot.slane %v2299, 7
        %v2631 = vsel %vm676, %v2630, %v2298
        %v2632 = vrot.slane %v2300, 6
        %v2633 = vsel %vm679, %v2632, %v2631
        %v2634 = vrot.slane %v2301, 5
        %v2635 = vsel %vm682, %v2634, %v2633
        %v2636 = vrot.slane %v2302, 4
        %v2637 = vsel %vm685, %v2636, %v2635
        %v2638 = vrot.slane %v2303, 3
        %v2639 = vsel %vm688, %v2638, %v2637
        %v2640 = vrot.slane %v2304, 2
        %v2641 = vsel %vm691, %v2640, %v2639
        %v2642 = vrot.slane %v2305, 1
        %v2643 = vsel %vm694, %v2642, %v2641
        %v2644 = vrot.slane %v2307, 7
        %v2645 = vsel %vm676, %v2644, %v2306
        %v2646 = vrot.slane %v2308, 6
        %v2647 = vsel %vm679, %v2646, %v2645
        %v2648 = vrot.slane %v2309, 5
        %v2649 = vsel %vm682, %v2648, %v2647
        %v2650 = vrot.slane %v2310, 4
        %v2651 = vsel %vm685, %v2650, %v2649
        %v2652 = vrot.slane %v2311, 3
        %v2653 = vsel %vm688, %v2652, %v2651
        %v2654 = vrot.slane %v2312, 2
        %v2655 = vsel %vm691, %v2654, %v2653
        %v2656 = vrot.slane %v2313, 1
        %v2657 = vsel %vm694, %v2656, %v2655
        %v2658 = vrot.slane %v2315, 7
        %v2659 = vsel %vm676, %v2658, %v2314
        %v2660 = vrot.slane %v2316, 6
        %v2661 = vsel %vm679, %v2660, %v2659
        %v2662 = vrot.slane %v2317, 5
        %v2663 = vsel %vm682, %v2662, %v2661
        %v2664 = vrot.slane %v2318, 4
        %v2665 = vsel %vm685, %v2664, %v2663
        %v2666 = vrot.slane %v2319, 3
        %v2667 = vsel %vm688, %v2666, %v2665
        %v2668 = vrot.slane %v2320, 2
        %v2669 = vsel %vm691, %v2668, %v2667
        %v2670 = vrot.slane %v2321, 1
        %v2671 = vsel %vm694, %v2670, %v2669
        %v2672 = vrot.slane %v2323, 7
        %v2673 = vsel %vm676, %v2672, %v2322
        %v2674 = vrot.slane %v2324, 6
        %v2675 = vsel %vm679, %v2674, %v2673
        %v2676 = vrot.slane %v2325, 5
        %v2677 = vsel %vm682, %v2676, %v2675
        %v2678 = vrot.slane %v2326, 4
        %v2679 = vsel %vm685, %v2678, %v2677
        %v2680 = vrot.slane %v2327, 3
        %v2681 = vsel %vm688, %v2680, %v2679
        %v2682 = vrot.slane %v2328, 2
        %v2683 = vsel %vm691, %v2682, %v2681
        %v2684 = vrot.slane %v2329, 1
        %v2685 = vsel %vm694, %v2684, %v2683
        %v2686 = vrot.slane %v2331, 7
        %v2687 = vsel %vm676, %v2686, %v2330
        %v2688 = vrot.slane %v2332, 6
        %v2689 = vsel %vm679, %v2688, %v2687
        %v2690 = vrot.slane %v2333, 5
        %v2691 = vsel %vm682, %v2690, %v2689
        %v2692 = vrot.slane %v2334, 4
        %v2693 = vsel %vm685, %v2692, %v2691
        %v2694 = vrot.slane %v2335, 3
        %v2695 = vsel %vm688, %v2694, %v2693
        %v2696 = vrot.slane %v2336, 2
        %v2697 = vsel %vm691, %v2696, %v2695
        %v2698 = vrot.slane %v2337, 1
        %v2699 = vsel %vm694, %v2698, %v2697
        %v2700 = vrot.slane %v2339, 7
        %v2701 = vsel %vm676, %v2700, %v2338
        %v2702 = vrot.slane %v2340, 6
        %v2703 = vsel %vm679, %v2702, %v2701
        %v2704 = vrot.slane %v2341, 5
        %v2705 = vsel %vm682, %v2704, %v2703
        %v2706 = vrot.slane %v2342, 4
        %v2707 = vsel %vm685, %v2706, %v2705
        %v2708 = vrot.slane %v2343, 3
        %v2709 = vsel %vm688, %v2708, %v2707
        %v2710 = vrot.slane %v2344, 2
        %v2711 = vsel %vm691, %v2710, %v2709
        %v2712 = vrot.slane %v2345, 1
        %v2713 = vsel %vm694, %v2712, %v2711
        %v2714 = vrot.slane %v2347, 7
        %v2715 = vsel %vm676, %v2714, %v2346
        %v2716 = vrot.slane %v2348, 6
        %v2717 = vsel %vm679, %v2716, %v2715
        %v2718 = vrot.slane %v2349, 5
        %v2719 = vsel %vm682, %v2718, %v2717
        %v2720 = vrot.slane %v2350, 4
        %v2721 = vsel %vm685, %v2720, %v2719
        %v2722 = vrot.slane %v2351, 3
        %v2723 = vsel %vm688, %v2722, %v2721
        %v2724 = vrot.slane %v2352, 2
        %v2725 = vsel %vm691, %v2724, %v2723
        %v2726 = vrot.slane %v2353, 1
        %v2727 = vsel %vm694, %v2726, %v2725
        %v2728 = vrot.slane %v2355, 7
        %v2729 = vsel %vm676, %v2728, %v2354
        %v2730 = vrot.slane %v2356, 6
        %v2731 = vsel %vm679, %v2730, %v2729
        %v2732 = vrot.slane %v2357, 5
        %v2733 = vsel %vm682, %v2732, %v2731
        %v2734 = vrot.slane %v2358, 4
        %v2735 = vsel %vm685, %v2734, %v2733
        %v2736 = vrot.slane %v2359, 3
        %v2737 = vsel %vm688, %v2736, %v2735
        %v2738 = vrot.slane %v2360, 2
        %v2739 = vsel %vm691, %v2738, %v2737
        %v2740 = vrot.slane %v2361, 1
        %v2741 = vsel %vm694, %v2740, %v2739
        %v2742 = vrot.slane %v2363, 7
        %v2743 = vsel %vm676, %v2742, %v2362
        %v2744 = vrot.slane %v2364, 6
        %v2745 = vsel %vm679, %v2744, %v2743
        %v2746 = vrot.slane %v2365, 5
        %v2747 = vsel %vm682, %v2746, %v2745
        %v2748 = vrot.slane %v2366, 4
        %v2749 = vsel %vm685, %v2748, %v2747
        %v2750 = vrot.slane %v2367, 3
        %v2751 = vsel %vm688, %v2750, %v2749
        %v2752 = vrot.slane %v2368, 2
        %v2753 = vsel %vm691, %v2752, %v2751
        %v2754 = vrot.slane %v2369, 1
        %v2755 = vsel %vm694, %v2754, %v2753
        %v2756 = vrot.slane %v2371, 7
        %v2757 = vsel %vm676, %v2756, %v2370
        %v2758 = vrot.slane %v2372, 6
        %v2759 = vsel %vm679, %v2758, %v2757
        %v2760 = vrot.slane %v2373, 5
        %v2761 = vsel %vm682, %v2760, %v2759
        %v2762 = vrot.slane %v2374, 4
        %v2763 = vsel %vm685, %v2762, %v2761
        %v2764 = vrot.slane %v2375, 3
        %v2765 = vsel %vm688, %v2764, %v2763
        %v2766 = vrot.slane %v2376, 2
        %v2767 = vsel %vm691, %v2766, %v2765
        %v2768 = vrot.slane %v2377, 1
        %v2769 = vsel %vm694, %v2768, %v2767
        %v2770 = vrot.slane %v2379, 7
        %v2771 = vsel %vm676, %v2770, %v2378
        %v2772 = vrot.slane %v2380, 6
        %v2773 = vsel %vm679, %v2772, %v2771
        %v2774 = vrot.slane %v2381, 5
        %v2775 = vsel %vm682, %v2774, %v2773
        %v2776 = vrot.slane %v2382, 4
        %v2777 = vsel %vm685, %v2776, %v2775
        %v2778 = vrot.slane %v2383, 3
        %v2779 = vsel %vm688, %v2778, %v2777
        %v2780 = vrot.slane %v2384, 2
        %v2781 = vsel %vm691, %v2780, %v2779
        %v2782 = vrot.slane %v2385, 1
        %v2783 = vsel %vm694, %v2782, %v2781
        %v2784 = vrot.slane %v2387, 7
        %v2785 = vsel %vm676, %v2784, %v2386
        %v2786 = vrot.slane %v2388, 6
        %v2787 = vsel %vm679, %v2786, %v2785
        %v2788 = vrot.slane %v2389, 5
        %v2789 = vsel %vm682, %v2788, %v2787
        %v2790 = vrot.slane %v2390, 4
        %v2791 = vsel %vm685, %v2790, %v2789
        %v2792 = vrot.slane %v2391, 3
        %v2793 = vsel %vm688, %v2792, %v2791
        %v2794 = vrot.slane %v2392, 2
        %v2795 = vsel %vm691, %v2794, %v2793
        %v2796 = vrot.slane %v2393, 1
        %v2797 = vsel %vm694, %v2796, %v2795
        %v2798 = vrot.slane %v2395, 7
        %v2799 = vsel %vm676, %v2798, %v2394
        %v2800 = vrot.slane %v2396, 6
        %v2801 = vsel %vm679, %v2800, %v2799
        %v2802 = vrot.slane %v2397, 5
        %v2803 = vsel %vm682, %v2802, %v2801
        %v2804 = vrot.slane %v2398, 4
        %v2805 = vsel %vm685, %v2804, %v2803
        %v2806 = vrot.slane %v2399, 3
        %v2807 = vsel %vm688, %v2806, %v2805
        %v2808 = vrot.slane %v2400, 2
        %v2809 = vsel %vm691, %v2808, %v2807
        %v2810 = vrot.slane %v2401, 1
        %v2811 = vsel %vm694, %v2810, %v2809
        %v2812 = vrot.slane %v2403, 7
        %v2813 = vsel %vm676, %v2812, %v2402
        %v2814 = vrot.slane %v2404, 6
        %v2815 = vsel %vm679, %v2814, %v2813
        %v2816 = vrot.slane %v2405, 5
        %v2817 = vsel %vm682, %v2816, %v2815
        %v2818 = vrot.slane %v2406, 4
        %v2819 = vsel %vm685, %v2818, %v2817
        %v2820 = vrot.slane %v2407, 3
        %v2821 = vsel %vm688, %v2820, %v2819
        %v2822 = vrot.slane %v2408, 2
        %v2823 = vsel %vm691, %v2822, %v2821
        %v2824 = vrot.slane %v2409, 1
        %v2825 = vsel %vm694, %v2824, %v2823
        %v2842 = vmul.f32 %v2412, %v2615
        %v2843 = vmul.f32 %v2416, %v2629
        %v2844 = vmul.f32 %v2420, %v2643
        %v2845 = vmul.f32 %v2424, %v2657
        %v2846 = vmul.f32 %v2428, %v2671
        %v2847 = vmul.f32 %v2432, %v2685
        %v2848 = vmul.f32 %v2436, %v2699
        %v2849 = vmul.f32 %v2440, %v2713
        %v2850 = vmul.f32 %v2444, %v2727
        %v2851 = vmul.f32 %v2448, %v2741
        %v2852 = vmul.f32 %v2452, %v2755
        %v2853 = vmul.f32 %v2456, %v2769
        %v2854 = vmul.f32 %v2460, %v2783
        %v2855 = vmul.f32 %v2464, %v2797
        %v2856 = vmul.f32 %v2468, %v2811
        %v2857 = vmul.f32 %v2472, %v2825
        %v2874 = vrot.slane %v2842, 1
        %v2875 = vrot.slane %v2842, 2
        %v2876 = vrot.slane %v2842, 3
        %v2877 = vrot.slane %v2842, 4
        %v2878 = vrot.slane %v2842, 5
        %v2879 = vrot.slane %v2842, 6
        %v2880 = vrot.slane %v2842, 7
        %v2881 = vrot.slane %v2843, 1
        %v2882 = vrot.slane %v2843, 2
        %v2883 = vrot.slane %v2843, 3
        %v2884 = vrot.slane %v2843, 4
        %v2885 = vrot.slane %v2843, 5
        %v2886 = vrot.slane %v2843, 6
        %v2887 = vrot.slane %v2843, 7
        %v2888 = vrot.slane %v2844, 1
        %v2889 = vrot.slane %v2844, 2
        %v2890 = vrot.slane %v2844, 3
        %v2891 = vrot.slane %v2844, 4
        %v2892 = vrot.slane %v2844, 5
        %v2893 = vrot.slane %v2844, 6
        %v2894 = vrot.slane %v2844, 7
        %v2895 = vrot.slane %v2845, 1
        %v2896 = vrot.slane %v2845, 2
        %v2897 = vrot.slane %v2845, 3
        %v2898 = vrot.slane %v2845, 4
        %v2899 = vrot.slane %v2845, 5
        %v2900 = vrot.slane %v2845, 6
        %v2901 = vrot.slane %v2845, 7
        %v2902 = vrot.slane %v2846, 1
        %v2903 = vrot.slane %v2846, 2
        %v2904 = vrot.slane %v2846, 3
        %v2905 = vrot.slane %v2846, 4
        %v2906 = vrot.slane %v2846, 5
        %v2907 = vrot.slane %v2846, 6
        %v2908 = vrot.slane %v2846, 7
        %v2909 = vrot.slane %v2847, 1
        %v2910 = vrot.slane %v2847, 2
        %v2911 = vrot.slane %v2847, 3
        %v2912 = vrot.slane %v2847, 4
        %v2913 = vrot.slane %v2847, 5
        %v2914 = vrot.slane %v2847, 6
        %v2915 = vrot.slane %v2847, 7
        %v2916 = vrot.slane %v2848, 1
        %v2917 = vrot.slane %v2848, 2
        %v2918 = vrot.slane %v2848, 3
        %v2919 = vrot.slane %v2848, 4
        %v2920 = vrot.slane %v2848, 5
        %v2921 = vrot.slane %v2848, 6
        %v2922 = vrot.slane %v2848, 7
        %v2923 = vrot.slane %v2849, 1
        %v2924 = vrot.slane %v2849, 2
        %v2925 = vrot.slane %v2849, 3
        %v2926 = vrot.slane %v2849, 4
        %v2927 = vrot.slane %v2849, 5
        %v2928 = vrot.slane %v2849, 6
        %v2929 = vrot.slane %v2849, 7
        %v2930 = vrot.slane %v2850, 1
        %v2931 = vrot.slane %v2850, 2
        %v2932 = vrot.slane %v2850, 3
        %v2933 = vrot.slane %v2850, 4
        %v2934 = vrot.slane %v2850, 5
        %v2935 = vrot.slane %v2850, 6
        %v2936 = vrot.slane %v2850, 7
        %v2937 = vrot.slane %v2851, 1
        %v2938 = vrot.slane %v2851, 2
        %v2939 = vrot.slane %v2851, 3
        %v2940 = vrot.slane %v2851, 4
        %v2941 = vrot.slane %v2851, 5
        %v2942 = vrot.slane %v2851, 6
        %v2943 = vrot.slane %v2851, 7
        %v2944 = vrot.slane %v2852, 1
        %v2945 = vrot.slane %v2852, 2
        %v2946 = vrot.slane %v2852, 3
        %v2947 = vrot.slane %v2852, 4
        %v2948 = vrot.slane %v2852, 5
        %v2949 = vrot.slane %v2852, 6
        %v2950 = vrot.slane %v2852, 7
        %v2951 = vrot.slane %v2853, 1
        %v2952 = vrot.slane %v2853, 2
        %v2953 = vrot.slane %v2853, 3
        %v2954 = vrot.slane %v2853, 4
        %v2955 = vrot.slane %v2853, 5
        %v2956 = vrot.slane %v2853, 6
        %v2957 = vrot.slane %v2853, 7
        %v2958 = vrot.slane %v2854, 1
        %v2959 = vrot.slane %v2854, 2
        %v2960 = vrot.slane %v2854, 3
        %v2961 = vrot.slane %v2854, 4
        %v2962 = vrot.slane %v2854, 5
        %v2963 = vrot.slane %v2854, 6
        %v2964 = vrot.slane %v2854, 7
        %v2965 = vrot.slane %v2855, 1
        %v2966 = vrot.slane %v2855, 2
        %v2967 = vrot.slane %v2855, 3
        %v2968 = vrot.slane %v2855, 4
        %v2969 = vrot.slane %v2855, 5
        %v2970 = vrot.slane %v2855, 6
        %v2971 = vrot.slane %v2855, 7
        %v2972 = vrot.slane %v2856, 1
        %v2973 = vrot.slane %v2856, 2
        %v2974 = vrot.slane %v2856, 3
        %v2975 = vrot.slane %v2856, 4
        %v2976 = vrot.slane %v2856, 5
        %v2977 = vrot.slane %v2856, 6
        %v2978 = vrot.slane %v2856, 7
        %v2979 = vrot.slane %v2857, 1
        %v2980 = vrot.slane %v2857, 2
        %v2981 = vrot.slane %v2857, 3
        %v2982 = vrot.slane %v2857, 4
        %v2983 = vrot.slane %v2857, 5
        %v2984 = vrot.slane %v2857, 6
        %v2985 = vrot.slane %v2857, 7
        %v3114 = vadd.f32 %v2154, %v2842
        %v3115 = vadd.f32 %v2155, %v2874
        %v3116 = vadd.f32 %v2156, %v2875
        %v3117 = vadd.f32 %v2157, %v2876
        %v3118 = vadd.f32 %v2158, %v2877
        %v3119 = vadd.f32 %v2159, %v2878
        %v3120 = vadd.f32 %v2160, %v2879
        %v3121 = vadd.f32 %v2161, %v2880
        %v3122 = vadd.f32 %v2162, %v2843
        %v3123 = vadd.f32 %v2163, %v2881
        %v3124 = vadd.f32 %v2164, %v2882
        %v3125 = vadd.f32 %v2165, %v2883
        %v3126 = vadd.f32 %v2166, %v2884
        %v3127 = vadd.f32 %v2167, %v2885
        %v3128 = vadd.f32 %v2168, %v2886
        %v3129 = vadd.f32 %v2169, %v2887
        %v3130 = vadd.f32 %v2170, %v2844
        %v3131 = vadd.f32 %v2171, %v2888
        %v3132 = vadd.f32 %v2172, %v2889
        %v3133 = vadd.f32 %v2173, %v2890
        %v3134 = vadd.f32 %v2174, %v2891
        %v3135 = vadd.f32 %v2175, %v2892
        %v3136 = vadd.f32 %v2176, %v2893
        %v3137 = vadd.f32 %v2177, %v2894
        %v3138 = vadd.f32 %v2178, %v2845
        %v3139 = vadd.f32 %v2179, %v2895
        %v3140 = vadd.f32 %v2180, %v2896
        %v3141 = vadd.f32 %v2181, %v2897
        %v3142 = vadd.f32 %v2182, %v2898
        %v3143 = vadd.f32 %v2183, %v2899
        %v3144 = vadd.f32 %v2184, %v2900
        %v3145 = vadd.f32 %v2185, %v2901
        %v3146 = vadd.f32 %v2186, %v2846
        %v3147 = vadd.f32 %v2187, %v2902
        %v3148 = vadd.f32 %v2188, %v2903
        %v3149 = vadd.f32 %v2189, %v2904
        %v3150 = vadd.f32 %v2190, %v2905
        %v3151 = vadd.f32 %v2191, %v2906
        %v3152 = vadd.f32 %v2192, %v2907
        %v3153 = vadd.f32 %v2193, %v2908
        %v3154 = vadd.f32 %v2194, %v2847
        %v3155 = vadd.f32 %v2195, %v2909
        %v3156 = vadd.f32 %v2196, %v2910
        %v3157 = vadd.f32 %v2197, %v2911
        %v3158 = vadd.f32 %v2198, %v2912
        %v3159 = vadd.f32 %v2199, %v2913
        %v3160 = vadd.f32 %v2200, %v2914
        %v3161 = vadd.f32 %v2201, %v2915
        %v3162 = vadd.f32 %v2202, %v2848
        %v3163 = vadd.f32 %v2203, %v2916
        %v3164 = vadd.f32 %v2204, %v2917
        %v3165 = vadd.f32 %v2205, %v2918
        %v3166 = vadd.f32 %v2206, %v2919
        %v3167 = vadd.f32 %v2207, %v2920
        %v3168 = vadd.f32 %v2208, %v2921
        %v3169 = vadd.f32 %v2209, %v2922
        %v3170 = vadd.f32 %v2210, %v2849
        %v3171 = vadd.f32 %v2211, %v2923
        %v3172 = vadd.f32 %v2212, %v2924
        %v3173 = vadd.f32 %v2213, %v2925
        %v3174 = vadd.f32 %v2214, %v2926
        %v3175 = vadd.f32 %v2215, %v2927
        %v3176 = vadd.f32 %v2216, %v2928
        %v3177 = vadd.f32 %v2217, %v2929
        %v3178 = vadd.f32 %v2218, %v2850
        %v3179 = vadd.f32 %v2219, %v2930
        %v3180 = vadd.f32 %v2220, %v2931
        %v3181 = vadd.f32 %v2221, %v2932
        %v3182 = vadd.f32 %v2222, %v2933
        %v3183 = vadd.f32 %v2223, %v2934
        %v3184 = vadd.f32 %v2224, %v2935
        %v3185 = vadd.f32 %v2225, %v2936
        %v3186 = vadd.f32 %v2226, %v2851
        %v3187 = vadd.f32 %v2227, %v2937
        %v3188 = vadd.f32 %v2228, %v2938
        %v3189 = vadd.f32 %v2229, %v2939
        %v3190 = vadd.f32 %v2230, %v2940
        %v3191 = vadd.f32 %v2231, %v2941
        %v3192 = vadd.f32 %v2232, %v2942
        %v3193 = vadd.f32 %v2233, %v2943
        %v3194 = vadd.f32 %v2234, %v2852
        %v3195 = vadd.f32 %v2235, %v2944
        %v3196 = vadd.f32 %v2236, %v2945
        %v3197 = vadd.f32 %v2237, %v2946
        %v3198 = vadd.f32 %v2238, %v2947
        %v3199 = vadd.f32 %v2239, %v2948
        %v3200 = vadd.f32 %v2240, %v2949
        %v3201 = vadd.f32 %v2241, %v2950
        %v3202 = vadd.f32 %v2242, %v2853
        %v3203 = vadd.f32 %v2243, %v2951
        %v3204 = vadd.f32 %v2244, %v2952
        %v3205 = vadd.f32 %v2245, %v2953
        %v3206 = vadd.f32 %v2246, %v2954
        %v3207 = vadd.f32 %v2247, %v2955
        %v3208 = vadd.f32 %v2248, %v2956
        %v3209 = vadd.f32 %v2249, %v2957
        %v3210 = vadd.f32 %v2250, %v2854
        %v3211 = vadd.f32 %v2251, %v2958
        %v3212 = vadd.f32 %v2252, %v2959
        %v3213 = vadd.f32 %v2253, %v2960
        %v3214 = vadd.f32 %v2254, %v2961
        %v3215 = vadd.f32 %v2255, %v2962
        %v3216 = vadd.f32 %v2256, %v2963
        %v3217 = vadd.f32 %v2257, %v2964
        %v3218 = vadd.f32 %v2258, %v2855
        %v3219 = vadd.f32 %v2259, %v2965
        %v3220 = vadd.f32 %v2260, %v2966
        %v3221 = vadd.f32 %v2261, %v2967
        %v3222 = vadd.f32 %v2262, %v2968
        %v3223 = vadd.f32 %v2263, %v2969
        %v3224 = vadd.f32 %v2264, %v2970
        %v3225 = vadd.f32 %v2265, %v2971
        %v3226 = vadd.f32 %v2266, %v2856
        %v3227 = vadd.f32 %v2267, %v2972
        %v3228 = vadd.f32 %v2268, %v2973
        %v3229 = vadd.f32 %v2269, %v2974
        %v3230 = vadd.f32 %v2270, %v2975
        %v3231 = vadd.f32 %v2271, %v2976
        %v3232 = vadd.f32 %v2272, %v2977
        %v3233 = vadd.f32 %v2273, %v2978
        %v3234 = vadd.f32 %v2274, %v2857
        %v3235 = vadd.f32 %v2275, %v2979
        %v3236 = vadd.f32 %v2276, %v2980
        %v3237 = vadd.f32 %v2277, %v2981
        %v3238 = vadd.f32 %v2278, %v2982
        %v3239 = vadd.f32 %v2279, %v2983
        %v3240 = vadd.f32 %v2280, %v2984
        %v3241 = vadd.f32 %v2281, %v2985
        %v3242 = vld [vmem:[%s192 + $0x3] sm:$0x1]
        %v3243 = vld [vmem:[%s192 + $0x13] sm:$0x1]
        %v3244 = vld [vmem:[%s192 + $0x23] sm:$0x1]
        %v3245 = vld [vmem:[%s192 + $0x33] sm:$0x1]
        %v3246 = vld [vmem:[%s192 + $0x43] sm:$0x1]
        %v3247 = vld [vmem:[%s192 + $0x53] sm:$0x1]
        %v3248 = vld [vmem:[%s192 + $0x63] sm:$0x1]
        %v3249 = vld [vmem:[%s192 + $0x73] sm:$0x1]
        %v3250 = vld [vmem:[%s192 + $0x83] sm:$0x1]
        %v3251 = vld [vmem:[%s192 + $0x93] sm:$0x1]
        %v3252 = vld [vmem:[%s192 + $0xa3] sm:$0x1]
        %v3253 = vld [vmem:[%s192 + $0xb3] sm:$0x1]
        %v3254 = vld [vmem:[%s192 + $0xc3] sm:$0x1]
        %v3255 = vld [vmem:[%s192 + $0xd3] sm:$0x1]
        %v3256 = vld [vmem:[%s192 + $0xe3] sm:$0x1]
        %v3257 = vld [vmem:[%s192 + $0xf3] sm:$0x1]
        %v3258 = vld [vmem:[%s192 + $0x103] sm:$0x1]
        %v3259 = vld [vmem:[%s192 + $0x113] sm:$0x1]
        %v3260 = vld [vmem:[%s192 + $0x123] sm:$0x1]
        %v3261 = vld [vmem:[%s192 + $0x133] sm:$0x1]
        %v3262 = vld [vmem:[%s192 + $0x143] sm:$0x1]
        %v3263 = vld [vmem:[%s192 + $0x153] sm:$0x1]
        %v3264 = vld [vmem:[%s192 + $0x163] sm:$0x1]
        %v3265 = vld [vmem:[%s192 + $0x173] sm:$0x1]
        %v3266 = vld [vmem:[%s192 + $0x183] sm:$0x1]
        %v3267 = vld [vmem:[%s192 + $0x193] sm:$0x1]
        %v3268 = vld [vmem:[%s192 + $0x1a3] sm:$0x1]
        %v3269 = vld [vmem:[%s192 + $0x1b3] sm:$0x1]
        %v3270 = vld [vmem:[%s192 + $0x1c3] sm:$0x1]
        %v3271 = vld [vmem:[%s192 + $0x1d3] sm:$0x1]
        %v3272 = vld [vmem:[%s192 + $0x1e3] sm:$0x1]
        %v3273 = vld [vmem:[%s192 + $0x1f3] sm:$0x1]
        %v3274 = vld [vmem:[%s192 + $0x203] sm:$0x1]
        %v3275 = vld [vmem:[%s192 + $0x213] sm:$0x1]
        %v3276 = vld [vmem:[%s192 + $0x223] sm:$0x1]
        %v3277 = vld [vmem:[%s192 + $0x233] sm:$0x1]
        %v3278 = vld [vmem:[%s192 + $0x243] sm:$0x1]
        %v3279 = vld [vmem:[%s192 + $0x253] sm:$0x1]
        %v3280 = vld [vmem:[%s192 + $0x263] sm:$0x1]
        %v3281 = vld [vmem:[%s192 + $0x273] sm:$0x1]
        %v3282 = vld [vmem:[%s192 + $0x283] sm:$0x1]
        %v3283 = vld [vmem:[%s192 + $0x293] sm:$0x1]
        %v3284 = vld [vmem:[%s192 + $0x2a3] sm:$0x1]
        %v3285 = vld [vmem:[%s192 + $0x2b3] sm:$0x1]
        %v3286 = vld [vmem:[%s192 + $0x2c3] sm:$0x1]
        %v3287 = vld [vmem:[%s192 + $0x2d3] sm:$0x1]
        %v3288 = vld [vmem:[%s192 + $0x2e3] sm:$0x1]
        %v3289 = vld [vmem:[%s192 + $0x2f3] sm:$0x1]
        %v3290 = vld [vmem:[%s192 + $0x303] sm:$0x1]
        %v3291 = vld [vmem:[%s192 + $0x313] sm:$0x1]
        %v3292 = vld [vmem:[%s192 + $0x323] sm:$0x1]
        %v3293 = vld [vmem:[%s192 + $0x333] sm:$0x1]
        %v3294 = vld [vmem:[%s192 + $0x343] sm:$0x1]
        %v3295 = vld [vmem:[%s192 + $0x353] sm:$0x1]
        %v3296 = vld [vmem:[%s192 + $0x363] sm:$0x1]
        %v3297 = vld [vmem:[%s192 + $0x373] sm:$0x1]
        %v3298 = vld [vmem:[%s192 + $0x383] sm:$0x1]
        %v3299 = vld [vmem:[%s192 + $0x393] sm:$0x1]
        %v3300 = vld [vmem:[%s192 + $0x3a3] sm:$0x1]
        %v3301 = vld [vmem:[%s192 + $0x3b3] sm:$0x1]
        %v3302 = vld [vmem:[%s192 + $0x3c3] sm:$0x1]
        %v3303 = vld [vmem:[%s192 + $0x3d3] sm:$0x1]
        %v3304 = vld [vmem:[%s192 + $0x3e3] sm:$0x1]
        %v3305 = vld [vmem:[%s192 + $0x3f3] sm:$0x1]
        %v3306 = vld [vmem:[%s192 + $0x403] sm:$0x1]
        %v3307 = vld [vmem:[%s192 + $0x413] sm:$0x1]
        %v3308 = vld [vmem:[%s192 + $0x423] sm:$0x1]
        %v3309 = vld [vmem:[%s192 + $0x433] sm:$0x1]
        %v3310 = vld [vmem:[%s192 + $0x443] sm:$0x1]
        %v3311 = vld [vmem:[%s192 + $0x453] sm:$0x1]
        %v3312 = vld [vmem:[%s192 + $0x463] sm:$0x1]
        %v3313 = vld [vmem:[%s192 + $0x473] sm:$0x1]
        %v3314 = vld [vmem:[%s192 + $0x483] sm:$0x1]
        %v3315 = vld [vmem:[%s192 + $0x493] sm:$0x1]
        %v3316 = vld [vmem:[%s192 + $0x4a3] sm:$0x1]
        %v3317 = vld [vmem:[%s192 + $0x4b3] sm:$0x1]
        %v3318 = vld [vmem:[%s192 + $0x4c3] sm:$0x1]
        %v3319 = vld [vmem:[%s192 + $0x4d3] sm:$0x1]
        %v3320 = vld [vmem:[%s192 + $0x4e3] sm:$0x1]
        %v3321 = vld [vmem:[%s192 + $0x4f3] sm:$0x1]
        %v3322 = vld [vmem:[%s192 + $0x503] sm:$0x1]
        %v3323 = vld [vmem:[%s192 + $0x513] sm:$0x1]
        %v3324 = vld [vmem:[%s192 + $0x523] sm:$0x1]
        %v3325 = vld [vmem:[%s192 + $0x533] sm:$0x1]
        %v3326 = vld [vmem:[%s192 + $0x543] sm:$0x1]
        %v3327 = vld [vmem:[%s192 + $0x553] sm:$0x1]
        %v3328 = vld [vmem:[%s192 + $0x563] sm:$0x1]
        %v3329 = vld [vmem:[%s192 + $0x573] sm:$0x1]
        %v3330 = vld [vmem:[%s192 + $0x583] sm:$0x1]
        %v3331 = vld [vmem:[%s192 + $0x593] sm:$0x1]
        %v3332 = vld [vmem:[%s192 + $0x5a3] sm:$0x1]
        %v3333 = vld [vmem:[%s192 + $0x5b3] sm:$0x1]
        %v3334 = vld [vmem:[%s192 + $0x5c3] sm:$0x1]
        %v3335 = vld [vmem:[%s192 + $0x5d3] sm:$0x1]
        %v3336 = vld [vmem:[%s192 + $0x5e3] sm:$0x1]
        %v3337 = vld [vmem:[%s192 + $0x5f3] sm:$0x1]
        %v3338 = vld [vmem:[%s192 + $0x603] sm:$0x1]
        %v3339 = vld [vmem:[%s192 + $0x613] sm:$0x1]
        %v3340 = vld [vmem:[%s192 + $0x623] sm:$0x1]
        %v3341 = vld [vmem:[%s192 + $0x633] sm:$0x1]
        %v3342 = vld [vmem:[%s192 + $0x643] sm:$0x1]
        %v3343 = vld [vmem:[%s192 + $0x653] sm:$0x1]
        %v3344 = vld [vmem:[%s192 + $0x663] sm:$0x1]
        %v3345 = vld [vmem:[%s192 + $0x673] sm:$0x1]
        %v3346 = vld [vmem:[%s192 + $0x683] sm:$0x1]
        %v3347 = vld [vmem:[%s192 + $0x693] sm:$0x1]
        %v3348 = vld [vmem:[%s192 + $0x6a3] sm:$0x1]
        %v3349 = vld [vmem:[%s192 + $0x6b3] sm:$0x1]
        %v3350 = vld [vmem:[%s192 + $0x6c3] sm:$0x1]
        %v3351 = vld [vmem:[%s192 + $0x6d3] sm:$0x1]
        %v3352 = vld [vmem:[%s192 + $0x6e3] sm:$0x1]
        %v3353 = vld [vmem:[%s192 + $0x6f3] sm:$0x1]
        %v3354 = vld [vmem:[%s192 + $0x703] sm:$0x1]
        %v3355 = vld [vmem:[%s192 + $0x713] sm:$0x1]
        %v3356 = vld [vmem:[%s192 + $0x723] sm:$0x1]
        %v3357 = vld [vmem:[%s192 + $0x733] sm:$0x1]
        %v3358 = vld [vmem:[%s192 + $0x743] sm:$0x1]
        %v3359 = vld [vmem:[%s192 + $0x753] sm:$0x1]
        %v3360 = vld [vmem:[%s192 + $0x763] sm:$0x1]
        %v3361 = vld [vmem:[%s192 + $0x773] sm:$0x1]
        %v3362 = vld [vmem:[%s192 + $0x783] sm:$0x1]
        %v3363 = vld [vmem:[%s192 + $0x793] sm:$0x1]
        %v3364 = vld [vmem:[%s192 + $0x7a3] sm:$0x1]
        %v3365 = vld [vmem:[%s192 + $0x7b3] sm:$0x1]
        %v3366 = vld [vmem:[%s192 + $0x7c3] sm:$0x1]
        %v3367 = vld [vmem:[%s192 + $0x7d3] sm:$0x1]
        %v3368 = vld [vmem:[%s192 + $0x7e3] sm:$0x1]
        %v3369 = vld [vmem:[%s192 + $0x7f3] sm:$0x1]
        %3370 = vset.pattern.permute.xlu0 3
        %3371 = vperm.xlu0 %3370, %v323
        %v3372 = vpop.permute.xlu0 %3371
        %3374 = vset.pattern.permute.xlu0 3
        %3375 = vperm.xlu0 %3374, %v324
        %v3376 = vpop.permute.xlu0 %3375
        %3378 = vset.pattern.permute.xlu0 3
        %3379 = vperm.xlu0 %3378, %v325
        %v3380 = vpop.permute.xlu0 %3379
        %3382 = vset.pattern.permute.xlu0 3
        %3383 = vperm.xlu0 %3382, %v326
        %v3384 = vpop.permute.xlu0 %3383
        %3386 = vset.pattern.permute.xlu0 3
        %3387 = vperm.xlu0 %3386, %v327
        %v3388 = vpop.permute.xlu0 %3387
        %3390 = vset.pattern.permute.xlu0 3
        %3391 = vperm.xlu0 %3390, %v328
        %v3392 = vpop.permute.xlu0 %3391
        %3394 = vset.pattern.permute.xlu0 3
        %3395 = vperm.xlu0 %3394, %v329
        %v3396 = vpop.permute.xlu0 %3395
        %3398 = vset.pattern.permute.xlu0 3
        %3399 = vperm.xlu0 %3398, %v330
        %v3400 = vpop.permute.xlu0 %3399
        %3402 = vset.pattern.permute.xlu0 3
        %3403 = vperm.xlu0 %3402, %v331
        %v3404 = vpop.permute.xlu0 %3403
        %3406 = vset.pattern.permute.xlu0 3
        %3407 = vperm.xlu0 %3406, %v332
        %v3408 = vpop.permute.xlu0 %3407
        %3410 = vset.pattern.permute.xlu0 3
        %3411 = vperm.xlu0 %3410, %v333
        %v3412 = vpop.permute.xlu0 %3411
        %3414 = vset.pattern.permute.xlu0 3
        %3415 = vperm.xlu0 %3414, %v334
        %v3416 = vpop.permute.xlu0 %3415
        %3418 = vset.pattern.permute.xlu0 3
        %3419 = vperm.xlu0 %3418, %v335
        %v3420 = vpop.permute.xlu0 %3419
        %3422 = vset.pattern.permute.xlu0 3
        %3423 = vperm.xlu0 %3422, %v336
        %v3424 = vpop.permute.xlu0 %3423
        %3426 = vset.pattern.permute.xlu0 3
        %3427 = vperm.xlu0 %3426, %v337
        %v3428 = vpop.permute.xlu0 %3427
        %3430 = vset.pattern.permute.xlu0 3
        %3431 = vperm.xlu0 %3430, %v338
        %v3432 = vpop.permute.xlu0 %3431
        %v3562 = vrot.slane %v3243, 7
        %v3563 = vsel %vm676, %v3562, %v3242
        %v3564 = vrot.slane %v3244, 6
        %v3565 = vsel %vm679, %v3564, %v3563
        %v3566 = vrot.slane %v3245, 5
        %v3567 = vsel %vm682, %v3566, %v3565
        %v3568 = vrot.slane %v3246, 4
        %v3569 = vsel %vm685, %v3568, %v3567
        %v3570 = vrot.slane %v3247, 3
        %v3571 = vsel %vm688, %v3570, %v3569
        %v3572 = vrot.slane %v3248, 2
        %v3573 = vsel %vm691, %v3572, %v3571
        %v3574 = vrot.slane %v3249, 1
        %v3575 = vsel %vm694, %v3574, %v3573
        %v3576 = vrot.slane %v3251, 7
        %v3577 = vsel %vm676, %v3576, %v3250
        %v3578 = vrot.slane %v3252, 6
        %v3579 = vsel %vm679, %v3578, %v3577
        %v3580 = vrot.slane %v3253, 5
        %v3581 = vsel %vm682, %v3580, %v3579
        %v3582 = vrot.slane %v3254, 4
        %v3583 = vsel %vm685, %v3582, %v3581
        %v3584 = vrot.slane %v3255, 3
        %v3585 = vsel %vm688, %v3584, %v3583
        %v3586 = vrot.slane %v3256, 2
        %v3587 = vsel %vm691, %v3586, %v3585
        %v3588 = vrot.slane %v3257, 1
        %v3589 = vsel %vm694, %v3588, %v3587
        %v3590 = vrot.slane %v3259, 7
        %v3591 = vsel %vm676, %v3590, %v3258
        %v3592 = vrot.slane %v3260, 6
        %v3593 = vsel %vm679, %v3592, %v3591
        %v3594 = vrot.slane %v3261, 5
        %v3595 = vsel %vm682, %v3594, %v3593
        %v3596 = vrot.slane %v3262, 4
        %v3597 = vsel %vm685, %v3596, %v3595
        %v3598 = vrot.slane %v3263, 3
        %v3599 = vsel %vm688, %v3598, %v3597
        %v3600 = vrot.slane %v3264, 2
        %v3601 = vsel %vm691, %v3600, %v3599
        %v3602 = vrot.slane %v3265, 1
        %v3603 = vsel %vm694, %v3602, %v3601
        %v3604 = vrot.slane %v3267, 7
        %v3605 = vsel %vm676, %v3604, %v3266
        %v3606 = vrot.slane %v3268, 6
        %v3607 = vsel %vm679, %v3606, %v3605
        %v3608 = vrot.slane %v3269, 5
        %v3609 = vsel %vm682, %v3608, %v3607
        %v3610 = vrot.slane %v3270, 4
        %v3611 = vsel %vm685, %v3610, %v3609
        %v3612 = vrot.slane %v3271, 3
        %v3613 = vsel %vm688, %v3612, %v3611
        %v3614 = vrot.slane %v3272, 2
        %v3615 = vsel %vm691, %v3614, %v3613
        %v3616 = vrot.slane %v3273, 1
        %v3617 = vsel %vm694, %v3616, %v3615
        %v3618 = vrot.slane %v3275, 7
        %v3619 = vsel %vm676, %v3618, %v3274
        %v3620 = vrot.slane %v3276, 6
        %v3621 = vsel %vm679, %v3620, %v3619
        %v3622 = vrot.slane %v3277, 5
        %v3623 = vsel %vm682, %v3622, %v3621
        %v3624 = vrot.slane %v3278, 4
        %v3625 = vsel %vm685, %v3624, %v3623
        %v3626 = vrot.slane %v3279, 3
        %v3627 = vsel %vm688, %v3626, %v3625
        %v3628 = vrot.slane %v3280, 2
        %v3629 = vsel %vm691, %v3628, %v3627
        %v3630 = vrot.slane %v3281, 1
        %v3631 = vsel %vm694, %v3630, %v3629
        %v3632 = vrot.slane %v3283, 7
        %v3633 = vsel %vm676, %v3632, %v3282
        %v3634 = vrot.slane %v3284, 6
        %v3635 = vsel %vm679, %v3634, %v3633
        %v3636 = vrot.slane %v3285, 5
        %v3637 = vsel %vm682, %v3636, %v3635
        %v3638 = vrot.slane %v3286, 4
        %v3639 = vsel %vm685, %v3638, %v3637
        %v3640 = vrot.slane %v3287, 3
        %v3641 = vsel %vm688, %v3640, %v3639
        %v3642 = vrot.slane %v3288, 2
        %v3643 = vsel %vm691, %v3642, %v3641
        %v3644 = vrot.slane %v3289, 1
        %v3645 = vsel %vm694, %v3644, %v3643
        %v3646 = vrot.slane %v3291, 7
        %v3647 = vsel %vm676, %v3646, %v3290
        %v3648 = vrot.slane %v3292, 6
        %v3649 = vsel %vm679, %v3648, %v3647
        %v3650 = vrot.slane %v3293, 5
        %v3651 = vsel %vm682, %v3650, %v3649
        %v3652 = vrot.slane %v3294, 4
        %v3653 = vsel %vm685, %v3652, %v3651
        %v3654 = vrot.slane %v3295, 3
        %v3655 = vsel %vm688, %v3654, %v3653
        %v3656 = vrot.slane %v3296, 2
        %v3657 = vsel %vm691, %v3656, %v3655
        %v3658 = vrot.slane %v3297, 1
        %v3659 = vsel %vm694, %v3658, %v3657
        %v3660 = vrot.slane %v3299, 7
        %v3661 = vsel %vm676, %v3660, %v3298
        %v3662 = vrot.slane %v3300, 6
        %v3663 = vsel %vm679, %v3662, %v3661
        %v3664 = vrot.slane %v3301, 5
        %v3665 = vsel %vm682, %v3664, %v3663
        %v3666 = vrot.slane %v3302, 4
        %v3667 = vsel %vm685, %v3666, %v3665
        %v3668 = vrot.slane %v3303, 3
        %v3669 = vsel %vm688, %v3668, %v3667
        %v3670 = vrot.slane %v3304, 2
        %v3671 = vsel %vm691, %v3670, %v3669
        %v3672 = vrot.slane %v3305, 1
        %v3673 = vsel %vm694, %v3672, %v3671
        %v3674 = vrot.slane %v3307, 7
        %v3675 = vsel %vm676, %v3674, %v3306
        %v3676 = vrot.slane %v3308, 6
        %v3677 = vsel %vm679, %v3676, %v3675
        %v3678 = vrot.slane %v3309, 5
        %v3679 = vsel %vm682, %v3678, %v3677
        %v3680 = vrot.slane %v3310, 4
        %v3681 = vsel %vm685, %v3680, %v3679
        %v3682 = vrot.slane %v3311, 3
        %v3683 = vsel %vm688, %v3682, %v3681
        %v3684 = vrot.slane %v3312, 2
        %v3685 = vsel %vm691, %v3684, %v3683
        %v3686 = vrot.slane %v3313, 1
        %v3687 = vsel %vm694, %v3686, %v3685
        %v3688 = vrot.slane %v3315, 7
        %v3689 = vsel %vm676, %v3688, %v3314
        %v3690 = vrot.slane %v3316, 6
        %v3691 = vsel %vm679, %v3690, %v3689
        %v3692 = vrot.slane %v3317, 5
        %v3693 = vsel %vm682, %v3692, %v3691
        %v3694 = vrot.slane %v3318, 4
        %v3695 = vsel %vm685, %v3694, %v3693
        %v3696 = vrot.slane %v3319, 3
        %v3697 = vsel %vm688, %v3696, %v3695
        %v3698 = vrot.slane %v3320, 2
        %v3699 = vsel %vm691, %v3698, %v3697
        %v3700 = vrot.slane %v3321, 1
        %v3701 = vsel %vm694, %v3700, %v3699
        %v3702 = vrot.slane %v3323, 7
        %v3703 = vsel %vm676, %v3702, %v3322
        %v3704 = vrot.slane %v3324, 6
        %v3705 = vsel %vm679, %v3704, %v3703
        %v3706 = vrot.slane %v3325, 5
        %v3707 = vsel %vm682, %v3706, %v3705
        %v3708 = vrot.slane %v3326, 4
        %v3709 = vsel %vm685, %v3708, %v3707
        %v3710 = vrot.slane %v3327, 3
        %v3711 = vsel %vm688, %v3710, %v3709
        %v3712 = vrot.slane %v3328, 2
        %v3713 = vsel %vm691, %v3712, %v3711
        %v3714 = vrot.slane %v3329, 1
        %v3715 = vsel %vm694, %v3714, %v3713
        %v3716 = vrot.slane %v3331, 7
        %v3717 = vsel %vm676, %v3716, %v3330
        %v3718 = vrot.slane %v3332, 6
        %v3719 = vsel %vm679, %v3718, %v3717
        %v3720 = vrot.slane %v3333, 5
        %v3721 = vsel %vm682, %v3720, %v3719
        %v3722 = vrot.slane %v3334, 4
        %v3723 = vsel %vm685, %v3722, %v3721
        %v3724 = vrot.slane %v3335, 3
        %v3725 = vsel %vm688, %v3724, %v3723
        %v3726 = vrot.slane %v3336, 2
        %v3727 = vsel %vm691, %v3726, %v3725
        %v3728 = vrot.slane %v3337, 1
        %v3729 = vsel %vm694, %v3728, %v3727
        %v3730 = vrot.slane %v3339, 7
        %v3731 = vsel %vm676, %v3730, %v3338
        %v3732 = vrot.slane %v3340, 6
        %v3733 = vsel %vm679, %v3732, %v3731
        %v3734 = vrot.slane %v3341, 5
        %v3735 = vsel %vm682, %v3734, %v3733
        %v3736 = vrot.slane %v3342, 4
        %v3737 = vsel %vm685, %v3736, %v3735
        %v3738 = vrot.slane %v3343, 3
        %v3739 = vsel %vm688, %v3738, %v3737
        %v3740 = vrot.slane %v3344, 2
        %v3741 = vsel %vm691, %v3740, %v3739
        %v3742 = vrot.slane %v3345, 1
        %v3743 = vsel %vm694, %v3742, %v3741
        %v3744 = vrot.slane %v3347, 7
        %v3745 = vsel %vm676, %v3744, %v3346
        %v3746 = vrot.slane %v3348, 6
        %v3747 = vsel %vm679, %v3746, %v3745
        %v3748 = vrot.slane %v3349, 5
        %v3749 = vsel %vm682, %v3748, %v3747
        %v3750 = vrot.slane %v3350, 4
        %v3751 = vsel %vm685, %v3750, %v3749
        %v3752 = vrot.slane %v3351, 3
        %v3753 = vsel %vm688, %v3752, %v3751
        %v3754 = vrot.slane %v3352, 2
        %v3755 = vsel %vm691, %v3754, %v3753
        %v3756 = vrot.slane %v3353, 1
        %v3757 = vsel %vm694, %v3756, %v3755
        %v3758 = vrot.slane %v3355, 7
        %v3759 = vsel %vm676, %v3758, %v3354
        %v3760 = vrot.slane %v3356, 6
        %v3761 = vsel %vm679, %v3760, %v3759
        %v3762 = vrot.slane %v3357, 5
        %v3763 = vsel %vm682, %v3762, %v3761
        %v3764 = vrot.slane %v3358, 4
        %v3765 = vsel %vm685, %v3764, %v3763
        %v3766 = vrot.slane %v3359, 3
        %v3767 = vsel %vm688, %v3766, %v3765
        %v3768 = vrot.slane %v3360, 2
        %v3769 = vsel %vm691, %v3768, %v3767
        %v3770 = vrot.slane %v3361, 1
        %v3771 = vsel %vm694, %v3770, %v3769
        %v3772 = vrot.slane %v3363, 7
        %v3773 = vsel %vm676, %v3772, %v3362
        %v3774 = vrot.slane %v3364, 6
        %v3775 = vsel %vm679, %v3774, %v3773
        %v3776 = vrot.slane %v3365, 5
        %v3777 = vsel %vm682, %v3776, %v3775
        %v3778 = vrot.slane %v3366, 4
        %v3779 = vsel %vm685, %v3778, %v3777
        %v3780 = vrot.slane %v3367, 3
        %v3781 = vsel %vm688, %v3780, %v3779
        %v3782 = vrot.slane %v3368, 2
        %v3783 = vsel %vm691, %v3782, %v3781
        %v3784 = vrot.slane %v3369, 1
        %v3785 = vsel %vm694, %v3784, %v3783
        %v3802 = vmul.f32 %v3372, %v3575
        %v3803 = vmul.f32 %v3376, %v3589
        %v3804 = vmul.f32 %v3380, %v3603
        %v3805 = vmul.f32 %v3384, %v3617
        %v3806 = vmul.f32 %v3388, %v3631
        %v3807 = vmul.f32 %v3392, %v3645
        %v3808 = vmul.f32 %v3396, %v3659
        %v3809 = vmul.f32 %v3400, %v3673
        %v3810 = vmul.f32 %v3404, %v3687
        %v3811 = vmul.f32 %v3408, %v3701
        %v3812 = vmul.f32 %v3412, %v3715
        %v3813 = vmul.f32 %v3416, %v3729
        %v3814 = vmul.f32 %v3420, %v3743
        %v3815 = vmul.f32 %v3424, %v3757
        %v3816 = vmul.f32 %v3428, %v3771
        %v3817 = vmul.f32 %v3432, %v3785
        %v3834 = vrot.slane %v3802, 1
        %v3835 = vrot.slane %v3802, 2
        %v3836 = vrot.slane %v3802, 3
        %v3837 = vrot.slane %v3802, 4
        %v3838 = vrot.slane %v3802, 5
        %v3839 = vrot.slane %v3802, 6
        %v3840 = vrot.slane %v3802, 7
        %v3841 = vrot.slane %v3803, 1
        %v3842 = vrot.slane %v3803, 2
        %v3843 = vrot.slane %v3803, 3
        %v3844 = vrot.slane %v3803, 4
        %v3845 = vrot.slane %v3803, 5
        %v3846 = vrot.slane %v3803, 6
        %v3847 = vrot.slane %v3803, 7
        %v3848 = vrot.slane %v3804, 1
        %v3849 = vrot.slane %v3804, 2
        %v3850 = vrot.slane %v3804, 3
        %v3851 = vrot.slane %v3804, 4
        %v3852 = vrot.slane %v3804, 5
        %v3853 = vrot.slane %v3804, 6
        %v3854 = vrot.slane %v3804, 7
        %v3855 = vrot.slane %v3805, 1
        %v3856 = vrot.slane %v3805, 2
        %v3857 = vrot.slane %v3805, 3
        %v3858 = vrot.slane %v3805, 4
        %v3859 = vrot.slane %v3805, 5
        %v3860 = vrot.slane %v3805, 6
        %v3861 = vrot.slane %v3805, 7
        %v3862 = vrot.slane %v3806, 1
        %v3863 = vrot.slane %v3806, 2
        %v3864 = vrot.slane %v3806, 3
        %v3865 = vrot.slane %v3806, 4
        %v3866 = vrot.slane %v3806, 5
        %v3867 = vrot.slane %v3806, 6
        %v3868 = vrot.slane %v3806, 7
        %v3869 = vrot.slane %v3807, 1
        %v3870 = vrot.slane %v3807, 2
        %v3871 = vrot.slane %v3807, 3
        %v3872 = vrot.slane %v3807, 4
        %v3873 = vrot.slane %v3807, 5
        %v3874 = vrot.slane %v3807, 6
        %v3875 = vrot.slane %v3807, 7
        %v3876 = vrot.slane %v3808, 1
        %v3877 = vrot.slane %v3808, 2
        %v3878 = vrot.slane %v3808, 3
        %v3879 = vrot.slane %v3808, 4
        %v3880 = vrot.slane %v3808, 5
        %v3881 = vrot.slane %v3808, 6
        %v3882 = vrot.slane %v3808, 7
        %v3883 = vrot.slane %v3809, 1
        %v3884 = vrot.slane %v3809, 2
        %v3885 = vrot.slane %v3809, 3
        %v3886 = vrot.slane %v3809, 4
        %v3887 = vrot.slane %v3809, 5
        %v3888 = vrot.slane %v3809, 6
        %v3889 = vrot.slane %v3809, 7
        %v3890 = vrot.slane %v3810, 1
        %v3891 = vrot.slane %v3810, 2
        %v3892 = vrot.slane %v3810, 3
        %v3893 = vrot.slane %v3810, 4
        %v3894 = vrot.slane %v3810, 5
        %v3895 = vrot.slane %v3810, 6
        %v3896 = vrot.slane %v3810, 7
        %v3897 = vrot.slane %v3811, 1
        %v3898 = vrot.slane %v3811, 2
        %v3899 = vrot.slane %v3811, 3
        %v3900 = vrot.slane %v3811, 4
        %v3901 = vrot.slane %v3811, 5
        %v3902 = vrot.slane %v3811, 6
        %v3903 = vrot.slane %v3811, 7
        %v3904 = vrot.slane %v3812, 1
        %v3905 = vrot.slane %v3812, 2
        %v3906 = vrot.slane %v3812, 3
        %v3907 = vrot.slane %v3812, 4
        %v3908 = vrot.slane %v3812, 5
        %v3909 = vrot.slane %v3812, 6
        %v3910 = vrot.slane %v3812, 7
        %v3911 = vrot.slane %v3813, 1
        %v3912 = vrot.slane %v3813, 2
        %v3913 = vrot.slane %v3813, 3
        %v3914 = vrot.slane %v3813, 4
        %v3915 = vrot.slane %v3813, 5
        %v3916 = vrot.slane %v3813, 6
        %v3917 = vrot.slane %v3813, 7
        %v3918 = vrot.slane %v3814, 1
        %v3919 = vrot.slane %v3814, 2
        %v3920 = vrot.slane %v3814, 3
        %v3921 = vrot.slane %v3814, 4
        %v3922 = vrot.slane %v3814, 5
        %v3923 = vrot.slane %v3814, 6
        %v3924 = vrot.slane %v3814, 7
        %v3925 = vrot.slane %v3815, 1
        %v3926 = vrot.slane %v3815, 2
        %v3927 = vrot.slane %v3815, 3
        %v3928 = vrot.slane %v3815, 4
        %v3929 = vrot.slane %v3815, 5
        %v3930 = vrot.slane %v3815, 6
        %v3931 = vrot.slane %v3815, 7
        %v3932 = vrot.slane %v3816, 1
        %v3933 = vrot.slane %v3816, 2
        %v3934 = vrot.slane %v3816, 3
        %v3935 = vrot.slane %v3816, 4
        %v3936 = vrot.slane %v3816, 5
        %v3937 = vrot.slane %v3816, 6
        %v3938 = vrot.slane %v3816, 7
        %v3939 = vrot.slane %v3817, 1
        %v3940 = vrot.slane %v3817, 2
        %v3941 = vrot.slane %v3817, 3
        %v3942 = vrot.slane %v3817, 4
        %v3943 = vrot.slane %v3817, 5
        %v3944 = vrot.slane %v3817, 6
        %v3945 = vrot.slane %v3817, 7
        %v4074 = vadd.f32 %v3114, %v3802
        %v4075 = vadd.f32 %v3115, %v3834
        %v4076 = vadd.f32 %v3116, %v3835
        %v4077 = vadd.f32 %v3117, %v3836
        %v4078 = vadd.f32 %v3118, %v3837
        %v4079 = vadd.f32 %v3119, %v3838
        %v4080 = vadd.f32 %v3120, %v3839
        %v4081 = vadd.f32 %v3121, %v3840
        %v4082 = vadd.f32 %v3122, %v3803
        %v4083 = vadd.f32 %v3123, %v3841
        %v4084 = vadd.f32 %v3124, %v3842
        %v4085 = vadd.f32 %v3125, %v3843
        %v4086 = vadd.f32 %v3126, %v3844
        %v4087 = vadd.f32 %v3127, %v3845
        %v4088 = vadd.f32 %v3128, %v3846
        %v4089 = vadd.f32 %v3129, %v3847
        %v4090 = vadd.f32 %v3130, %v3804
        %v4091 = vadd.f32 %v3131, %v3848
        %v4092 = vadd.f32 %v3132, %v3849
        %v4093 = vadd.f32 %v3133, %v3850
        %v4094 = vadd.f32 %v3134, %v3851
        %v4095 = vadd.f32 %v3135, %v3852
        %v4096 = vadd.f32 %v3136, %v3853
        %v4097 = vadd.f32 %v3137, %v3854
        %v4098 = vadd.f32 %v3138, %v3805
        %v4099 = vadd.f32 %v3139, %v3855
        %v4100 = vadd.f32 %v3140, %v3856
        %v4101 = vadd.f32 %v3141, %v3857
        %v4102 = vadd.f32 %v3142, %v3858
        %v4103 = vadd.f32 %v3143, %v3859
        %v4104 = vadd.f32 %v3144, %v3860
        %v4105 = vadd.f32 %v3145, %v3861
        %v4106 = vadd.f32 %v3146, %v3806
        %v4107 = vadd.f32 %v3147, %v3862
        %v4108 = vadd.f32 %v3148, %v3863
        %v4109 = vadd.f32 %v3149, %v3864
        %v4110 = vadd.f32 %v3150, %v3865
        %v4111 = vadd.f32 %v3151, %v3866
        %v4112 = vadd.f32 %v3152, %v3867
        %v4113 = vadd.f32 %v3153, %v3868
        %v4114 = vadd.f32 %v3154, %v3807
        %v4115 = vadd.f32 %v3155, %v3869
        %v4116 = vadd.f32 %v3156, %v3870
        %v4117 = vadd.f32 %v3157, %v3871
        %v4118 = vadd.f32 %v3158, %v3872
        %v4119 = vadd.f32 %v3159, %v3873
        %v4120 = vadd.f32 %v3160, %v3874
        %v4121 = vadd.f32 %v3161, %v3875
        %v4122 = vadd.f32 %v3162, %v3808
        %v4123 = vadd.f32 %v3163, %v3876
        %v4124 = vadd.f32 %v3164, %v3877
        %v4125 = vadd.f32 %v3165, %v3878
        %v4126 = vadd.f32 %v3166, %v3879
        %v4127 = vadd.f32 %v3167, %v3880
        %v4128 = vadd.f32 %v3168, %v3881
        %v4129 = vadd.f32 %v3169, %v3882
        %v4130 = vadd.f32 %v3170, %v3809
        %v4131 = vadd.f32 %v3171, %v3883
        %v4132 = vadd.f32 %v3172, %v3884
        %v4133 = vadd.f32 %v3173, %v3885
        %v4134 = vadd.f32 %v3174, %v3886
        %v4135 = vadd.f32 %v3175, %v3887
        %v4136 = vadd.f32 %v3176, %v3888
        %v4137 = vadd.f32 %v3177, %v3889
        %v4138 = vadd.f32 %v3178, %v3810
        %v4139 = vadd.f32 %v3179, %v3890
        %v4140 = vadd.f32 %v3180, %v3891
        %v4141 = vadd.f32 %v3181, %v3892
        %v4142 = vadd.f32 %v3182, %v3893
        %v4143 = vadd.f32 %v3183, %v3894
        %v4144 = vadd.f32 %v3184, %v3895
        %v4145 = vadd.f32 %v3185, %v3896
        %v4146 = vadd.f32 %v3186, %v3811
        %v4147 = vadd.f32 %v3187, %v3897
        %v4148 = vadd.f32 %v3188, %v3898
        %v4149 = vadd.f32 %v3189, %v3899
        %v4150 = vadd.f32 %v3190, %v3900
        %v4151 = vadd.f32 %v3191, %v3901
        %v4152 = vadd.f32 %v3192, %v3902
        %v4153 = vadd.f32 %v3193, %v3903
        %v4154 = vadd.f32 %v3194, %v3812
        %v4155 = vadd.f32 %v3195, %v3904
        %v4156 = vadd.f32 %v3196, %v3905
        %v4157 = vadd.f32 %v3197, %v3906
        %v4158 = vadd.f32 %v3198, %v3907
        %v4159 = vadd.f32 %v3199, %v3908
        %v4160 = vadd.f32 %v3200, %v3909
        %v4161 = vadd.f32 %v3201, %v3910
        %v4162 = vadd.f32 %v3202, %v3813
        %v4163 = vadd.f32 %v3203, %v3911
        %v4164 = vadd.f32 %v3204, %v3912
        %v4165 = vadd.f32 %v3205, %v3913
        %v4166 = vadd.f32 %v3206, %v3914
        %v4167 = vadd.f32 %v3207, %v3915
        %v4168 = vadd.f32 %v3208, %v3916
        %v4169 = vadd.f32 %v3209, %v3917
        %v4170 = vadd.f32 %v3210, %v3814
        %v4171 = vadd.f32 %v3211, %v3918
        %v4172 = vadd.f32 %v3212, %v3919
        %v4173 = vadd.f32 %v3213, %v3920
        %v4174 = vadd.f32 %v3214, %v3921
        %v4175 = vadd.f32 %v3215, %v3922
        %v4176 = vadd.f32 %v3216, %v3923
        %v4177 = vadd.f32 %v3217, %v3924
        %v4178 = vadd.f32 %v3218, %v3815
        %v4179 = vadd.f32 %v3219, %v3925
        %v4180 = vadd.f32 %v3220, %v3926
        %v4181 = vadd.f32 %v3221, %v3927
        %v4182 = vadd.f32 %v3222, %v3928
        %v4183 = vadd.f32 %v3223, %v3929
        %v4184 = vadd.f32 %v3224, %v3930
        %v4185 = vadd.f32 %v3225, %v3931
        %v4186 = vadd.f32 %v3226, %v3816
        %v4187 = vadd.f32 %v3227, %v3932
        %v4188 = vadd.f32 %v3228, %v3933
        %v4189 = vadd.f32 %v3229, %v3934
        %v4190 = vadd.f32 %v3230, %v3935
        %v4191 = vadd.f32 %v3231, %v3936
        %v4192 = vadd.f32 %v3232, %v3937
        %v4193 = vadd.f32 %v3233, %v3938
        %v4194 = vadd.f32 %v3234, %v3817
        %v4195 = vadd.f32 %v3235, %v3939
        %v4196 = vadd.f32 %v3236, %v3940
        %v4197 = vadd.f32 %v3237, %v3941
        %v4198 = vadd.f32 %v3238, %v3942
        %v4199 = vadd.f32 %v3239, %v3943
        %v4200 = vadd.f32 %v3240, %v3944
        %v4201 = vadd.f32 %v3241, %v3945
        %v4202 = vld [vmem:[%s192 + $0x4] sm:$0x1]
        %v4203 = vld [vmem:[%s192 + $0x14] sm:$0x1]
        %v4204 = vld [vmem:[%s192 + $0x24] sm:$0x1]
        %v4205 = vld [vmem:[%s192 + $0x34] sm:$0x1]
        %v4206 = vld [vmem:[%s192 + $0x44] sm:$0x1]
        %v4207 = vld [vmem:[%s192 + $0x54] sm:$0x1]
        %v4208 = vld [vmem:[%s192 + $0x64] sm:$0x1]
        %v4209 = vld [vmem:[%s192 + $0x74] sm:$0x1]
        %v4210 = vld [vmem:[%s192 + $0x84] sm:$0x1]
        %v4211 = vld [vmem:[%s192 + $0x94] sm:$0x1]
        %v4212 = vld [vmem:[%s192 + $0xa4] sm:$0x1]
        %v4213 = vld [vmem:[%s192 + $0xb4] sm:$0x1]
        %v4214 = vld [vmem:[%s192 + $0xc4] sm:$0x1]
        %v4215 = vld [vmem:[%s192 + $0xd4] sm:$0x1]
        %v4216 = vld [vmem:[%s192 + $0xe4] sm:$0x1]
        %v4217 = vld [vmem:[%s192 + $0xf4] sm:$0x1]
        %v4218 = vld [vmem:[%s192 + $0x104] sm:$0x1]
        %v4219 = vld [vmem:[%s192 + $0x114] sm:$0x1]
        %v4220 = vld [vmem:[%s192 + $0x124] sm:$0x1]
        %v4221 = vld [vmem:[%s192 + $0x134] sm:$0x1]
        %v4222 = vld [vmem:[%s192 + $0x144] sm:$0x1]
        %v4223 = vld [vmem:[%s192 + $0x154] sm:$0x1]
        %v4224 = vld [vmem:[%s192 + $0x164] sm:$0x1]
        %v4225 = vld [vmem:[%s192 + $0x174] sm:$0x1]
        %v4226 = vld [vmem:[%s192 + $0x184] sm:$0x1]
        %v4227 = vld [vmem:[%s192 + $0x194] sm:$0x1]
        %v4228 = vld [vmem:[%s192 + $0x1a4] sm:$0x1]
        %v4229 = vld [vmem:[%s192 + $0x1b4] sm:$0x1]
        %v4230 = vld [vmem:[%s192 + $0x1c4] sm:$0x1]
        %v4231 = vld [vmem:[%s192 + $0x1d4] sm:$0x1]
        %v4232 = vld [vmem:[%s192 + $0x1e4] sm:$0x1]
        %v4233 = vld [vmem:[%s192 + $0x1f4] sm:$0x1]
        %v4234 = vld [vmem:[%s192 + $0x204] sm:$0x1]
        %v4235 = vld [vmem:[%s192 + $0x214] sm:$0x1]
        %v4236 = vld [vmem:[%s192 + $0x224] sm:$0x1]
        %v4237 = vld [vmem:[%s192 + $0x234] sm:$0x1]
        %v4238 = vld [vmem:[%s192 + $0x244] sm:$0x1]
        %v4239 = vld [vmem:[%s192 + $0x254] sm:$0x1]
        %v4240 = vld [vmem:[%s192 + $0x264] sm:$0x1]
        %v4241 = vld [vmem:[%s192 + $0x274] sm:$0x1]
        %v4242 = vld [vmem:[%s192 + $0x284] sm:$0x1]
        %v4243 = vld [vmem:[%s192 + $0x294] sm:$0x1]
        %v4244 = vld [vmem:[%s192 + $0x2a4] sm:$0x1]
        %v4245 = vld [vmem:[%s192 + $0x2b4] sm:$0x1]
        %v4246 = vld [vmem:[%s192 + $0x2c4] sm:$0x1]
        %v4247 = vld [vmem:[%s192 + $0x2d4] sm:$0x1]
        %v4248 = vld [vmem:[%s192 + $0x2e4] sm:$0x1]
        %v4249 = vld [vmem:[%s192 + $0x2f4] sm:$0x1]
        %v4250 = vld [vmem:[%s192 + $0x304] sm:$0x1]
        %v4251 = vld [vmem:[%s192 + $0x314] sm:$0x1]
        %v4252 = vld [vmem:[%s192 + $0x324] sm:$0x1]
        %v4253 = vld [vmem:[%s192 + $0x334] sm:$0x1]
        %v4254 = vld [vmem:[%s192 + $0x344] sm:$0x1]
        %v4255 = vld [vmem:[%s192 + $0x354] sm:$0x1]
        %v4256 = vld [vmem:[%s192 + $0x364] sm:$0x1]
        %v4257 = vld [vmem:[%s192 + $0x374] sm:$0x1]
        %v4258 = vld [vmem:[%s192 + $0x384] sm:$0x1]
        %v4259 = vld [vmem:[%s192 + $0x394] sm:$0x1]
        %v4260 = vld [vmem:[%s192 + $0x3a4] sm:$0x1]
        %v4261 = vld [vmem:[%s192 + $0x3b4] sm:$0x1]
        %v4262 = vld [vmem:[%s192 + $0x3c4] sm:$0x1]
        %v4263 = vld [vmem:[%s192 + $0x3d4] sm:$0x1]
        %v4264 = vld [vmem:[%s192 + $0x3e4] sm:$0x1]
        %v4265 = vld [vmem:[%s192 + $0x3f4] sm:$0x1]
        %v4266 = vld [vmem:[%s192 + $0x404] sm:$0x1]
        %v4267 = vld [vmem:[%s192 + $0x414] sm:$0x1]
        %v4268 = vld [vmem:[%s192 + $0x424] sm:$0x1]
        %v4269 = vld [vmem:[%s192 + $0x434] sm:$0x1]
        %v4270 = vld [vmem:[%s192 + $0x444] sm:$0x1]
        %v4271 = vld [vmem:[%s192 + $0x454] sm:$0x1]
        %v4272 = vld [vmem:[%s192 + $0x464] sm:$0x1]
        %v4273 = vld [vmem:[%s192 + $0x474] sm:$0x1]
        %v4274 = vld [vmem:[%s192 + $0x484] sm:$0x1]
        %v4275 = vld [vmem:[%s192 + $0x494] sm:$0x1]
        %v4276 = vld [vmem:[%s192 + $0x4a4] sm:$0x1]
        %v4277 = vld [vmem:[%s192 + $0x4b4] sm:$0x1]
        %v4278 = vld [vmem:[%s192 + $0x4c4] sm:$0x1]
        %v4279 = vld [vmem:[%s192 + $0x4d4] sm:$0x1]
        %v4280 = vld [vmem:[%s192 + $0x4e4] sm:$0x1]
        %v4281 = vld [vmem:[%s192 + $0x4f4] sm:$0x1]
        %v4282 = vld [vmem:[%s192 + $0x504] sm:$0x1]
        %v4283 = vld [vmem:[%s192 + $0x514] sm:$0x1]
        %v4284 = vld [vmem:[%s192 + $0x524] sm:$0x1]
        %v4285 = vld [vmem:[%s192 + $0x534] sm:$0x1]
        %v4286 = vld [vmem:[%s192 + $0x544] sm:$0x1]
        %v4287 = vld [vmem:[%s192 + $0x554] sm:$0x1]
        %v4288 = vld [vmem:[%s192 + $0x564] sm:$0x1]
        %v4289 = vld [vmem:[%s192 + $0x574] sm:$0x1]
        %v4290 = vld [vmem:[%s192 + $0x584] sm:$0x1]
        %v4291 = vld [vmem:[%s192 + $0x594] sm:$0x1]
        %v4292 = vld [vmem:[%s192 + $0x5a4] sm:$0x1]
        %v4293 = vld [vmem:[%s192 + $0x5b4] sm:$0x1]
        %v4294 = vld [vmem:[%s192 + $0x5c4] sm:$0x1]
        %v4295 = vld [vmem:[%s192 + $0x5d4] sm:$0x1]
        %v4296 = vld [vmem:[%s192 + $0x5e4] sm:$0x1]
        %v4297 = vld [vmem:[%s192 + $0x5f4] sm:$0x1]
        %v4298 = vld [vmem:[%s192 + $0x604] sm:$0x1]
        %v4299 = vld [vmem:[%s192 + $0x614] sm:$0x1]
        %v4300 = vld [vmem:[%s192 + $0x624] sm:$0x1]
        %v4301 = vld [vmem:[%s192 + $0x634] sm:$0x1]
        %v4302 = vld [vmem:[%s192 + $0x644] sm:$0x1]
        %v4303 = vld [vmem:[%s192 + $0x654] sm:$0x1]
        %v4304 = vld [vmem:[%s192 + $0x664] sm:$0x1]
        %v4305 = vld [vmem:[%s192 + $0x674] sm:$0x1]
        %v4306 = vld [vmem:[%s192 + $0x684] sm:$0x1]
        %v4307 = vld [vmem:[%s192 + $0x694] sm:$0x1]
        %v4308 = vld [vmem:[%s192 + $0x6a4] sm:$0x1]
        %v4309 = vld [vmem:[%s192 + $0x6b4] sm:$0x1]
        %v4310 = vld [vmem:[%s192 + $0x6c4] sm:$0x1]
        %v4311 = vld [vmem:[%s192 + $0x6d4] sm:$0x1]
        %v4312 = vld [vmem:[%s192 + $0x6e4] sm:$0x1]
        %v4313 = vld [vmem:[%s192 + $0x6f4] sm:$0x1]
        %v4314 = vld [vmem:[%s192 + $0x704] sm:$0x1]
        %v4315 = vld [vmem:[%s192 + $0x714] sm:$0x1]
        %v4316 = vld [vmem:[%s192 + $0x724] sm:$0x1]
        %v4317 = vld [vmem:[%s192 + $0x734] sm:$0x1]
        %v4318 = vld [vmem:[%s192 + $0x744] sm:$0x1]
        %v4319 = vld [vmem:[%s192 + $0x754] sm:$0x1]
        %v4320 = vld [vmem:[%s192 + $0x764] sm:$0x1]
        %v4321 = vld [vmem:[%s192 + $0x774] sm:$0x1]
        %v4322 = vld [vmem:[%s192 + $0x784] sm:$0x1]
        %v4323 = vld [vmem:[%s192 + $0x794] sm:$0x1]
        %v4324 = vld [vmem:[%s192 + $0x7a4] sm:$0x1]
        %v4325 = vld [vmem:[%s192 + $0x7b4] sm:$0x1]
        %v4326 = vld [vmem:[%s192 + $0x7c4] sm:$0x1]
        %v4327 = vld [vmem:[%s192 + $0x7d4] sm:$0x1]
        %v4328 = vld [vmem:[%s192 + $0x7e4] sm:$0x1]
        %v4329 = vld [vmem:[%s192 + $0x7f4] sm:$0x1]
        %4330 = vset.pattern.permute.xlu0 4
        %4331 = vperm.xlu0 %4330, %v323
        %v4332 = vpop.permute.xlu0 %4331
        %4334 = vset.pattern.permute.xlu0 4
        %4335 = vperm.xlu0 %4334, %v324
        %v4336 = vpop.permute.xlu0 %4335
        %4338 = vset.pattern.permute.xlu0 4
        %4339 = vperm.xlu0 %4338, %v325
        %v4340 = vpop.permute.xlu0 %4339
        %4342 = vset.pattern.permute.xlu0 4
        %4343 = vperm.xlu0 %4342, %v326
        %v4344 = vpop.permute.xlu0 %4343
        %4346 = vset.pattern.permute.xlu0 4
        %4347 = vperm.xlu0 %4346, %v327
        %v4348 = vpop.permute.xlu0 %4347
        %4350 = vset.pattern.permute.xlu0 4
        %4351 = vperm.xlu0 %4350, %v328
        %v4352 = vpop.permute.xlu0 %4351
        %4354 = vset.pattern.permute.xlu0 4
        %4355 = vperm.xlu0 %4354, %v329
        %v4356 = vpop.permute.xlu0 %4355
        %4358 = vset.pattern.permute.xlu0 4
        %4359 = vperm.xlu0 %4358, %v330
        %v4360 = vpop.permute.xlu0 %4359
        %4362 = vset.pattern.permute.xlu0 4
        %4363 = vperm.xlu0 %4362, %v331
        %v4364 = vpop.permute.xlu0 %4363
        %4366 = vset.pattern.permute.xlu0 4
        %4367 = vperm.xlu0 %4366, %v332
        %v4368 = vpop.permute.xlu0 %4367
        %4370 = vset.pattern.permute.xlu0 4
        %4371 = vperm.xlu0 %4370, %v333
        %v4372 = vpop.permute.xlu0 %4371
        %4374 = vset.pattern.permute.xlu0 4
        %4375 = vperm.xlu0 %4374, %v334
        %v4376 = vpop.permute.xlu0 %4375
        %4378 = vset.pattern.permute.xlu0 4
        %4379 = vperm.xlu0 %4378, %v335
        %v4380 = vpop.permute.xlu0 %4379
        %4382 = vset.pattern.permute.xlu0 4
        %4383 = vperm.xlu0 %4382, %v336
        %v4384 = vpop.permute.xlu0 %4383
        %4386 = vset.pattern.permute.xlu0 4
        %4387 = vperm.xlu0 %4386, %v337
        %v4388 = vpop.permute.xlu0 %4387
        %4390 = vset.pattern.permute.xlu0 4
        %4391 = vperm.xlu0 %4390, %v338
        %v4392 = vpop.permute.xlu0 %4391
        %v4522 = vrot.slane %v4203, 7
        %v4523 = vsel %vm676, %v4522, %v4202
        %v4524 = vrot.slane %v4204, 6
        %v4525 = vsel %vm679, %v4524, %v4523
        %v4526 = vrot.slane %v4205, 5
        %v4527 = vsel %vm682, %v4526, %v4525
        %v4528 = vrot.slane %v4206, 4
        %v4529 = vsel %vm685, %v4528, %v4527
        %v4530 = vrot.slane %v4207, 3
        %v4531 = vsel %vm688, %v4530, %v4529
        %v4532 = vrot.slane %v4208, 2
        %v4533 = vsel %vm691, %v4532, %v4531
        %v4534 = vrot.slane %v4209, 1
        %v4535 = vsel %vm694, %v4534, %v4533
        %v4536 = vrot.slane %v4211, 7
        %v4537 = vsel %vm676, %v4536, %v4210
        %v4538 = vrot.slane %v4212, 6
        %v4539 = vsel %vm679, %v4538, %v4537
        %v4540 = vrot.slane %v4213, 5
        %v4541 = vsel %vm682, %v4540, %v4539
        %v4542 = vrot.slane %v4214, 4
        %v4543 = vsel %vm685, %v4542, %v4541
        %v4544 = vrot.slane %v4215, 3
        %v4545 = vsel %vm688, %v4544, %v4543
        %v4546 = vrot.slane %v4216, 2
        %v4547 = vsel %vm691, %v4546, %v4545
        %v4548 = vrot.slane %v4217, 1
        %v4549 = vsel %vm694, %v4548, %v4547
        %v4550 = vrot.slane %v4219, 7
        %v4551 = vsel %vm676, %v4550, %v4218
        %v4552 = vrot.slane %v4220, 6
        %v4553 = vsel %vm679, %v4552, %v4551
        %v4554 = vrot.slane %v4221, 5
        %v4555 = vsel %vm682, %v4554, %v4553
        %v4556 = vrot.slane %v4222, 4
        %v4557 = vsel %vm685, %v4556, %v4555
        %v4558 = vrot.slane %v4223, 3
        %v4559 = vsel %vm688, %v4558, %v4557
        %v4560 = vrot.slane %v4224, 2
        %v4561 = vsel %vm691, %v4560, %v4559
        %v4562 = vrot.slane %v4225, 1
        %v4563 = vsel %vm694, %v4562, %v4561
        %v4564 = vrot.slane %v4227, 7
        %v4565 = vsel %vm676, %v4564, %v4226
        %v4566 = vrot.slane %v4228, 6
        %v4567 = vsel %vm679, %v4566, %v4565
        %v4568 = vrot.slane %v4229, 5
        %v4569 = vsel %vm682, %v4568, %v4567
        %v4570 = vrot.slane %v4230, 4
        %v4571 = vsel %vm685, %v4570, %v4569
        %v4572 = vrot.slane %v4231, 3
        %v4573 = vsel %vm688, %v4572, %v4571
        %v4574 = vrot.slane %v4232, 2
        %v4575 = vsel %vm691, %v4574, %v4573
        %v4576 = vrot.slane %v4233, 1
        %v4577 = vsel %vm694, %v4576, %v4575
        %v4578 = vrot.slane %v4235, 7
        %v4579 = vsel %vm676, %v4578, %v4234
        %v4580 = vrot.slane %v4236, 6
        %v4581 = vsel %vm679, %v4580, %v4579
        %v4582 = vrot.slane %v4237, 5
        %v4583 = vsel %vm682, %v4582, %v4581
        %v4584 = vrot.slane %v4238, 4
        %v4585 = vsel %vm685, %v4584, %v4583
        %v4586 = vrot.slane %v4239, 3
        %v4587 = vsel %vm688, %v4586, %v4585
        %v4588 = vrot.slane %v4240, 2
        %v4589 = vsel %vm691, %v4588, %v4587
        %v4590 = vrot.slane %v4241, 1
        %v4591 = vsel %vm694, %v4590, %v4589
        %v4592 = vrot.slane %v4243, 7
        %v4593 = vsel %vm676, %v4592, %v4242
        %v4594 = vrot.slane %v4244, 6
        %v4595 = vsel %vm679, %v4594, %v4593
        %v4596 = vrot.slane %v4245, 5
        %v4597 = vsel %vm682, %v4596, %v4595
        %v4598 = vrot.slane %v4246, 4
        %v4599 = vsel %vm685, %v4598, %v4597
        %v4600 = vrot.slane %v4247, 3
        %v4601 = vsel %vm688, %v4600, %v4599
        %v4602 = vrot.slane %v4248, 2
        %v4603 = vsel %vm691, %v4602, %v4601
        %v4604 = vrot.slane %v4249, 1
        %v4605 = vsel %vm694, %v4604, %v4603
        %v4606 = vrot.slane %v4251, 7
        %v4607 = vsel %vm676, %v4606, %v4250
        %v4608 = vrot.slane %v4252, 6
        %v4609 = vsel %vm679, %v4608, %v4607
        %v4610 = vrot.slane %v4253, 5
        %v4611 = vsel %vm682, %v4610, %v4609
        %v4612 = vrot.slane %v4254, 4
        %v4613 = vsel %vm685, %v4612, %v4611
        %v4614 = vrot.slane %v4255, 3
        %v4615 = vsel %vm688, %v4614, %v4613
        %v4616 = vrot.slane %v4256, 2
        %v4617 = vsel %vm691, %v4616, %v4615
        %v4618 = vrot.slane %v4257, 1
        %v4619 = vsel %vm694, %v4618, %v4617
        %v4620 = vrot.slane %v4259, 7
        %v4621 = vsel %vm676, %v4620, %v4258
        %v4622 = vrot.slane %v4260, 6
        %v4623 = vsel %vm679, %v4622, %v4621
        %v4624 = vrot.slane %v4261, 5
        %v4625 = vsel %vm682, %v4624, %v4623
        %v4626 = vrot.slane %v4262, 4
        %v4627 = vsel %vm685, %v4626, %v4625
        %v4628 = vrot.slane %v4263, 3
        %v4629 = vsel %vm688, %v4628, %v4627
        %v4630 = vrot.slane %v4264, 2
        %v4631 = vsel %vm691, %v4630, %v4629
        %v4632 = vrot.slane %v4265, 1
        %v4633 = vsel %vm694, %v4632, %v4631
        %v4634 = vrot.slane %v4267, 7
        %v4635 = vsel %vm676, %v4634, %v4266
        %v4636 = vrot.slane %v4268, 6
        %v4637 = vsel %vm679, %v4636, %v4635
        %v4638 = vrot.slane %v4269, 5
        %v4639 = vsel %vm682, %v4638, %v4637
        %v4640 = vrot.slane %v4270, 4
        %v4641 = vsel %vm685, %v4640, %v4639
        %v4642 = vrot.slane %v4271, 3
        %v4643 = vsel %vm688, %v4642, %v4641
        %v4644 = vrot.slane %v4272, 2
        %v4645 = vsel %vm691, %v4644, %v4643
        %v4646 = vrot.slane %v4273, 1
        %v4647 = vsel %vm694, %v4646, %v4645
        %v4648 = vrot.slane %v4275, 7
        %v4649 = vsel %vm676, %v4648, %v4274
        %v4650 = vrot.slane %v4276, 6
        %v4651 = vsel %vm679, %v4650, %v4649
        %v4652 = vrot.slane %v4277, 5
        %v4653 = vsel %vm682, %v4652, %v4651
        %v4654 = vrot.slane %v4278, 4
        %v4655 = vsel %vm685, %v4654, %v4653
        %v4656 = vrot.slane %v4279, 3
        %v4657 = vsel %vm688, %v4656, %v4655
        %v4658 = vrot.slane %v4280, 2
        %v4659 = vsel %vm691, %v4658, %v4657
        %v4660 = vrot.slane %v4281, 1
        %v4661 = vsel %vm694, %v4660, %v4659
        %v4662 = vrot.slane %v4283, 7
        %v4663 = vsel %vm676, %v4662, %v4282
        %v4664 = vrot.slane %v4284, 6
        %v4665 = vsel %vm679, %v4664, %v4663
        %v4666 = vrot.slane %v4285, 5
        %v4667 = vsel %vm682, %v4666, %v4665
        %v4668 = vrot.slane %v4286, 4
        %v4669 = vsel %vm685, %v4668, %v4667
        %v4670 = vrot.slane %v4287, 3
        %v4671 = vsel %vm688, %v4670, %v4669
        %v4672 = vrot.slane %v4288, 2
        %v4673 = vsel %vm691, %v4672, %v4671
        %v4674 = vrot.slane %v4289, 1
        %v4675 = vsel %vm694, %v4674, %v4673
        %v4676 = vrot.slane %v4291, 7
        %v4677 = vsel %vm676, %v4676, %v4290
        %v4678 = vrot.slane %v4292, 6
        %v4679 = vsel %vm679, %v4678, %v4677
        %v4680 = vrot.slane %v4293, 5
        %v4681 = vsel %vm682, %v4680, %v4679
        %v4682 = vrot.slane %v4294, 4
        %v4683 = vsel %vm685, %v4682, %v4681
        %v4684 = vrot.slane %v4295, 3
        %v4685 = vsel %vm688, %v4684, %v4683
        %v4686 = vrot.slane %v4296, 2
        %v4687 = vsel %vm691, %v4686, %v4685
        %v4688 = vrot.slane %v4297, 1
        %v4689 = vsel %vm694, %v4688, %v4687
        %v4690 = vrot.slane %v4299, 7
        %v4691 = vsel %vm676, %v4690, %v4298
        %v4692 = vrot.slane %v4300, 6
        %v4693 = vsel %vm679, %v4692, %v4691
        %v4694 = vrot.slane %v4301, 5
        %v4695 = vsel %vm682, %v4694, %v4693
        %v4696 = vrot.slane %v4302, 4
        %v4697 = vsel %vm685, %v4696, %v4695
        %v4698 = vrot.slane %v4303, 3
        %v4699 = vsel %vm688, %v4698, %v4697
        %v4700 = vrot.slane %v4304, 2
        %v4701 = vsel %vm691, %v4700, %v4699
        %v4702 = vrot.slane %v4305, 1
        %v4703 = vsel %vm694, %v4702, %v4701
        %v4704 = vrot.slane %v4307, 7
        %v4705 = vsel %vm676, %v4704, %v4306
        %v4706 = vrot.slane %v4308, 6
        %v4707 = vsel %vm679, %v4706, %v4705
        %v4708 = vrot.slane %v4309, 5
        %v4709 = vsel %vm682, %v4708, %v4707
        %v4710 = vrot.slane %v4310, 4
        %v4711 = vsel %vm685, %v4710, %v4709
        %v4712 = vrot.slane %v4311, 3
        %v4713 = vsel %vm688, %v4712, %v4711
        %v4714 = vrot.slane %v4312, 2
        %v4715 = vsel %vm691, %v4714, %v4713
        %v4716 = vrot.slane %v4313, 1
        %v4717 = vsel %vm694, %v4716, %v4715
        %v4718 = vrot.slane %v4315, 7
        %v4719 = vsel %vm676, %v4718, %v4314
        %v4720 = vrot.slane %v4316, 6
        %v4721 = vsel %vm679, %v4720, %v4719
        %v4722 = vrot.slane %v4317, 5
        %v4723 = vsel %vm682, %v4722, %v4721
        %v4724 = vrot.slane %v4318, 4
        %v4725 = vsel %vm685, %v4724, %v4723
        %v4726 = vrot.slane %v4319, 3
        %v4727 = vsel %vm688, %v4726, %v4725
        %v4728 = vrot.slane %v4320, 2
        %v4729 = vsel %vm691, %v4728, %v4727
        %v4730 = vrot.slane %v4321, 1
        %v4731 = vsel %vm694, %v4730, %v4729
        %v4732 = vrot.slane %v4323, 7
        %v4733 = vsel %vm676, %v4732, %v4322
        %v4734 = vrot.slane %v4324, 6
        %v4735 = vsel %vm679, %v4734, %v4733
        %v4736 = vrot.slane %v4325, 5
        %v4737 = vsel %vm682, %v4736, %v4735
        %v4738 = vrot.slane %v4326, 4
        %v4739 = vsel %vm685, %v4738, %v4737
        %v4740 = vrot.slane %v4327, 3
        %v4741 = vsel %vm688, %v4740, %v4739
        %v4742 = vrot.slane %v4328, 2
        %v4743 = vsel %vm691, %v4742, %v4741
        %v4744 = vrot.slane %v4329, 1
        %v4745 = vsel %vm694, %v4744, %v4743
        %v4762 = vmul.f32 %v4332, %v4535
        %v4763 = vmul.f32 %v4336, %v4549
        %v4764 = vmul.f32 %v4340, %v4563
        %v4765 = vmul.f32 %v4344, %v4577
        %v4766 = vmul.f32 %v4348, %v4591
        %v4767 = vmul.f32 %v4352, %v4605
        %v4768 = vmul.f32 %v4356, %v4619
        %v4769 = vmul.f32 %v4360, %v4633
        %v4770 = vmul.f32 %v4364, %v4647
        %v4771 = vmul.f32 %v4368, %v4661
        %v4772 = vmul.f32 %v4372, %v4675
        %v4773 = vmul.f32 %v4376, %v4689
        %v4774 = vmul.f32 %v4380, %v4703
        %v4775 = vmul.f32 %v4384, %v4717
        %v4776 = vmul.f32 %v4388, %v4731
        %v4777 = vmul.f32 %v4392, %v4745
        %v4794 = vrot.slane %v4762, 1
        %v4795 = vrot.slane %v4762, 2
        %v4796 = vrot.slane %v4762, 3
        %v4797 = vrot.slane %v4762, 4
        %v4798 = vrot.slane %v4762, 5
        %v4799 = vrot.slane %v4762, 6
        %v4800 = vrot.slane %v4762, 7
        %v4801 = vrot.slane %v4763, 1
        %v4802 = vrot.slane %v4763, 2
        %v4803 = vrot.slane %v4763, 3
        %v4804 = vrot.slane %v4763, 4
        %v4805 = vrot.slane %v4763, 5
        %v4806 = vrot.slane %v4763, 6
        %v4807 = vrot.slane %v4763, 7
        %v4808 = vrot.slane %v4764, 1
        %v4809 = vrot.slane %v4764, 2
        %v4810 = vrot.slane %v4764, 3
        %v4811 = vrot.slane %v4764, 4
        %v4812 = vrot.slane %v4764, 5
        %v4813 = vrot.slane %v4764, 6
        %v4814 = vrot.slane %v4764, 7
        %v4815 = vrot.slane %v4765, 1
        %v4816 = vrot.slane %v4765, 2
        %v4817 = vrot.slane %v4765, 3
        %v4818 = vrot.slane %v4765, 4
        %v4819 = vrot.slane %v4765, 5
        %v4820 = vrot.slane %v4765, 6
        %v4821 = vrot.slane %v4765, 7
        %v4822 = vrot.slane %v4766, 1
        %v4823 = vrot.slane %v4766, 2
        %v4824 = vrot.slane %v4766, 3
        %v4825 = vrot.slane %v4766, 4
        %v4826 = vrot.slane %v4766, 5
        %v4827 = vrot.slane %v4766, 6
        %v4828 = vrot.slane %v4766, 7
        %v4829 = vrot.slane %v4767, 1
        %v4830 = vrot.slane %v4767, 2
        %v4831 = vrot.slane %v4767, 3
        %v4832 = vrot.slane %v4767, 4
        %v4833 = vrot.slane %v4767, 5
        %v4834 = vrot.slane %v4767, 6
        %v4835 = vrot.slane %v4767, 7
        %v4836 = vrot.slane %v4768, 1
        %v4837 = vrot.slane %v4768, 2
        %v4838 = vrot.slane %v4768, 3
        %v4839 = vrot.slane %v4768, 4
        %v4840 = vrot.slane %v4768, 5
        %v4841 = vrot.slane %v4768, 6
        %v4842 = vrot.slane %v4768, 7
        %v4843 = vrot.slane %v4769, 1
        %v4844 = vrot.slane %v4769, 2
        %v4845 = vrot.slane %v4769, 3
        %v4846 = vrot.slane %v4769, 4
        %v4847 = vrot.slane %v4769, 5
        %v4848 = vrot.slane %v4769, 6
        %v4849 = vrot.slane %v4769, 7
        %v4850 = vrot.slane %v4770, 1
        %v4851 = vrot.slane %v4770, 2
        %v4852 = vrot.slane %v4770, 3
        %v4853 = vrot.slane %v4770, 4
        %v4854 = vrot.slane %v4770, 5
        %v4855 = vrot.slane %v4770, 6
        %v4856 = vrot.slane %v4770, 7
        %v4857 = vrot.slane %v4771, 1
        %v4858 = vrot.slane %v4771, 2
        %v4859 = vrot.slane %v4771, 3
        %v4860 = vrot.slane %v4771, 4
        %v4861 = vrot.slane %v4771, 5
        %v4862 = vrot.slane %v4771, 6
        %v4863 = vrot.slane %v4771, 7
        %v4864 = vrot.slane %v4772, 1
        %v4865 = vrot.slane %v4772, 2
        %v4866 = vrot.slane %v4772, 3
        %v4867 = vrot.slane %v4772, 4
        %v4868 = vrot.slane %v4772, 5
        %v4869 = vrot.slane %v4772, 6
        %v4870 = vrot.slane %v4772, 7
        %v4871 = vrot.slane %v4773, 1
        %v4872 = vrot.slane %v4773, 2
        %v4873 = vrot.slane %v4773, 3
        %v4874 = vrot.slane %v4773, 4
        %v4875 = vrot.slane %v4773, 5
        %v4876 = vrot.slane %v4773, 6
        %v4877 = vrot.slane %v4773, 7
        %v4878 = vrot.slane %v4774, 1
        %v4879 = vrot.slane %v4774, 2
        %v4880 = vrot.slane %v4774, 3
        %v4881 = vrot.slane %v4774, 4
        %v4882 = vrot.slane %v4774, 5
        %v4883 = vrot.slane %v4774, 6
        %v4884 = vrot.slane %v4774, 7
        %v4885 = vrot.slane %v4775, 1
        %v4886 = vrot.slane %v4775, 2
        %v4887 = vrot.slane %v4775, 3
        %v4888 = vrot.slane %v4775, 4
        %v4889 = vrot.slane %v4775, 5
        %v4890 = vrot.slane %v4775, 6
        %v4891 = vrot.slane %v4775, 7
        %v4892 = vrot.slane %v4776, 1
        %v4893 = vrot.slane %v4776, 2
        %v4894 = vrot.slane %v4776, 3
        %v4895 = vrot.slane %v4776, 4
        %v4896 = vrot.slane %v4776, 5
        %v4897 = vrot.slane %v4776, 6
        %v4898 = vrot.slane %v4776, 7
        %v4899 = vrot.slane %v4777, 1
        %v4900 = vrot.slane %v4777, 2
        %v4901 = vrot.slane %v4777, 3
        %v4902 = vrot.slane %v4777, 4
        %v4903 = vrot.slane %v4777, 5
        %v4904 = vrot.slane %v4777, 6
        %v4905 = vrot.slane %v4777, 7
        %v5034 = vadd.f32 %v4074, %v4762
        %v5035 = vadd.f32 %v4075, %v4794
        %v5036 = vadd.f32 %v4076, %v4795
        %v5037 = vadd.f32 %v4077, %v4796
        %v5038 = vadd.f32 %v4078, %v4797
        %v5039 = vadd.f32 %v4079, %v4798
        %v5040 = vadd.f32 %v4080, %v4799
        %v5041 = vadd.f32 %v4081, %v4800
        %v5042 = vadd.f32 %v4082, %v4763
        %v5043 = vadd.f32 %v4083, %v4801
        %v5044 = vadd.f32 %v4084, %v4802
        %v5045 = vadd.f32 %v4085, %v4803
        %v5046 = vadd.f32 %v4086, %v4804
        %v5047 = vadd.f32 %v4087, %v4805
        %v5048 = vadd.f32 %v4088, %v4806
        %v5049 = vadd.f32 %v4089, %v4807
        %v5050 = vadd.f32 %v4090, %v4764
        %v5051 = vadd.f32 %v4091, %v4808
        %v5052 = vadd.f32 %v4092, %v4809
        %v5053 = vadd.f32 %v4093, %v4810
        %v5054 = vadd.f32 %v4094, %v4811
        %v5055 = vadd.f32 %v4095, %v4812
        %v5056 = vadd.f32 %v4096, %v4813
        %v5057 = vadd.f32 %v4097, %v4814
        %v5058 = vadd.f32 %v4098, %v4765
        %v5059 = vadd.f32 %v4099, %v4815
        %v5060 = vadd.f32 %v4100, %v4816
        %v5061 = vadd.f32 %v4101, %v4817
        %v5062 = vadd.f32 %v4102, %v4818
        %v5063 = vadd.f32 %v4103, %v4819
        %v5064 = vadd.f32 %v4104, %v4820
        %v5065 = vadd.f32 %v4105, %v4821
        %v5066 = vadd.f32 %v4106, %v4766
        %v5067 = vadd.f32 %v4107, %v4822
        %v5068 = vadd.f32 %v4108, %v4823
        %v5069 = vadd.f32 %v4109, %v4824
        %v5070 = vadd.f32 %v4110, %v4825
        %v5071 = vadd.f32 %v4111, %v4826
        %v5072 = vadd.f32 %v4112, %v4827
        %v5073 = vadd.f32 %v4113, %v4828
        %v5074 = vadd.f32 %v4114, %v4767
        %v5075 = vadd.f32 %v4115, %v4829
        %v5076 = vadd.f32 %v4116, %v4830
        %v5077 = vadd.f32 %v4117, %v4831
        %v5078 = vadd.f32 %v4118, %v4832
        %v5079 = vadd.f32 %v4119, %v4833
        %v5080 = vadd.f32 %v4120, %v4834
        %v5081 = vadd.f32 %v4121, %v4835
        %v5082 = vadd.f32 %v4122, %v4768
        %v5083 = vadd.f32 %v4123, %v4836
        %v5084 = vadd.f32 %v4124, %v4837
        %v5085 = vadd.f32 %v4125, %v4838
        %v5086 = vadd.f32 %v4126, %v4839
        %v5087 = vadd.f32 %v4127, %v4840
        %v5088 = vadd.f32 %v4128, %v4841
        %v5089 = vadd.f32 %v4129, %v4842
        %v5090 = vadd.f32 %v4130, %v4769
        %v5091 = vadd.f32 %v4131, %v4843
        %v5092 = vadd.f32 %v4132, %v4844
        %v5093 = vadd.f32 %v4133, %v4845
        %v5094 = vadd.f32 %v4134, %v4846
        %v5095 = vadd.f32 %v4135, %v4847
        %v5096 = vadd.f32 %v4136, %v4848
        %v5097 = vadd.f32 %v4137, %v4849
        %v5098 = vadd.f32 %v4138, %v4770
        %v5099 = vadd.f32 %v4139, %v4850
        %v5100 = vadd.f32 %v4140, %v4851
        %v5101 = vadd.f32 %v4141, %v4852
        %v5102 = vadd.f32 %v4142, %v4853
        %v5103 = vadd.f32 %v4143, %v4854
        %v5104 = vadd.f32 %v4144, %v4855
        %v5105 = vadd.f32 %v4145, %v4856
        %v5106 = vadd.f32 %v4146, %v4771
        %v5107 = vadd.f32 %v4147, %v4857
        %v5108 = vadd.f32 %v4148, %v4858
        %v5109 = vadd.f32 %v4149, %v4859
        %v5110 = vadd.f32 %v4150, %v4860
        %v5111 = vadd.f32 %v4151, %v4861
        %v5112 = vadd.f32 %v4152, %v4862
        %v5113 = vadd.f32 %v4153, %v4863
        %v5114 = vadd.f32 %v4154, %v4772
        %v5115 = vadd.f32 %v4155, %v4864
        %v5116 = vadd.f32 %v4156, %v4865
        %v5117 = vadd.f32 %v4157, %v4866
        %v5118 = vadd.f32 %v4158, %v4867
        %v5119 = vadd.f32 %v4159, %v4868
        %v5120 = vadd.f32 %v4160, %v4869
        %v5121 = vadd.f32 %v4161, %v4870
        %v5122 = vadd.f32 %v4162, %v4773
        %v5123 = vadd.f32 %v4163, %v4871
        %v5124 = vadd.f32 %v4164, %v4872
        %v5125 = vadd.f32 %v4165, %v4873
        %v5126 = vadd.f32 %v4166, %v4874
        %v5127 = vadd.f32 %v4167, %v4875
        %v5128 = vadd.f32 %v4168, %v4876
        %v5129 = vadd.f32 %v4169, %v4877
        %v5130 = vadd.f32 %v4170, %v4774
        %v5131 = vadd.f32 %v4171, %v4878
        %v5132 = vadd.f32 %v4172, %v4879
        %v5133 = vadd.f32 %v4173, %v4880
        %v5134 = vadd.f32 %v4174, %v4881
        %v5135 = vadd.f32 %v4175, %v4882
        %v5136 = vadd.f32 %v4176, %v4883
        %v5137 = vadd.f32 %v4177, %v4884
        %v5138 = vadd.f32 %v4178, %v4775
        %v5139 = vadd.f32 %v4179, %v4885
        %v5140 = vadd.f32 %v4180, %v4886
        %v5141 = vadd.f32 %v4181, %v4887
        %v5142 = vadd.f32 %v4182, %v4888
        %v5143 = vadd.f32 %v4183, %v4889
        %v5144 = vadd.f32 %v4184, %v4890
        %v5145 = vadd.f32 %v4185, %v4891
        %v5146 = vadd.f32 %v4186, %v4776
        %v5147 = vadd.f32 %v4187, %v4892
        %v5148 = vadd.f32 %v4188, %v4893
        %v5149 = vadd.f32 %v4189, %v4894
        %v5150 = vadd.f32 %v4190, %v4895
        %v5151 = vadd.f32 %v4191, %v4896
        %v5152 = vadd.f32 %v4192, %v4897
        %v5153 = vadd.f32 %v4193, %v4898
        %v5154 = vadd.f32 %v4194, %v4777
        %v5155 = vadd.f32 %v4195, %v4899
        %v5156 = vadd.f32 %v4196, %v4900
        %v5157 = vadd.f32 %v4197, %v4901
        %v5158 = vadd.f32 %v4198, %v4902
        %v5159 = vadd.f32 %v4199, %v4903
        %v5160 = vadd.f32 %v4200, %v4904
        %v5161 = vadd.f32 %v4201, %v4905
        %v5162 = vld [vmem:[%s192 + $0x5] sm:$0x1]
        %v5163 = vld [vmem:[%s192 + $0x15] sm:$0x1]
        %v5164 = vld [vmem:[%s192 + $0x25] sm:$0x1]
        %v5165 = vld [vmem:[%s192 + $0x35] sm:$0x1]
        %v5166 = vld [vmem:[%s192 + $0x45] sm:$0x1]
        %v5167 = vld [vmem:[%s192 + $0x55] sm:$0x1]
        %v5168 = vld [vmem:[%s192 + $0x65] sm:$0x1]
        %v5169 = vld [vmem:[%s192 + $0x75] sm:$0x1]
        %v5170 = vld [vmem:[%s192 + $0x85] sm:$0x1]
        %v5171 = vld [vmem:[%s192 + $0x95] sm:$0x1]
        %v5172 = vld [vmem:[%s192 + $0xa5] sm:$0x1]
        %v5173 = vld [vmem:[%s192 + $0xb5] sm:$0x1]
        %v5174 = vld [vmem:[%s192 + $0xc5] sm:$0x1]
        %v5175 = vld [vmem:[%s192 + $0xd5] sm:$0x1]
        %v5176 = vld [vmem:[%s192 + $0xe5] sm:$0x1]
        %v5177 = vld [vmem:[%s192 + $0xf5] sm:$0x1]
        %v5178 = vld [vmem:[%s192 + $0x105] sm:$0x1]
        %v5179 = vld [vmem:[%s192 + $0x115] sm:$0x1]
        %v5180 = vld [vmem:[%s192 + $0x125] sm:$0x1]
        %v5181 = vld [vmem:[%s192 + $0x135] sm:$0x1]
        %v5182 = vld [vmem:[%s192 + $0x145] sm:$0x1]
        %v5183 = vld [vmem:[%s192 + $0x155] sm:$0x1]
        %v5184 = vld [vmem:[%s192 + $0x165] sm:$0x1]
        %v5185 = vld [vmem:[%s192 + $0x175] sm:$0x1]
        %v5186 = vld [vmem:[%s192 + $0x185] sm:$0x1]
        %v5187 = vld [vmem:[%s192 + $0x195] sm:$0x1]
        %v5188 = vld [vmem:[%s192 + $0x1a5] sm:$0x1]
        %v5189 = vld [vmem:[%s192 + $0x1b5] sm:$0x1]
        %v5190 = vld [vmem:[%s192 + $0x1c5] sm:$0x1]
        %v5191 = vld [vmem:[%s192 + $0x1d5] sm:$0x1]
        %v5192 = vld [vmem:[%s192 + $0x1e5] sm:$0x1]
        %v5193 = vld [vmem:[%s192 + $0x1f5] sm:$0x1]
        %v5194 = vld [vmem:[%s192 + $0x205] sm:$0x1]
        %v5195 = vld [vmem:[%s192 + $0x215] sm:$0x1]
        %v5196 = vld [vmem:[%s192 + $0x225] sm:$0x1]
        %v5197 = vld [vmem:[%s192 + $0x235] sm:$0x1]
        %v5198 = vld [vmem:[%s192 + $0x245] sm:$0x1]
        %v5199 = vld [vmem:[%s192 + $0x255] sm:$0x1]
        %v5200 = vld [vmem:[%s192 + $0x265] sm:$0x1]
        %v5201 = vld [vmem:[%s192 + $0x275] sm:$0x1]
        %v5202 = vld [vmem:[%s192 + $0x285] sm:$0x1]
        %v5203 = vld [vmem:[%s192 + $0x295] sm:$0x1]
        %v5204 = vld [vmem:[%s192 + $0x2a5] sm:$0x1]
        %v5205 = vld [vmem:[%s192 + $0x2b5] sm:$0x1]
        %v5206 = vld [vmem:[%s192 + $0x2c5] sm:$0x1]
        %v5207 = vld [vmem:[%s192 + $0x2d5] sm:$0x1]
        %v5208 = vld [vmem:[%s192 + $0x2e5] sm:$0x1]
        %v5209 = vld [vmem:[%s192 + $0x2f5] sm:$0x1]
        %v5210 = vld [vmem:[%s192 + $0x305] sm:$0x1]
        %v5211 = vld [vmem:[%s192 + $0x315] sm:$0x1]
        %v5212 = vld [vmem:[%s192 + $0x325] sm:$0x1]
        %v5213 = vld [vmem:[%s192 + $0x335] sm:$0x1]
        %v5214 = vld [vmem:[%s192 + $0x345] sm:$0x1]
        %v5215 = vld [vmem:[%s192 + $0x355] sm:$0x1]
        %v5216 = vld [vmem:[%s192 + $0x365] sm:$0x1]
        %v5217 = vld [vmem:[%s192 + $0x375] sm:$0x1]
        %v5218 = vld [vmem:[%s192 + $0x385] sm:$0x1]
        %v5219 = vld [vmem:[%s192 + $0x395] sm:$0x1]
        %v5220 = vld [vmem:[%s192 + $0x3a5] sm:$0x1]
        %v5221 = vld [vmem:[%s192 + $0x3b5] sm:$0x1]
        %v5222 = vld [vmem:[%s192 + $0x3c5] sm:$0x1]
        %v5223 = vld [vmem:[%s192 + $0x3d5] sm:$0x1]
        %v5224 = vld [vmem:[%s192 + $0x3e5] sm:$0x1]
        %v5225 = vld [vmem:[%s192 + $0x3f5] sm:$0x1]
        %v5226 = vld [vmem:[%s192 + $0x405] sm:$0x1]
        %v5227 = vld [vmem:[%s192 + $0x415] sm:$0x1]
        %v5228 = vld [vmem:[%s192 + $0x425] sm:$0x1]
        %v5229 = vld [vmem:[%s192 + $0x435] sm:$0x1]
        %v5230 = vld [vmem:[%s192 + $0x445] sm:$0x1]
        %v5231 = vld [vmem:[%s192 + $0x455] sm:$0x1]
        %v5232 = vld [vmem:[%s192 + $0x465] sm:$0x1]
        %v5233 = vld [vmem:[%s192 + $0x475] sm:$0x1]
        %v5234 = vld [vmem:[%s192 + $0x485] sm:$0x1]
        %v5235 = vld [vmem:[%s192 + $0x495] sm:$0x1]
        %v5236 = vld [vmem:[%s192 + $0x4a5] sm:$0x1]
        %v5237 = vld [vmem:[%s192 + $0x4b5] sm:$0x1]
        %v5238 = vld [vmem:[%s192 + $0x4c5] sm:$0x1]
        %v5239 = vld [vmem:[%s192 + $0x4d5] sm:$0x1]
        %v5240 = vld [vmem:[%s192 + $0x4e5] sm:$0x1]
        %v5241 = vld [vmem:[%s192 + $0x4f5] sm:$0x1]
        %v5242 = vld [vmem:[%s192 + $0x505] sm:$0x1]
        %v5243 = vld [vmem:[%s192 + $0x515] sm:$0x1]
        %v5244 = vld [vmem:[%s192 + $0x525] sm:$0x1]
        %v5245 = vld [vmem:[%s192 + $0x535] sm:$0x1]
        %v5246 = vld [vmem:[%s192 + $0x545] sm:$0x1]
        %v5247 = vld [vmem:[%s192 + $0x555] sm:$0x1]
        %v5248 = vld [vmem:[%s192 + $0x565] sm:$0x1]
        %v5249 = vld [vmem:[%s192 + $0x575] sm:$0x1]
        %v5250 = vld [vmem:[%s192 + $0x585] sm:$0x1]
        %v5251 = vld [vmem:[%s192 + $0x595] sm:$0x1]
        %v5252 = vld [vmem:[%s192 + $0x5a5] sm:$0x1]
        %v5253 = vld [vmem:[%s192 + $0x5b5] sm:$0x1]
        %v5254 = vld [vmem:[%s192 + $0x5c5] sm:$0x1]
        %v5255 = vld [vmem:[%s192 + $0x5d5] sm:$0x1]
        %v5256 = vld [vmem:[%s192 + $0x5e5] sm:$0x1]
        %v5257 = vld [vmem:[%s192 + $0x5f5] sm:$0x1]
        %v5258 = vld [vmem:[%s192 + $0x605] sm:$0x1]
        %v5259 = vld [vmem:[%s192 + $0x615] sm:$0x1]
        %v5260 = vld [vmem:[%s192 + $0x625] sm:$0x1]
        %v5261 = vld [vmem:[%s192 + $0x635] sm:$0x1]
        %v5262 = vld [vmem:[%s192 + $0x645] sm:$0x1]
        %v5263 = vld [vmem:[%s192 + $0x655] sm:$0x1]
        %v5264 = vld [vmem:[%s192 + $0x665] sm:$0x1]
        %v5265 = vld [vmem:[%s192 + $0x675] sm:$0x1]
        %v5266 = vld [vmem:[%s192 + $0x685] sm:$0x1]
        %v5267 = vld [vmem:[%s192 + $0x695] sm:$0x1]
        %v5268 = vld [vmem:[%s192 + $0x6a5] sm:$0x1]
        %v5269 = vld [vmem:[%s192 + $0x6b5] sm:$0x1]
        %v5270 = vld [vmem:[%s192 + $0x6c5] sm:$0x1]
        %v5271 = vld [vmem:[%s192 + $0x6d5] sm:$0x1]
        %v5272 = vld [vmem:[%s192 + $0x6e5] sm:$0x1]
        %v5273 = vld [vmem:[%s192 + $0x6f5] sm:$0x1]
        %v5274 = vld [vmem:[%s192 + $0x705] sm:$0x1]
        %v5275 = vld [vmem:[%s192 + $0x715] sm:$0x1]
        %v5276 = vld [vmem:[%s192 + $0x725] sm:$0x1]
        %v5277 = vld [vmem:[%s192 + $0x735] sm:$0x1]
        %v5278 = vld [vmem:[%s192 + $0x745] sm:$0x1]
        %v5279 = vld [vmem:[%s192 + $0x755] sm:$0x1]
        %v5280 = vld [vmem:[%s192 + $0x765] sm:$0x1]
        %v5281 = vld [vmem:[%s192 + $0x775] sm:$0x1]
        %v5282 = vld [vmem:[%s192 + $0x785] sm:$0x1]
        %v5283 = vld [vmem:[%s192 + $0x795] sm:$0x1]
        %v5284 = vld [vmem:[%s192 + $0x7a5] sm:$0x1]
        %v5285 = vld [vmem:[%s192 + $0x7b5] sm:$0x1]
        %v5286 = vld [vmem:[%s192 + $0x7c5] sm:$0x1]
        %v5287 = vld [vmem:[%s192 + $0x7d5] sm:$0x1]
        %v5288 = vld [vmem:[%s192 + $0x7e5] sm:$0x1]
        %v5289 = vld [vmem:[%s192 + $0x7f5] sm:$0x1]
        %5290 = vset.pattern.permute.xlu0 5
        %5291 = vperm.xlu0 %5290, %v323
        %v5292 = vpop.permute.xlu0 %5291
        %5294 = vset.pattern.permute.xlu0 5
        %5295 = vperm.xlu0 %5294, %v324
        %v5296 = vpop.permute.xlu0 %5295
        %5298 = vset.pattern.permute.xlu0 5
        %5299 = vperm.xlu0 %5298, %v325
        %v5300 = vpop.permute.xlu0 %5299
        %5302 = vset.pattern.permute.xlu0 5
        %5303 = vperm.xlu0 %5302, %v326
        %v5304 = vpop.permute.xlu0 %5303
        %5306 = vset.pattern.permute.xlu0 5
        %5307 = vperm.xlu0 %5306, %v327
        %v5308 = vpop.permute.xlu0 %5307
        %5310 = vset.pattern.permute.xlu0 5
        %5311 = vperm.xlu0 %5310, %v328
        %v5312 = vpop.permute.xlu0 %5311
        %5314 = vset.pattern.permute.xlu0 5
        %5315 = vperm.xlu0 %5314, %v329
        %v5316 = vpop.permute.xlu0 %5315
        %5318 = vset.pattern.permute.xlu0 5
        %5319 = vperm.xlu0 %5318, %v330
        %v5320 = vpop.permute.xlu0 %5319
        %5322 = vset.pattern.permute.xlu0 5
        %5323 = vperm.xlu0 %5322, %v331
        %v5324 = vpop.permute.xlu0 %5323
        %5326 = vset.pattern.permute.xlu0 5
        %5327 = vperm.xlu0 %5326, %v332
        %v5328 = vpop.permute.xlu0 %5327
        %5330 = vset.pattern.permute.xlu0 5
        %5331 = vperm.xlu0 %5330, %v333
        %v5332 = vpop.permute.xlu0 %5331
        %5334 = vset.pattern.permute.xlu0 5
        %5335 = vperm.xlu0 %5334, %v334
        %v5336 = vpop.permute.xlu0 %5335
        %5338 = vset.pattern.permute.xlu0 5
        %5339 = vperm.xlu0 %5338, %v335
        %v5340 = vpop.permute.xlu0 %5339
        %5342 = vset.pattern.permute.xlu0 5
        %5343 = vperm.xlu0 %5342, %v336
        %v5344 = vpop.permute.xlu0 %5343
        %5346 = vset.pattern.permute.xlu0 5
        %5347 = vperm.xlu0 %5346, %v337
        %v5348 = vpop.permute.xlu0 %5347
        %5350 = vset.pattern.permute.xlu0 5
        %5351 = vperm.xlu0 %5350, %v338
        %v5352 = vpop.permute.xlu0 %5351
        %v5482 = vrot.slane %v5163, 7
        %v5483 = vsel %vm676, %v5482, %v5162
        %v5484 = vrot.slane %v5164, 6
        %v5485 = vsel %vm679, %v5484, %v5483
        %v5486 = vrot.slane %v5165, 5
        %v5487 = vsel %vm682, %v5486, %v5485
        %v5488 = vrot.slane %v5166, 4
        %v5489 = vsel %vm685, %v5488, %v5487
        %v5490 = vrot.slane %v5167, 3
        %v5491 = vsel %vm688, %v5490, %v5489
        %v5492 = vrot.slane %v5168, 2
        %v5493 = vsel %vm691, %v5492, %v5491
        %v5494 = vrot.slane %v5169, 1
        %v5495 = vsel %vm694, %v5494, %v5493
        %v5496 = vrot.slane %v5171, 7
        %v5497 = vsel %vm676, %v5496, %v5170
        %v5498 = vrot.slane %v5172, 6
        %v5499 = vsel %vm679, %v5498, %v5497
        %v5500 = vrot.slane %v5173, 5
        %v5501 = vsel %vm682, %v5500, %v5499
        %v5502 = vrot.slane %v5174, 4
        %v5503 = vsel %vm685, %v5502, %v5501
        %v5504 = vrot.slane %v5175, 3
        %v5505 = vsel %vm688, %v5504, %v5503
        %v5506 = vrot.slane %v5176, 2
        %v5507 = vsel %vm691, %v5506, %v5505
        %v5508 = vrot.slane %v5177, 1
        %v5509 = vsel %vm694, %v5508, %v5507
        %v5510 = vrot.slane %v5179, 7
        %v5511 = vsel %vm676, %v5510, %v5178
        %v5512 = vrot.slane %v5180, 6
        %v5513 = vsel %vm679, %v5512, %v5511
        %v5514 = vrot.slane %v5181, 5
        %v5515 = vsel %vm682, %v5514, %v5513
        %v5516 = vrot.slane %v5182, 4
        %v5517 = vsel %vm685, %v5516, %v5515
        %v5518 = vrot.slane %v5183, 3
        %v5519 = vsel %vm688, %v5518, %v5517
        %v5520 = vrot.slane %v5184, 2
        %v5521 = vsel %vm691, %v5520, %v5519
        %v5522 = vrot.slane %v5185, 1
        %v5523 = vsel %vm694, %v5522, %v5521
        %v5524 = vrot.slane %v5187, 7
        %v5525 = vsel %vm676, %v5524, %v5186
        %v5526 = vrot.slane %v5188, 6
        %v5527 = vsel %vm679, %v5526, %v5525
        %v5528 = vrot.slane %v5189, 5
        %v5529 = vsel %vm682, %v5528, %v5527
        %v5530 = vrot.slane %v5190, 4
        %v5531 = vsel %vm685, %v5530, %v5529
        %v5532 = vrot.slane %v5191, 3
        %v5533 = vsel %vm688, %v5532, %v5531
        %v5534 = vrot.slane %v5192, 2
        %v5535 = vsel %vm691, %v5534, %v5533
        %v5536 = vrot.slane %v5193, 1
        %v5537 = vsel %vm694, %v5536, %v5535
        %v5538 = vrot.slane %v5195, 7
        %v5539 = vsel %vm676, %v5538, %v5194
        %v5540 = vrot.slane %v5196, 6
        %v5541 = vsel %vm679, %v5540, %v5539
        %v5542 = vrot.slane %v5197, 5
        %v5543 = vsel %vm682, %v5542, %v5541
        %v5544 = vrot.slane %v5198, 4
        %v5545 = vsel %vm685, %v5544, %v5543
        %v5546 = vrot.slane %v5199, 3
        %v5547 = vsel %vm688, %v5546, %v5545
        %v5548 = vrot.slane %v5200, 2
        %v5549 = vsel %vm691, %v5548, %v5547
        %v5550 = vrot.slane %v5201, 1
        %v5551 = vsel %vm694, %v5550, %v5549
        %v5552 = vrot.slane %v5203, 7
        %v5553 = vsel %vm676, %v5552, %v5202
        %v5554 = vrot.slane %v5204, 6
        %v5555 = vsel %vm679, %v5554, %v5553
        %v5556 = vrot.slane %v5205, 5
        %v5557 = vsel %vm682, %v5556, %v5555
        %v5558 = vrot.slane %v5206, 4
        %v5559 = vsel %vm685, %v5558, %v5557
        %v5560 = vrot.slane %v5207, 3
        %v5561 = vsel %vm688, %v5560, %v5559
        %v5562 = vrot.slane %v5208, 2
        %v5563 = vsel %vm691, %v5562, %v5561
        %v5564 = vrot.slane %v5209, 1
        %v5565 = vsel %vm694, %v5564, %v5563
        %v5566 = vrot.slane %v5211, 7
        %v5567 = vsel %vm676, %v5566, %v5210
        %v5568 = vrot.slane %v5212, 6
        %v5569 = vsel %vm679, %v5568, %v5567
        %v5570 = vrot.slane %v5213, 5
        %v5571 = vsel %vm682, %v5570, %v5569
        %v5572 = vrot.slane %v5214, 4
        %v5573 = vsel %vm685, %v5572, %v5571
        %v5574 = vrot.slane %v5215, 3
        %v5575 = vsel %vm688, %v5574, %v5573
        %v5576 = vrot.slane %v5216, 2
        %v5577 = vsel %vm691, %v5576, %v5575
        %v5578 = vrot.slane %v5217, 1
        %v5579 = vsel %vm694, %v5578, %v5577
        %v5580 = vrot.slane %v5219, 7
        %v5581 = vsel %vm676, %v5580, %v5218
        %v5582 = vrot.slane %v5220, 6
        %v5583 = vsel %vm679, %v5582, %v5581
        %v5584 = vrot.slane %v5221, 5
        %v5585 = vsel %vm682, %v5584, %v5583
        %v5586 = vrot.slane %v5222, 4
        %v5587 = vsel %vm685, %v5586, %v5585
        %v5588 = vrot.slane %v5223, 3
        %v5589 = vsel %vm688, %v5588, %v5587
        %v5590 = vrot.slane %v5224, 2
        %v5591 = vsel %vm691, %v5590, %v5589
        %v5592 = vrot.slane %v5225, 1
        %v5593 = vsel %vm694, %v5592, %v5591
        %v5594 = vrot.slane %v5227, 7
        %v5595 = vsel %vm676, %v5594, %v5226
        %v5596 = vrot.slane %v5228, 6
        %v5597 = vsel %vm679, %v5596, %v5595
        %v5598 = vrot.slane %v5229, 5
        %v5599 = vsel %vm682, %v5598, %v5597
        %v5600 = vrot.slane %v5230, 4
        %v5601 = vsel %vm685, %v5600, %v5599
        %v5602 = vrot.slane %v5231, 3
        %v5603 = vsel %vm688, %v5602, %v5601
        %v5604 = vrot.slane %v5232, 2
        %v5605 = vsel %vm691, %v5604, %v5603
        %v5606 = vrot.slane %v5233, 1
        %v5607 = vsel %vm694, %v5606, %v5605
        %v5608 = vrot.slane %v5235, 7
        %v5609 = vsel %vm676, %v5608, %v5234
        %v5610 = vrot.slane %v5236, 6
        %v5611 = vsel %vm679, %v5610, %v5609
        %v5612 = vrot.slane %v5237, 5
        %v5613 = vsel %vm682, %v5612, %v5611
        %v5614 = vrot.slane %v5238, 4
        %v5615 = vsel %vm685, %v5614, %v5613
        %v5616 = vrot.slane %v5239, 3
        %v5617 = vsel %vm688, %v5616, %v5615
        %v5618 = vrot.slane %v5240, 2
        %v5619 = vsel %vm691, %v5618, %v5617
        %v5620 = vrot.slane %v5241, 1
        %v5621 = vsel %vm694, %v5620, %v5619
        %v5622 = vrot.slane %v5243, 7
        %v5623 = vsel %vm676, %v5622, %v5242
        %v5624 = vrot.slane %v5244, 6
        %v5625 = vsel %vm679, %v5624, %v5623
        %v5626 = vrot.slane %v5245, 5
        %v5627 = vsel %vm682, %v5626, %v5625
        %v5628 = vrot.slane %v5246, 4
        %v5629 = vsel %vm685, %v5628, %v5627
        %v5630 = vrot.slane %v5247, 3
        %v5631 = vsel %vm688, %v5630, %v5629
        %v5632 = vrot.slane %v5248, 2
        %v5633 = vsel %vm691, %v5632, %v5631
        %v5634 = vrot.slane %v5249, 1
        %v5635 = vsel %vm694, %v5634, %v5633
        %v5636 = vrot.slane %v5251, 7
        %v5637 = vsel %vm676, %v5636, %v5250
        %v5638 = vrot.slane %v5252, 6
        %v5639 = vsel %vm679, %v5638, %v5637
        %v5640 = vrot.slane %v5253, 5
        %v5641 = vsel %vm682, %v5640, %v5639
        %v5642 = vrot.slane %v5254, 4
        %v5643 = vsel %vm685, %v5642, %v5641
        %v5644 = vrot.slane %v5255, 3
        %v5645 = vsel %vm688, %v5644, %v5643
        %v5646 = vrot.slane %v5256, 2
        %v5647 = vsel %vm691, %v5646, %v5645
        %v5648 = vrot.slane %v5257, 1
        %v5649 = vsel %vm694, %v5648, %v5647
        %v5650 = vrot.slane %v5259, 7
        %v5651 = vsel %vm676, %v5650, %v5258
        %v5652 = vrot.slane %v5260, 6
        %v5653 = vsel %vm679, %v5652, %v5651
        %v5654 = vrot.slane %v5261, 5
        %v5655 = vsel %vm682, %v5654, %v5653
        %v5656 = vrot.slane %v5262, 4
        %v5657 = vsel %vm685, %v5656, %v5655
        %v5658 = vrot.slane %v5263, 3
        %v5659 = vsel %vm688, %v5658, %v5657
        %v5660 = vrot.slane %v5264, 2
        %v5661 = vsel %vm691, %v5660, %v5659
        %v5662 = vrot.slane %v5265, 1
        %v5663 = vsel %vm694, %v5662, %v5661
        %v5664 = vrot.slane %v5267, 7
        %v5665 = vsel %vm676, %v5664, %v5266
        %v5666 = vrot.slane %v5268, 6
        %v5667 = vsel %vm679, %v5666, %v5665
        %v5668 = vrot.slane %v5269, 5
        %v5669 = vsel %vm682, %v5668, %v5667
        %v5670 = vrot.slane %v5270, 4
        %v5671 = vsel %vm685, %v5670, %v5669
        %v5672 = vrot.slane %v5271, 3
        %v5673 = vsel %vm688, %v5672, %v5671
        %v5674 = vrot.slane %v5272, 2
        %v5675 = vsel %vm691, %v5674, %v5673
        %v5676 = vrot.slane %v5273, 1
        %v5677 = vsel %vm694, %v5676, %v5675
        %v5678 = vrot.slane %v5275, 7
        %v5679 = vsel %vm676, %v5678, %v5274
        %v5680 = vrot.slane %v5276, 6
        %v5681 = vsel %vm679, %v5680, %v5679
        %v5682 = vrot.slane %v5277, 5
        %v5683 = vsel %vm682, %v5682, %v5681
        %v5684 = vrot.slane %v5278, 4
        %v5685 = vsel %vm685, %v5684, %v5683
        %v5686 = vrot.slane %v5279, 3
        %v5687 = vsel %vm688, %v5686, %v5685
        %v5688 = vrot.slane %v5280, 2
        %v5689 = vsel %vm691, %v5688, %v5687
        %v5690 = vrot.slane %v5281, 1
        %v5691 = vsel %vm694, %v5690, %v5689
        %v5692 = vrot.slane %v5283, 7
        %v5693 = vsel %vm676, %v5692, %v5282
        %v5694 = vrot.slane %v5284, 6
        %v5695 = vsel %vm679, %v5694, %v5693
        %v5696 = vrot.slane %v5285, 5
        %v5697 = vsel %vm682, %v5696, %v5695
        %v5698 = vrot.slane %v5286, 4
        %v5699 = vsel %vm685, %v5698, %v5697
        %v5700 = vrot.slane %v5287, 3
        %v5701 = vsel %vm688, %v5700, %v5699
        %v5702 = vrot.slane %v5288, 2
        %v5703 = vsel %vm691, %v5702, %v5701
        %v5704 = vrot.slane %v5289, 1
        %v5705 = vsel %vm694, %v5704, %v5703
        %v5722 = vmul.f32 %v5292, %v5495
        %v5723 = vmul.f32 %v5296, %v5509
        %v5724 = vmul.f32 %v5300, %v5523
        %v5725 = vmul.f32 %v5304, %v5537
        %v5726 = vmul.f32 %v5308, %v5551
        %v5727 = vmul.f32 %v5312, %v5565
        %v5728 = vmul.f32 %v5316, %v5579
        %v5729 = vmul.f32 %v5320, %v5593
        %v5730 = vmul.f32 %v5324, %v5607
        %v5731 = vmul.f32 %v5328, %v5621
        %v5732 = vmul.f32 %v5332, %v5635
        %v5733 = vmul.f32 %v5336, %v5649
        %v5734 = vmul.f32 %v5340, %v5663
        %v5735 = vmul.f32 %v5344, %v5677
        %v5736 = vmul.f32 %v5348, %v5691
        %v5737 = vmul.f32 %v5352, %v5705
        %v5754 = vrot.slane %v5722, 1
        %v5755 = vrot.slane %v5722, 2
        %v5756 = vrot.slane %v5722, 3
        %v5757 = vrot.slane %v5722, 4
        %v5758 = vrot.slane %v5722, 5
        %v5759 = vrot.slane %v5722, 6
        %v5760 = vrot.slane %v5722, 7
        %v5761 = vrot.slane %v5723, 1
        %v5762 = vrot.slane %v5723, 2
        %v5763 = vrot.slane %v5723, 3
        %v5764 = vrot.slane %v5723, 4
        %v5765 = vrot.slane %v5723, 5
        %v5766 = vrot.slane %v5723, 6
        %v5767 = vrot.slane %v5723, 7
        %v5768 = vrot.slane %v5724, 1
        %v5769 = vrot.slane %v5724, 2
        %v5770 = vrot.slane %v5724, 3
        %v5771 = vrot.slane %v5724, 4
        %v5772 = vrot.slane %v5724, 5
        %v5773 = vrot.slane %v5724, 6
        %v5774 = vrot.slane %v5724, 7
        %v5775 = vrot.slane %v5725, 1
        %v5776 = vrot.slane %v5725, 2
        %v5777 = vrot.slane %v5725, 3
        %v5778 = vrot.slane %v5725, 4
        %v5779 = vrot.slane %v5725, 5
        %v5780 = vrot.slane %v5725, 6
        %v5781 = vrot.slane %v5725, 7
        %v5782 = vrot.slane %v5726, 1
        %v5783 = vrot.slane %v5726, 2
        %v5784 = vrot.slane %v5726, 3
        %v5785 = vrot.slane %v5726, 4
        %v5786 = vrot.slane %v5726, 5
        %v5787 = vrot.slane %v5726, 6
        %v5788 = vrot.slane %v5726, 7
        %v5789 = vrot.slane %v5727, 1
        %v5790 = vrot.slane %v5727, 2
        %v5791 = vrot.slane %v5727, 3
        %v5792 = vrot.slane %v5727, 4
        %v5793 = vrot.slane %v5727, 5
        %v5794 = vrot.slane %v5727, 6
        %v5795 = vrot.slane %v5727, 7
        %v5796 = vrot.slane %v5728, 1
        %v5797 = vrot.slane %v5728, 2
        %v5798 = vrot.slane %v5728, 3
        %v5799 = vrot.slane %v5728, 4
        %v5800 = vrot.slane %v5728, 5
        %v5801 = vrot.slane %v5728, 6
        %v5802 = vrot.slane %v5728, 7
        %v5803 = vrot.slane %v5729, 1
        %v5804 = vrot.slane %v5729, 2
        %v5805 = vrot.slane %v5729, 3
        %v5806 = vrot.slane %v5729, 4
        %v5807 = vrot.slane %v5729, 5
        %v5808 = vrot.slane %v5729, 6
        %v5809 = vrot.slane %v5729, 7
        %v5810 = vrot.slane %v5730, 1
        %v5811 = vrot.slane %v5730, 2
        %v5812 = vrot.slane %v5730, 3
        %v5813 = vrot.slane %v5730, 4
        %v5814 = vrot.slane %v5730, 5
        %v5815 = vrot.slane %v5730, 6
        %v5816 = vrot.slane %v5730, 7
        %v5817 = vrot.slane %v5731, 1
        %v5818 = vrot.slane %v5731, 2
        %v5819 = vrot.slane %v5731, 3
        %v5820 = vrot.slane %v5731, 4
        %v5821 = vrot.slane %v5731, 5
        %v5822 = vrot.slane %v5731, 6
        %v5823 = vrot.slane %v5731, 7
        %v5824 = vrot.slane %v5732, 1
        %v5825 = vrot.slane %v5732, 2
        %v5826 = vrot.slane %v5732, 3
        %v5827 = vrot.slane %v5732, 4
        %v5828 = vrot.slane %v5732, 5
        %v5829 = vrot.slane %v5732, 6
        %v5830 = vrot.slane %v5732, 7
        %v5831 = vrot.slane %v5733, 1
        %v5832 = vrot.slane %v5733, 2
        %v5833 = vrot.slane %v5733, 3
        %v5834 = vrot.slane %v5733, 4
        %v5835 = vrot.slane %v5733, 5
        %v5836 = vrot.slane %v5733, 6
        %v5837 = vrot.slane %v5733, 7
        %v5838 = vrot.slane %v5734, 1
        %v5839 = vrot.slane %v5734, 2
        %v5840 = vrot.slane %v5734, 3
        %v5841 = vrot.slane %v5734, 4
        %v5842 = vrot.slane %v5734, 5
        %v5843 = vrot.slane %v5734, 6
        %v5844 = vrot.slane %v5734, 7
        %v5845 = vrot.slane %v5735, 1
        %v5846 = vrot.slane %v5735, 2
        %v5847 = vrot.slane %v5735, 3
        %v5848 = vrot.slane %v5735, 4
        %v5849 = vrot.slane %v5735, 5
        %v5850 = vrot.slane %v5735, 6
        %v5851 = vrot.slane %v5735, 7
        %v5852 = vrot.slane %v5736, 1
        %v5853 = vrot.slane %v5736, 2
        %v5854 = vrot.slane %v5736, 3
        %v5855 = vrot.slane %v5736, 4
        %v5856 = vrot.slane %v5736, 5
        %v5857 = vrot.slane %v5736, 6
        %v5858 = vrot.slane %v5736, 7
        %v5859 = vrot.slane %v5737, 1
        %v5860 = vrot.slane %v5737, 2
        %v5861 = vrot.slane %v5737, 3
        %v5862 = vrot.slane %v5737, 4
        %v5863 = vrot.slane %v5737, 5
        %v5864 = vrot.slane %v5737, 6
        %v5865 = vrot.slane %v5737, 7
        %v5994 = vadd.f32 %v5034, %v5722
        %v5995 = vadd.f32 %v5035, %v5754
        %v5996 = vadd.f32 %v5036, %v5755
        %v5997 = vadd.f32 %v5037, %v5756
        %v5998 = vadd.f32 %v5038, %v5757
        %v5999 = vadd.f32 %v5039, %v5758
        %v6000 = vadd.f32 %v5040, %v5759
        %v6001 = vadd.f32 %v5041, %v5760
        %v6002 = vadd.f32 %v5042, %v5723
        %v6003 = vadd.f32 %v5043, %v5761
        %v6004 = vadd.f32 %v5044, %v5762
        %v6005 = vadd.f32 %v5045, %v5763
        %v6006 = vadd.f32 %v5046, %v5764
        %v6007 = vadd.f32 %v5047, %v5765
        %v6008 = vadd.f32 %v5048, %v5766
        %v6009 = vadd.f32 %v5049, %v5767
        %v6010 = vadd.f32 %v5050, %v5724
        %v6011 = vadd.f32 %v5051, %v5768
        %v6012 = vadd.f32 %v5052, %v5769
        %v6013 = vadd.f32 %v5053, %v5770
        %v6014 = vadd.f32 %v5054, %v5771
        %v6015 = vadd.f32 %v5055, %v5772
        %v6016 = vadd.f32 %v5056, %v5773
        %v6017 = vadd.f32 %v5057, %v5774
        %v6018 = vadd.f32 %v5058, %v5725
        %v6019 = vadd.f32 %v5059, %v5775
        %v6020 = vadd.f32 %v5060, %v5776
        %v6021 = vadd.f32 %v5061, %v5777
        %v6022 = vadd.f32 %v5062, %v5778
        %v6023 = vadd.f32 %v5063, %v5779
        %v6024 = vadd.f32 %v5064, %v5780
        %v6025 = vadd.f32 %v5065, %v5781
        %v6026 = vadd.f32 %v5066, %v5726
        %v6027 = vadd.f32 %v5067, %v5782
        %v6028 = vadd.f32 %v5068, %v5783
        %v6029 = vadd.f32 %v5069, %v5784
        %v6030 = vadd.f32 %v5070, %v5785
        %v6031 = vadd.f32 %v5071, %v5786
        %v6032 = vadd.f32 %v5072, %v5787
        %v6033 = vadd.f32 %v5073, %v5788
        %v6034 = vadd.f32 %v5074, %v5727
        %v6035 = vadd.f32 %v5075, %v5789
        %v6036 = vadd.f32 %v5076, %v5790
        %v6037 = vadd.f32 %v5077, %v5791
        %v6038 = vadd.f32 %v5078, %v5792
        %v6039 = vadd.f32 %v5079, %v5793
        %v6040 = vadd.f32 %v5080, %v5794
        %v6041 = vadd.f32 %v5081, %v5795
        %v6042 = vadd.f32 %v5082, %v5728
        %v6043 = vadd.f32 %v5083, %v5796
        %v6044 = vadd.f32 %v5084, %v5797
        %v6045 = vadd.f32 %v5085, %v5798
        %v6046 = vadd.f32 %v5086, %v5799
        %v6047 = vadd.f32 %v5087, %v5800
        %v6048 = vadd.f32 %v5088, %v5801
        %v6049 = vadd.f32 %v5089, %v5802
        %v6050 = vadd.f32 %v5090, %v5729
        %v6051 = vadd.f32 %v5091, %v5803
        %v6052 = vadd.f32 %v5092, %v5804
        %v6053 = vadd.f32 %v5093, %v5805
        %v6054 = vadd.f32 %v5094, %v5806
        %v6055 = vadd.f32 %v5095, %v5807
        %v6056 = vadd.f32 %v5096, %v5808
        %v6057 = vadd.f32 %v5097, %v5809
        %v6058 = vadd.f32 %v5098, %v5730
        %v6059 = vadd.f32 %v5099, %v5810
        %v6060 = vadd.f32 %v5100, %v5811
        %v6061 = vadd.f32 %v5101, %v5812
        %v6062 = vadd.f32 %v5102, %v5813
        %v6063 = vadd.f32 %v5103, %v5814
        %v6064 = vadd.f32 %v5104, %v5815
        %v6065 = vadd.f32 %v5105, %v5816
        %v6066 = vadd.f32 %v5106, %v5731
        %v6067 = vadd.f32 %v5107, %v5817
        %v6068 = vadd.f32 %v5108, %v5818
        %v6069 = vadd.f32 %v5109, %v5819
        %v6070 = vadd.f32 %v5110, %v5820
        %v6071 = vadd.f32 %v5111, %v5821
        %v6072 = vadd.f32 %v5112, %v5822
        %v6073 = vadd.f32 %v5113, %v5823
        %v6074 = vadd.f32 %v5114, %v5732
        %v6075 = vadd.f32 %v5115, %v5824
        %v6076 = vadd.f32 %v5116, %v5825
        %v6077 = vadd.f32 %v5117, %v5826
        %v6078 = vadd.f32 %v5118, %v5827
        %v6079 = vadd.f32 %v5119, %v5828
        %v6080 = vadd.f32 %v5120, %v5829
        %v6081 = vadd.f32 %v5121, %v5830
        %v6082 = vadd.f32 %v5122, %v5733
        %v6083 = vadd.f32 %v5123, %v5831
        %v6084 = vadd.f32 %v5124, %v5832
        %v6085 = vadd.f32 %v5125, %v5833
        %v6086 = vadd.f32 %v5126, %v5834
        %v6087 = vadd.f32 %v5127, %v5835
        %v6088 = vadd.f32 %v5128, %v5836
        %v6089 = vadd.f32 %v5129, %v5837
        %v6090 = vadd.f32 %v5130, %v5734
        %v6091 = vadd.f32 %v5131, %v5838
        %v6092 = vadd.f32 %v5132, %v5839
        %v6093 = vadd.f32 %v5133, %v5840
        %v6094 = vadd.f32 %v5134, %v5841
        %v6095 = vadd.f32 %v5135, %v5842
        %v6096 = vadd.f32 %v5136, %v5843
        %v6097 = vadd.f32 %v5137, %v5844
        %v6098 = vadd.f32 %v5138, %v5735
        %v6099 = vadd.f32 %v5139, %v5845
        %v6100 = vadd.f32 %v5140, %v5846
        %v6101 = vadd.f32 %v5141, %v5847
        %v6102 = vadd.f32 %v5142, %v5848
        %v6103 = vadd.f32 %v5143, %v5849
        %v6104 = vadd.f32 %v5144, %v5850
        %v6105 = vadd.f32 %v5145, %v5851
        %v6106 = vadd.f32 %v5146, %v5736
        %v6107 = vadd.f32 %v5147, %v5852
        %v6108 = vadd.f32 %v5148, %v5853
        %v6109 = vadd.f32 %v5149, %v5854
        %v6110 = vadd.f32 %v5150, %v5855
        %v6111 = vadd.f32 %v5151, %v5856
        %v6112 = vadd.f32 %v5152, %v5857
        %v6113 = vadd.f32 %v5153, %v5858
        %v6114 = vadd.f32 %v5154, %v5737
        %v6115 = vadd.f32 %v5155, %v5859
        %v6116 = vadd.f32 %v5156, %v5860
        %v6117 = vadd.f32 %v5157, %v5861
        %v6118 = vadd.f32 %v5158, %v5862
        %v6119 = vadd.f32 %v5159, %v5863
        %v6120 = vadd.f32 %v5160, %v5864
        %v6121 = vadd.f32 %v5161, %v5865
        %v6122 = vld [vmem:[%s192 + $0x6] sm:$0x1]
        %v6123 = vld [vmem:[%s192 + $0x16] sm:$0x1]
        %v6124 = vld [vmem:[%s192 + $0x26] sm:$0x1]
        %v6125 = vld [vmem:[%s192 + $0x36] sm:$0x1]
        %v6126 = vld [vmem:[%s192 + $0x46] sm:$0x1]
        %v6127 = vld [vmem:[%s192 + $0x56] sm:$0x1]
        %v6128 = vld [vmem:[%s192 + $0x66] sm:$0x1]
        %v6129 = vld [vmem:[%s192 + $0x76] sm:$0x1]
        %v6130 = vld [vmem:[%s192 + $0x86] sm:$0x1]
        %v6131 = vld [vmem:[%s192 + $0x96] sm:$0x1]
        %v6132 = vld [vmem:[%s192 + $0xa6] sm:$0x1]
        %v6133 = vld [vmem:[%s192 + $0xb6] sm:$0x1]
        %v6134 = vld [vmem:[%s192 + $0xc6] sm:$0x1]
        %v6135 = vld [vmem:[%s192 + $0xd6] sm:$0x1]
        %v6136 = vld [vmem:[%s192 + $0xe6] sm:$0x1]
        %v6137 = vld [vmem:[%s192 + $0xf6] sm:$0x1]
        %v6138 = vld [vmem:[%s192 + $0x106] sm:$0x1]
        %v6139 = vld [vmem:[%s192 + $0x116] sm:$0x1]
        %v6140 = vld [vmem:[%s192 + $0x126] sm:$0x1]
        %v6141 = vld [vmem:[%s192 + $0x136] sm:$0x1]
        %v6142 = vld [vmem:[%s192 + $0x146] sm:$0x1]
        %v6143 = vld [vmem:[%s192 + $0x156] sm:$0x1]
        %v6144 = vld [vmem:[%s192 + $0x166] sm:$0x1]
        %v6145 = vld [vmem:[%s192 + $0x176] sm:$0x1]
        %v6146 = vld [vmem:[%s192 + $0x186] sm:$0x1]
        %v6147 = vld [vmem:[%s192 + $0x196] sm:$0x1]
        %v6148 = vld [vmem:[%s192 + $0x1a6] sm:$0x1]
        %v6149 = vld [vmem:[%s192 + $0x1b6] sm:$0x1]
        %v6150 = vld [vmem:[%s192 + $0x1c6] sm:$0x1]
        %v6151 = vld [vmem:[%s192 + $0x1d6] sm:$0x1]
        %v6152 = vld [vmem:[%s192 + $0x1e6] sm:$0x1]
        %v6153 = vld [vmem:[%s192 + $0x1f6] sm:$0x1]
        %v6154 = vld [vmem:[%s192 + $0x206] sm:$0x1]
        %v6155 = vld [vmem:[%s192 + $0x216] sm:$0x1]
        %v6156 = vld [vmem:[%s192 + $0x226] sm:$0x1]
        %v6157 = vld [vmem:[%s192 + $0x236] sm:$0x1]
        %v6158 = vld [vmem:[%s192 + $0x246] sm:$0x1]
        %v6159 = vld [vmem:[%s192 + $0x256] sm:$0x1]
        %v6160 = vld [vmem:[%s192 + $0x266] sm:$0x1]
        %v6161 = vld [vmem:[%s192 + $0x276] sm:$0x1]
        %v6162 = vld [vmem:[%s192 + $0x286] sm:$0x1]
        %v6163 = vld [vmem:[%s192 + $0x296] sm:$0x1]
        %v6164 = vld [vmem:[%s192 + $0x2a6] sm:$0x1]
        %v6165 = vld [vmem:[%s192 + $0x2b6] sm:$0x1]
        %v6166 = vld [vmem:[%s192 + $0x2c6] sm:$0x1]
        %v6167 = vld [vmem:[%s192 + $0x2d6] sm:$0x1]
        %v6168 = vld [vmem:[%s192 + $0x2e6] sm:$0x1]
        %v6169 = vld [vmem:[%s192 + $0x2f6] sm:$0x1]
        %v6170 = vld [vmem:[%s192 + $0x306] sm:$0x1]
        %v6171 = vld [vmem:[%s192 + $0x316] sm:$0x1]
        %v6172 = vld [vmem:[%s192 + $0x326] sm:$0x1]
        %v6173 = vld [vmem:[%s192 + $0x336] sm:$0x1]
        %v6174 = vld [vmem:[%s192 + $0x346] sm:$0x1]
        %v6175 = vld [vmem:[%s192 + $0x356] sm:$0x1]
        %v6176 = vld [vmem:[%s192 + $0x366] sm:$0x1]
        %v6177 = vld [vmem:[%s192 + $0x376] sm:$0x1]
        %v6178 = vld [vmem:[%s192 + $0x386] sm:$0x1]
        %v6179 = vld [vmem:[%s192 + $0x396] sm:$0x1]
        %v6180 = vld [vmem:[%s192 + $0x3a6] sm:$0x1]
        %v6181 = vld [vmem:[%s192 + $0x3b6] sm:$0x1]
        %v6182 = vld [vmem:[%s192 + $0x3c6] sm:$0x1]
        %v6183 = vld [vmem:[%s192 + $0x3d6] sm:$0x1]
        %v6184 = vld [vmem:[%s192 + $0x3e6] sm:$0x1]
        %v6185 = vld [vmem:[%s192 + $0x3f6] sm:$0x1]
        %v6186 = vld [vmem:[%s192 + $0x406] sm:$0x1]
        %v6187 = vld [vmem:[%s192 + $0x416] sm:$0x1]
        %v6188 = vld [vmem:[%s192 + $0x426] sm:$0x1]
        %v6189 = vld [vmem:[%s192 + $0x436] sm:$0x1]
        %v6190 = vld [vmem:[%s192 + $0x446] sm:$0x1]
        %v6191 = vld [vmem:[%s192 + $0x456] sm:$0x1]
        %v6192 = vld [vmem:[%s192 + $0x466] sm:$0x1]
        %v6193 = vld [vmem:[%s192 + $0x476] sm:$0x1]
        %v6194 = vld [vmem:[%s192 + $0x486] sm:$0x1]
        %v6195 = vld [vmem:[%s192 + $0x496] sm:$0x1]
        %v6196 = vld [vmem:[%s192 + $0x4a6] sm:$0x1]
        %v6197 = vld [vmem:[%s192 + $0x4b6] sm:$0x1]
        %v6198 = vld [vmem:[%s192 + $0x4c6] sm:$0x1]
        %v6199 = vld [vmem:[%s192 + $0x4d6] sm:$0x1]
        %v6200 = vld [vmem:[%s192 + $0x4e6] sm:$0x1]
        %v6201 = vld [vmem:[%s192 + $0x4f6] sm:$0x1]
        %v6202 = vld [vmem:[%s192 + $0x506] sm:$0x1]
        %v6203 = vld [vmem:[%s192 + $0x516] sm:$0x1]
        %v6204 = vld [vmem:[%s192 + $0x526] sm:$0x1]
        %v6205 = vld [vmem:[%s192 + $0x536] sm:$0x1]
        %v6206 = vld [vmem:[%s192 + $0x546] sm:$0x1]
        %v6207 = vld [vmem:[%s192 + $0x556] sm:$0x1]
        %v6208 = vld [vmem:[%s192 + $0x566] sm:$0x1]
        %v6209 = vld [vmem:[%s192 + $0x576] sm:$0x1]
        %v6210 = vld [vmem:[%s192 + $0x586] sm:$0x1]
        %v6211 = vld [vmem:[%s192 + $0x596] sm:$0x1]
        %v6212 = vld [vmem:[%s192 + $0x5a6] sm:$0x1]
        %v6213 = vld [vmem:[%s192 + $0x5b6] sm:$0x1]
        %v6214 = vld [vmem:[%s192 + $0x5c6] sm:$0x1]
        %v6215 = vld [vmem:[%s192 + $0x5d6] sm:$0x1]
        %v6216 = vld [vmem:[%s192 + $0x5e6] sm:$0x1]
        %v6217 = vld [vmem:[%s192 + $0x5f6] sm:$0x1]
        %v6218 = vld [vmem:[%s192 + $0x606] sm:$0x1]
        %v6219 = vld [vmem:[%s192 + $0x616] sm:$0x1]
        %v6220 = vld [vmem:[%s192 + $0x626] sm:$0x1]
        %v6221 = vld [vmem:[%s192 + $0x636] sm:$0x1]
        %v6222 = vld [vmem:[%s192 + $0x646] sm:$0x1]
        %v6223 = vld [vmem:[%s192 + $0x656] sm:$0x1]
        %v6224 = vld [vmem:[%s192 + $0x666] sm:$0x1]
        %v6225 = vld [vmem:[%s192 + $0x676] sm:$0x1]
        %v6226 = vld [vmem:[%s192 + $0x686] sm:$0x1]
        %v6227 = vld [vmem:[%s192 + $0x696] sm:$0x1]
        %v6228 = vld [vmem:[%s192 + $0x6a6] sm:$0x1]
        %v6229 = vld [vmem:[%s192 + $0x6b6] sm:$0x1]
        %v6230 = vld [vmem:[%s192 + $0x6c6] sm:$0x1]
        %v6231 = vld [vmem:[%s192 + $0x6d6] sm:$0x1]
        %v6232 = vld [vmem:[%s192 + $0x6e6] sm:$0x1]
        %v6233 = vld [vmem:[%s192 + $0x6f6] sm:$0x1]
        %v6234 = vld [vmem:[%s192 + $0x706] sm:$0x1]
        %v6235 = vld [vmem:[%s192 + $0x716] sm:$0x1]
        %v6236 = vld [vmem:[%s192 + $0x726] sm:$0x1]
        %v6237 = vld [vmem:[%s192 + $0x736] sm:$0x1]
        %v6238 = vld [vmem:[%s192 + $0x746] sm:$0x1]
        %v6239 = vld [vmem:[%s192 + $0x756] sm:$0x1]
        %v6240 = vld [vmem:[%s192 + $0x766] sm:$0x1]
        %v6241 = vld [vmem:[%s192 + $0x776] sm:$0x1]
        %v6242 = vld [vmem:[%s192 + $0x786] sm:$0x1]
        %v6243 = vld [vmem:[%s192 + $0x796] sm:$0x1]
        %v6244 = vld [vmem:[%s192 + $0x7a6] sm:$0x1]
        %v6245 = vld [vmem:[%s192 + $0x7b6] sm:$0x1]
        %v6246 = vld [vmem:[%s192 + $0x7c6] sm:$0x1]
        %v6247 = vld [vmem:[%s192 + $0x7d6] sm:$0x1]
        %v6248 = vld [vmem:[%s192 + $0x7e6] sm:$0x1]
        %v6249 = vld [vmem:[%s192 + $0x7f6] sm:$0x1]
        %6250 = vset.pattern.permute.xlu0 6
        %6251 = vperm.xlu0 %6250, %v323
        %v6252 = vpop.permute.xlu0 %6251
        %6254 = vset.pattern.permute.xlu0 6
        %6255 = vperm.xlu0 %6254, %v324
        %v6256 = vpop.permute.xlu0 %6255
        %6258 = vset.pattern.permute.xlu0 6
        %6259 = vperm.xlu0 %6258, %v325
        %v6260 = vpop.permute.xlu0 %6259
        %6262 = vset.pattern.permute.xlu0 6
        %6263 = vperm.xlu0 %6262, %v326
        %v6264 = vpop.permute.xlu0 %6263
        %6266 = vset.pattern.permute.xlu0 6
        %6267 = vperm.xlu0 %6266, %v327
        %v6268 = vpop.permute.xlu0 %6267
        %6270 = vset.pattern.permute.xlu0 6
        %6271 = vperm.xlu0 %6270, %v328
        %v6272 = vpop.permute.xlu0 %6271
        %6274 = vset.pattern.permute.xlu0 6
        %6275 = vperm.xlu0 %6274, %v329
        %v6276 = vpop.permute.xlu0 %6275
        %6278 = vset.pattern.permute.xlu0 6
        %6279 = vperm.xlu0 %6278, %v330
        %v6280 = vpop.permute.xlu0 %6279
        %6282 = vset.pattern.permute.xlu0 6
        %6283 = vperm.xlu0 %6282, %v331
        %v6284 = vpop.permute.xlu0 %6283
        %6286 = vset.pattern.permute.xlu0 6
        %6287 = vperm.xlu0 %6286, %v332
        %v6288 = vpop.permute.xlu0 %6287
        %6290 = vset.pattern.permute.xlu0 6
        %6291 = vperm.xlu0 %6290, %v333
        %v6292 = vpop.permute.xlu0 %6291
        %6294 = vset.pattern.permute.xlu0 6
        %6295 = vperm.xlu0 %6294, %v334
        %v6296 = vpop.permute.xlu0 %6295
        %6298 = vset.pattern.permute.xlu0 6
        %6299 = vperm.xlu0 %6298, %v335
        %v6300 = vpop.permute.xlu0 %6299
        %6302 = vset.pattern.permute.xlu0 6
        %6303 = vperm.xlu0 %6302, %v336
        %v6304 = vpop.permute.xlu0 %6303
        %6306 = vset.pattern.permute.xlu0 6
        %6307 = vperm.xlu0 %6306, %v337
        %v6308 = vpop.permute.xlu0 %6307
        %6310 = vset.pattern.permute.xlu0 6
        %6311 = vperm.xlu0 %6310, %v338
        %v6312 = vpop.permute.xlu0 %6311
        %v6442 = vrot.slane %v6123, 7
        %v6443 = vsel %vm676, %v6442, %v6122
        %v6444 = vrot.slane %v6124, 6
        %v6445 = vsel %vm679, %v6444, %v6443
        %v6446 = vrot.slane %v6125, 5
        %v6447 = vsel %vm682, %v6446, %v6445
        %v6448 = vrot.slane %v6126, 4
        %v6449 = vsel %vm685, %v6448, %v6447
        %v6450 = vrot.slane %v6127, 3
        %v6451 = vsel %vm688, %v6450, %v6449
        %v6452 = vrot.slane %v6128, 2
        %v6453 = vsel %vm691, %v6452, %v6451
        %v6454 = vrot.slane %v6129, 1
        %v6455 = vsel %vm694, %v6454, %v6453
        %v6456 = vrot.slane %v6131, 7
        %v6457 = vsel %vm676, %v6456, %v6130
        %v6458 = vrot.slane %v6132, 6
        %v6459 = vsel %vm679, %v6458, %v6457
        %v6460 = vrot.slane %v6133, 5
        %v6461 = vsel %vm682, %v6460, %v6459
        %v6462 = vrot.slane %v6134, 4
        %v6463 = vsel %vm685, %v6462, %v6461
        %v6464 = vrot.slane %v6135, 3
        %v6465 = vsel %vm688, %v6464, %v6463
        %v6466 = vrot.slane %v6136, 2
        %v6467 = vsel %vm691, %v6466, %v6465
        %v6468 = vrot.slane %v6137, 1
        %v6469 = vsel %vm694, %v6468, %v6467
        %v6470 = vrot.slane %v6139, 7
        %v6471 = vsel %vm676, %v6470, %v6138
        %v6472 = vrot.slane %v6140, 6
        %v6473 = vsel %vm679, %v6472, %v6471
        %v6474 = vrot.slane %v6141, 5
        %v6475 = vsel %vm682, %v6474, %v6473
        %v6476 = vrot.slane %v6142, 4
        %v6477 = vsel %vm685, %v6476, %v6475
        %v6478 = vrot.slane %v6143, 3
        %v6479 = vsel %vm688, %v6478, %v6477
        %v6480 = vrot.slane %v6144, 2
        %v6481 = vsel %vm691, %v6480, %v6479
        %v6482 = vrot.slane %v6145, 1
        %v6483 = vsel %vm694, %v6482, %v6481
        %v6484 = vrot.slane %v6147, 7
        %v6485 = vsel %vm676, %v6484, %v6146
        %v6486 = vrot.slane %v6148, 6
        %v6487 = vsel %vm679, %v6486, %v6485
        %v6488 = vrot.slane %v6149, 5
        %v6489 = vsel %vm682, %v6488, %v6487
        %v6490 = vrot.slane %v6150, 4
        %v6491 = vsel %vm685, %v6490, %v6489
        %v6492 = vrot.slane %v6151, 3
        %v6493 = vsel %vm688, %v6492, %v6491
        %v6494 = vrot.slane %v6152, 2
        %v6495 = vsel %vm691, %v6494, %v6493
        %v6496 = vrot.slane %v6153, 1
        %v6497 = vsel %vm694, %v6496, %v6495
        %v6498 = vrot.slane %v6155, 7
        %v6499 = vsel %vm676, %v6498, %v6154
        %v6500 = vrot.slane %v6156, 6
        %v6501 = vsel %vm679, %v6500, %v6499
        %v6502 = vrot.slane %v6157, 5
        %v6503 = vsel %vm682, %v6502, %v6501
        %v6504 = vrot.slane %v6158, 4
        %v6505 = vsel %vm685, %v6504, %v6503
        %v6506 = vrot.slane %v6159, 3
        %v6507 = vsel %vm688, %v6506, %v6505
        %v6508 = vrot.slane %v6160, 2
        %v6509 = vsel %vm691, %v6508, %v6507
        %v6510 = vrot.slane %v6161, 1
        %v6511 = vsel %vm694, %v6510, %v6509
        %v6512 = vrot.slane %v6163, 7
        %v6513 = vsel %vm676, %v6512, %v6162
        %v6514 = vrot.slane %v6164, 6
        %v6515 = vsel %vm679, %v6514, %v6513
        %v6516 = vrot.slane %v6165, 5
        %v6517 = vsel %vm682, %v6516, %v6515
        %v6518 = vrot.slane %v6166, 4
        %v6519 = vsel %vm685, %v6518, %v6517
        %v6520 = vrot.slane %v6167, 3
        %v6521 = vsel %vm688, %v6520, %v6519
        %v6522 = vrot.slane %v6168, 2
        %v6523 = vsel %vm691, %v6522, %v6521
        %v6524 = vrot.slane %v6169, 1
        %v6525 = vsel %vm694, %v6524, %v6523
        %v6526 = vrot.slane %v6171, 7
        %v6527 = vsel %vm676, %v6526, %v6170
        %v6528 = vrot.slane %v6172, 6
        %v6529 = vsel %vm679, %v6528, %v6527
        %v6530 = vrot.slane %v6173, 5
        %v6531 = vsel %vm682, %v6530, %v6529
        %v6532 = vrot.slane %v6174, 4
        %v6533 = vsel %vm685, %v6532, %v6531
        %v6534 = vrot.slane %v6175, 3
        %v6535 = vsel %vm688, %v6534, %v6533
        %v6536 = vrot.slane %v6176, 2
        %v6537 = vsel %vm691, %v6536, %v6535
        %v6538 = vrot.slane %v6177, 1
        %v6539 = vsel %vm694, %v6538, %v6537
        %v6540 = vrot.slane %v6179, 7
        %v6541 = vsel %vm676, %v6540, %v6178
        %v6542 = vrot.slane %v6180, 6
        %v6543 = vsel %vm679, %v6542, %v6541
        %v6544 = vrot.slane %v6181, 5
        %v6545 = vsel %vm682, %v6544, %v6543
        %v6546 = vrot.slane %v6182, 4
        %v6547 = vsel %vm685, %v6546, %v6545
        %v6548 = vrot.slane %v6183, 3
        %v6549 = vsel %vm688, %v6548, %v6547
        %v6550 = vrot.slane %v6184, 2
        %v6551 = vsel %vm691, %v6550, %v6549
        %v6552 = vrot.slane %v6185, 1
        %v6553 = vsel %vm694, %v6552, %v6551
        %v6554 = vrot.slane %v6187, 7
        %v6555 = vsel %vm676, %v6554, %v6186
        %v6556 = vrot.slane %v6188, 6
        %v6557 = vsel %vm679, %v6556, %v6555
        %v6558 = vrot.slane %v6189, 5
        %v6559 = vsel %vm682, %v6558, %v6557
        %v6560 = vrot.slane %v6190, 4
        %v6561 = vsel %vm685, %v6560, %v6559
        %v6562 = vrot.slane %v6191, 3
        %v6563 = vsel %vm688, %v6562, %v6561
        %v6564 = vrot.slane %v6192, 2
        %v6565 = vsel %vm691, %v6564, %v6563
        %v6566 = vrot.slane %v6193, 1
        %v6567 = vsel %vm694, %v6566, %v6565
        %v6568 = vrot.slane %v6195, 7
        %v6569 = vsel %vm676, %v6568, %v6194
        %v6570 = vrot.slane %v6196, 6
        %v6571 = vsel %vm679, %v6570, %v6569
        %v6572 = vrot.slane %v6197, 5
        %v6573 = vsel %vm682, %v6572, %v6571
        %v6574 = vrot.slane %v6198, 4
        %v6575 = vsel %vm685, %v6574, %v6573
        %v6576 = vrot.slane %v6199, 3
        %v6577 = vsel %vm688, %v6576, %v6575
        %v6578 = vrot.slane %v6200, 2
        %v6579 = vsel %vm691, %v6578, %v6577
        %v6580 = vrot.slane %v6201, 1
        %v6581 = vsel %vm694, %v6580, %v6579
        %v6582 = vrot.slane %v6203, 7
        %v6583 = vsel %vm676, %v6582, %v6202
        %v6584 = vrot.slane %v6204, 6
        %v6585 = vsel %vm679, %v6584, %v6583
        %v6586 = vrot.slane %v6205, 5
        %v6587 = vsel %vm682, %v6586, %v6585
        %v6588 = vrot.slane %v6206, 4
        %v6589 = vsel %vm685, %v6588, %v6587
        %v6590 = vrot.slane %v6207, 3
        %v6591 = vsel %vm688, %v6590, %v6589
        %v6592 = vrot.slane %v6208, 2
        %v6593 = vsel %vm691, %v6592, %v6591
        %v6594 = vrot.slane %v6209, 1
        %v6595 = vsel %vm694, %v6594, %v6593
        %v6596 = vrot.slane %v6211, 7
        %v6597 = vsel %vm676, %v6596, %v6210
        %v6598 = vrot.slane %v6212, 6
        %v6599 = vsel %vm679, %v6598, %v6597
        %v6600 = vrot.slane %v6213, 5
        %v6601 = vsel %vm682, %v6600, %v6599
        %v6602 = vrot.slane %v6214, 4
        %v6603 = vsel %vm685, %v6602, %v6601
        %v6604 = vrot.slane %v6215, 3
        %v6605 = vsel %vm688, %v6604, %v6603
        %v6606 = vrot.slane %v6216, 2
        %v6607 = vsel %vm691, %v6606, %v6605
        %v6608 = vrot.slane %v6217, 1
        %v6609 = vsel %vm694, %v6608, %v6607
        %v6610 = vrot.slane %v6219, 7
        %v6611 = vsel %vm676, %v6610, %v6218
        %v6612 = vrot.slane %v6220, 6
        %v6613 = vsel %vm679, %v6612, %v6611
        %v6614 = vrot.slane %v6221, 5
        %v6615 = vsel %vm682, %v6614, %v6613
        %v6616 = vrot.slane %v6222, 4
        %v6617 = vsel %vm685, %v6616, %v6615
        %v6618 = vrot.slane %v6223, 3
        %v6619 = vsel %vm688, %v6618, %v6617
        %v6620 = vrot.slane %v6224, 2
        %v6621 = vsel %vm691, %v6620, %v6619
        %v6622 = vrot.slane %v6225, 1
        %v6623 = vsel %vm694, %v6622, %v6621
        %v6624 = vrot.slane %v6227, 7
        %v6625 = vsel %vm676, %v6624, %v6226
        %v6626 = vrot.slane %v6228, 6
        %v6627 = vsel %vm679, %v6626, %v6625
        %v6628 = vrot.slane %v6229, 5
        %v6629 = vsel %vm682, %v6628, %v6627
        %v6630 = vrot.slane %v6230, 4
        %v6631 = vsel %vm685, %v6630, %v6629
        %v6632 = vrot.slane %v6231, 3
        %v6633 = vsel %vm688, %v6632, %v6631
        %v6634 = vrot.slane %v6232, 2
        %v6635 = vsel %vm691, %v6634, %v6633
        %v6636 = vrot.slane %v6233, 1
        %v6637 = vsel %vm694, %v6636, %v6635
        %v6638 = vrot.slane %v6235, 7
        %v6639 = vsel %vm676, %v6638, %v6234
        %v6640 = vrot.slane %v6236, 6
        %v6641 = vsel %vm679, %v6640, %v6639
        %v6642 = vrot.slane %v6237, 5
        %v6643 = vsel %vm682, %v6642, %v6641
        %v6644 = vrot.slane %v6238, 4
        %v6645 = vsel %vm685, %v6644, %v6643
        %v6646 = vrot.slane %v6239, 3
        %v6647 = vsel %vm688, %v6646, %v6645
        %v6648 = vrot.slane %v6240, 2
        %v6649 = vsel %vm691, %v6648, %v6647
        %v6650 = vrot.slane %v6241, 1
        %v6651 = vsel %vm694, %v6650, %v6649
        %v6652 = vrot.slane %v6243, 7
        %v6653 = vsel %vm676, %v6652, %v6242
        %v6654 = vrot.slane %v6244, 6
        %v6655 = vsel %vm679, %v6654, %v6653
        %v6656 = vrot.slane %v6245, 5
        %v6657 = vsel %vm682, %v6656, %v6655
        %v6658 = vrot.slane %v6246, 4
        %v6659 = vsel %vm685, %v6658, %v6657
        %v6660 = vrot.slane %v6247, 3
        %v6661 = vsel %vm688, %v6660, %v6659
        %v6662 = vrot.slane %v6248, 2
        %v6663 = vsel %vm691, %v6662, %v6661
        %v6664 = vrot.slane %v6249, 1
        %v6665 = vsel %vm694, %v6664, %v6663
        %v6682 = vmul.f32 %v6252, %v6455
        %v6683 = vmul.f32 %v6256, %v6469
        %v6684 = vmul.f32 %v6260, %v6483
        %v6685 = vmul.f32 %v6264, %v6497
        %v6686 = vmul.f32 %v6268, %v6511
        %v6687 = vmul.f32 %v6272, %v6525
        %v6688 = vmul.f32 %v6276, %v6539
        %v6689 = vmul.f32 %v6280, %v6553
        %v6690 = vmul.f32 %v6284, %v6567
        %v6691 = vmul.f32 %v6288, %v6581
        %v6692 = vmul.f32 %v6292, %v6595
        %v6693 = vmul.f32 %v6296, %v6609
        %v6694 = vmul.f32 %v6300, %v6623
        %v6695 = vmul.f32 %v6304, %v6637
        %v6696 = vmul.f32 %v6308, %v6651
        %v6697 = vmul.f32 %v6312, %v6665
        %v6714 = vrot.slane %v6682, 1
        %v6715 = vrot.slane %v6682, 2
        %v6716 = vrot.slane %v6682, 3
        %v6717 = vrot.slane %v6682, 4
        %v6718 = vrot.slane %v6682, 5
        %v6719 = vrot.slane %v6682, 6
        %v6720 = vrot.slane %v6682, 7
        %v6721 = vrot.slane %v6683, 1
        %v6722 = vrot.slane %v6683, 2
        %v6723 = vrot.slane %v6683, 3
        %v6724 = vrot.slane %v6683, 4
        %v6725 = vrot.slane %v6683, 5
        %v6726 = vrot.slane %v6683, 6
        %v6727 = vrot.slane %v6683, 7
        %v6728 = vrot.slane %v6684, 1
        %v6729 = vrot.slane %v6684, 2
        %v6730 = vrot.slane %v6684, 3
        %v6731 = vrot.slane %v6684, 4
        %v6732 = vrot.slane %v6684, 5
        %v6733 = vrot.slane %v6684, 6
        %v6734 = vrot.slane %v6684, 7
        %v6735 = vrot.slane %v6685, 1
        %v6736 = vrot.slane %v6685, 2
        %v6737 = vrot.slane %v6685, 3
        %v6738 = vrot.slane %v6685, 4
        %v6739 = vrot.slane %v6685, 5
        %v6740 = vrot.slane %v6685, 6
        %v6741 = vrot.slane %v6685, 7
        %v6742 = vrot.slane %v6686, 1
        %v6743 = vrot.slane %v6686, 2
        %v6744 = vrot.slane %v6686, 3
        %v6745 = vrot.slane %v6686, 4
        %v6746 = vrot.slane %v6686, 5
        %v6747 = vrot.slane %v6686, 6
        %v6748 = vrot.slane %v6686, 7
        %v6749 = vrot.slane %v6687, 1
        %v6750 = vrot.slane %v6687, 2
        %v6751 = vrot.slane %v6687, 3
        %v6752 = vrot.slane %v6687, 4
        %v6753 = vrot.slane %v6687, 5
        %v6754 = vrot.slane %v6687, 6
        %v6755 = vrot.slane %v6687, 7
        %v6756 = vrot.slane %v6688, 1
        %v6757 = vrot.slane %v6688, 2
        %v6758 = vrot.slane %v6688, 3
        %v6759 = vrot.slane %v6688, 4
        %v6760 = vrot.slane %v6688, 5
        %v6761 = vrot.slane %v6688, 6
        %v6762 = vrot.slane %v6688, 7
        %v6763 = vrot.slane %v6689, 1
        %v6764 = vrot.slane %v6689, 2
        %v6765 = vrot.slane %v6689, 3
        %v6766 = vrot.slane %v6689, 4
        %v6767 = vrot.slane %v6689, 5
        %v6768 = vrot.slane %v6689, 6
        %v6769 = vrot.slane %v6689, 7
        %v6770 = vrot.slane %v6690, 1
        %v6771 = vrot.slane %v6690, 2
        %v6772 = vrot.slane %v6690, 3
        %v6773 = vrot.slane %v6690, 4
        %v6774 = vrot.slane %v6690, 5
        %v6775 = vrot.slane %v6690, 6
        %v6776 = vrot.slane %v6690, 7
        %v6777 = vrot.slane %v6691, 1
        %v6778 = vrot.slane %v6691, 2
        %v6779 = vrot.slane %v6691, 3
        %v6780 = vrot.slane %v6691, 4
        %v6781 = vrot.slane %v6691, 5
        %v6782 = vrot.slane %v6691, 6
        %v6783 = vrot.slane %v6691, 7
        %v6784 = vrot.slane %v6692, 1
        %v6785 = vrot.slane %v6692, 2
        %v6786 = vrot.slane %v6692, 3
        %v6787 = vrot.slane %v6692, 4
        %v6788 = vrot.slane %v6692, 5
        %v6789 = vrot.slane %v6692, 6
        %v6790 = vrot.slane %v6692, 7
        %v6791 = vrot.slane %v6693, 1
        %v6792 = vrot.slane %v6693, 2
        %v6793 = vrot.slane %v6693, 3
        %v6794 = vrot.slane %v6693, 4
        %v6795 = vrot.slane %v6693, 5
        %v6796 = vrot.slane %v6693, 6
        %v6797 = vrot.slane %v6693, 7
        %v6798 = vrot.slane %v6694, 1
        %v6799 = vrot.slane %v6694, 2
        %v6800 = vrot.slane %v6694, 3
        %v6801 = vrot.slane %v6694, 4
        %v6802 = vrot.slane %v6694, 5
        %v6803 = vrot.slane %v6694, 6
        %v6804 = vrot.slane %v6694, 7
        %v6805 = vrot.slane %v6695, 1
        %v6806 = vrot.slane %v6695, 2
        %v6807 = vrot.slane %v6695, 3
        %v6808 = vrot.slane %v6695, 4
        %v6809 = vrot.slane %v6695, 5
        %v6810 = vrot.slane %v6695, 6
        %v6811 = vrot.slane %v6695, 7
        %v6812 = vrot.slane %v6696, 1
        %v6813 = vrot.slane %v6696, 2
        %v6814 = vrot.slane %v6696, 3
        %v6815 = vrot.slane %v6696, 4
        %v6816 = vrot.slane %v6696, 5
        %v6817 = vrot.slane %v6696, 6
        %v6818 = vrot.slane %v6696, 7
        %v6819 = vrot.slane %v6697, 1
        %v6820 = vrot.slane %v6697, 2
        %v6821 = vrot.slane %v6697, 3
        %v6822 = vrot.slane %v6697, 4
        %v6823 = vrot.slane %v6697, 5
        %v6824 = vrot.slane %v6697, 6
        %v6825 = vrot.slane %v6697, 7
        %v6954 = vadd.f32 %v5994, %v6682
        %v6955 = vadd.f32 %v5995, %v6714
        %v6956 = vadd.f32 %v5996, %v6715
        %v6957 = vadd.f32 %v5997, %v6716
        %v6958 = vadd.f32 %v5998, %v6717
        %v6959 = vadd.f32 %v5999, %v6718
        %v6960 = vadd.f32 %v6000, %v6719
        %v6961 = vadd.f32 %v6001, %v6720
        %v6962 = vadd.f32 %v6002, %v6683
        %v6963 = vadd.f32 %v6003, %v6721
        %v6964 = vadd.f32 %v6004, %v6722
        %v6965 = vadd.f32 %v6005, %v6723
        %v6966 = vadd.f32 %v6006, %v6724
        %v6967 = vadd.f32 %v6007, %v6725
        %v6968 = vadd.f32 %v6008, %v6726
        %v6969 = vadd.f32 %v6009, %v6727
        %v6970 = vadd.f32 %v6010, %v6684
        %v6971 = vadd.f32 %v6011, %v6728
        %v6972 = vadd.f32 %v6012, %v6729
        %v6973 = vadd.f32 %v6013, %v6730
        %v6974 = vadd.f32 %v6014, %v6731
        %v6975 = vadd.f32 %v6015, %v6732
        %v6976 = vadd.f32 %v6016, %v6733
        %v6977 = vadd.f32 %v6017, %v6734
        %v6978 = vadd.f32 %v6018, %v6685
        %v6979 = vadd.f32 %v6019, %v6735
        %v6980 = vadd.f32 %v6020, %v6736
        %v6981 = vadd.f32 %v6021, %v6737
        %v6982 = vadd.f32 %v6022, %v6738
        %v6983 = vadd.f32 %v6023, %v6739
        %v6984 = vadd.f32 %v6024, %v6740
        %v6985 = vadd.f32 %v6025, %v6741
        %v6986 = vadd.f32 %v6026, %v6686
        %v6987 = vadd.f32 %v6027, %v6742
        %v6988 = vadd.f32 %v6028, %v6743
        %v6989 = vadd.f32 %v6029, %v6744
        %v6990 = vadd.f32 %v6030, %v6745
        %v6991 = vadd.f32 %v6031, %v6746
        %v6992 = vadd.f32 %v6032, %v6747
        %v6993 = vadd.f32 %v6033, %v6748
        %v6994 = vadd.f32 %v6034, %v6687
        %v6995 = vadd.f32 %v6035, %v6749
        %v6996 = vadd.f32 %v6036, %v6750
        %v6997 = vadd.f32 %v6037, %v6751
        %v6998 = vadd.f32 %v6038, %v6752
        %v6999 = vadd.f32 %v6039, %v6753
        %v7000 = vadd.f32 %v6040, %v6754
        %v7001 = vadd.f32 %v6041, %v6755
        %v7002 = vadd.f32 %v6042, %v6688
        %v7003 = vadd.f32 %v6043, %v6756
        %v7004 = vadd.f32 %v6044, %v6757
        %v7005 = vadd.f32 %v6045, %v6758
        %v7006 = vadd.f32 %v6046, %v6759
        %v7007 = vadd.f32 %v6047, %v6760
        %v7008 = vadd.f32 %v6048, %v6761
        %v7009 = vadd.f32 %v6049, %v6762
        %v7010 = vadd.f32 %v6050, %v6689
        %v7011 = vadd.f32 %v6051, %v6763
        %v7012 = vadd.f32 %v6052, %v6764
        %v7013 = vadd.f32 %v6053, %v6765
        %v7014 = vadd.f32 %v6054, %v6766
        %v7015 = vadd.f32 %v6055, %v6767
        %v7016 = vadd.f32 %v6056, %v6768
        %v7017 = vadd.f32 %v6057, %v6769
        %v7018 = vadd.f32 %v6058, %v6690
        %v7019 = vadd.f32 %v6059, %v6770
        %v7020 = vadd.f32 %v6060, %v6771
        %v7021 = vadd.f32 %v6061, %v6772
        %v7022 = vadd.f32 %v6062, %v6773
        %v7023 = vadd.f32 %v6063, %v6774
        %v7024 = vadd.f32 %v6064, %v6775
        %v7025 = vadd.f32 %v6065, %v6776
        %v7026 = vadd.f32 %v6066, %v6691
        %v7027 = vadd.f32 %v6067, %v6777
        %v7028 = vadd.f32 %v6068, %v6778
        %v7029 = vadd.f32 %v6069, %v6779
        %v7030 = vadd.f32 %v6070, %v6780
        %v7031 = vadd.f32 %v6071, %v6781
        %v7032 = vadd.f32 %v6072, %v6782
        %v7033 = vadd.f32 %v6073, %v6783
        %v7034 = vadd.f32 %v6074, %v6692
        %v7035 = vadd.f32 %v6075, %v6784
        %v7036 = vadd.f32 %v6076, %v6785
        %v7037 = vadd.f32 %v6077, %v6786
        %v7038 = vadd.f32 %v6078, %v6787
        %v7039 = vadd.f32 %v6079, %v6788
        %v7040 = vadd.f32 %v6080, %v6789
        %v7041 = vadd.f32 %v6081, %v6790
        %v7042 = vadd.f32 %v6082, %v6693
        %v7043 = vadd.f32 %v6083, %v6791
        %v7044 = vadd.f32 %v6084, %v6792
        %v7045 = vadd.f32 %v6085, %v6793
        %v7046 = vadd.f32 %v6086, %v6794
        %v7047 = vadd.f32 %v6087, %v6795
        %v7048 = vadd.f32 %v6088, %v6796
        %v7049 = vadd.f32 %v6089, %v6797
        %v7050 = vadd.f32 %v6090, %v6694
        %v7051 = vadd.f32 %v6091, %v6798
        %v7052 = vadd.f32 %v6092, %v6799
        %v7053 = vadd.f32 %v6093, %v6800
        %v7054 = vadd.f32 %v6094, %v6801
        %v7055 = vadd.f32 %v6095, %v6802
        %v7056 = vadd.f32 %v6096, %v6803
        %v7057 = vadd.f32 %v6097, %v6804
        %v7058 = vadd.f32 %v6098, %v6695
        %v7059 = vadd.f32 %v6099, %v6805
        %v7060 = vadd.f32 %v6100, %v6806
        %v7061 = vadd.f32 %v6101, %v6807
        %v7062 = vadd.f32 %v6102, %v6808
        %v7063 = vadd.f32 %v6103, %v6809
        %v7064 = vadd.f32 %v6104, %v6810
        %v7065 = vadd.f32 %v6105, %v6811
        %v7066 = vadd.f32 %v6106, %v6696
        %v7067 = vadd.f32 %v6107, %v6812
        %v7068 = vadd.f32 %v6108, %v6813
        %v7069 = vadd.f32 %v6109, %v6814
        %v7070 = vadd.f32 %v6110, %v6815
        %v7071 = vadd.f32 %v6111, %v6816
        %v7072 = vadd.f32 %v6112, %v6817
        %v7073 = vadd.f32 %v6113, %v6818
        %v7074 = vadd.f32 %v6114, %v6697
        %v7075 = vadd.f32 %v6115, %v6819
        %v7076 = vadd.f32 %v6116, %v6820
        %v7077 = vadd.f32 %v6117, %v6821
        %v7078 = vadd.f32 %v6118, %v6822
        %v7079 = vadd.f32 %v6119, %v6823
        %v7080 = vadd.f32 %v6120, %v6824
        %v7081 = vadd.f32 %v6121, %v6825
        %v7082 = vld [vmem:[%s192 + $0x7] sm:$0x1]
        %v7083 = vld [vmem:[%s192 + $0x17] sm:$0x1]
        %v7084 = vld [vmem:[%s192 + $0x27] sm:$0x1]
        %v7085 = vld [vmem:[%s192 + $0x37] sm:$0x1]
        %v7086 = vld [vmem:[%s192 + $0x47] sm:$0x1]
        %v7087 = vld [vmem:[%s192 + $0x57] sm:$0x1]
        %v7088 = vld [vmem:[%s192 + $0x67] sm:$0x1]
        %v7089 = vld [vmem:[%s192 + $0x77] sm:$0x1]
        %v7090 = vld [vmem:[%s192 + $0x87] sm:$0x1]
        %v7091 = vld [vmem:[%s192 + $0x97] sm:$0x1]
        %v7092 = vld [vmem:[%s192 + $0xa7] sm:$0x1]
        %v7093 = vld [vmem:[%s192 + $0xb7] sm:$0x1]
        %v7094 = vld [vmem:[%s192 + $0xc7] sm:$0x1]
        %v7095 = vld [vmem:[%s192 + $0xd7] sm:$0x1]
        %v7096 = vld [vmem:[%s192 + $0xe7] sm:$0x1]
        %v7097 = vld [vmem:[%s192 + $0xf7] sm:$0x1]
        %v7098 = vld [vmem:[%s192 + $0x107] sm:$0x1]
        %v7099 = vld [vmem:[%s192 + $0x117] sm:$0x1]
        %v7100 = vld [vmem:[%s192 + $0x127] sm:$0x1]
        %v7101 = vld [vmem:[%s192 + $0x137] sm:$0x1]
        %v7102 = vld [vmem:[%s192 + $0x147] sm:$0x1]
        %v7103 = vld [vmem:[%s192 + $0x157] sm:$0x1]
        %v7104 = vld [vmem:[%s192 + $0x167] sm:$0x1]
        %v7105 = vld [vmem:[%s192 + $0x177] sm:$0x1]
        %v7106 = vld [vmem:[%s192 + $0x187] sm:$0x1]
        %v7107 = vld [vmem:[%s192 + $0x197] sm:$0x1]
        %v7108 = vld [vmem:[%s192 + $0x1a7] sm:$0x1]
        %v7109 = vld [vmem:[%s192 + $0x1b7] sm:$0x1]
        %v7110 = vld [vmem:[%s192 + $0x1c7] sm:$0x1]
        %v7111 = vld [vmem:[%s192 + $0x1d7] sm:$0x1]
        %v7112 = vld [vmem:[%s192 + $0x1e7] sm:$0x1]
        %v7113 = vld [vmem:[%s192 + $0x1f7] sm:$0x1]
        %v7114 = vld [vmem:[%s192 + $0x207] sm:$0x1]
        %v7115 = vld [vmem:[%s192 + $0x217] sm:$0x1]
        %v7116 = vld [vmem:[%s192 + $0x227] sm:$0x1]
        %v7117 = vld [vmem:[%s192 + $0x237] sm:$0x1]
        %v7118 = vld [vmem:[%s192 + $0x247] sm:$0x1]
        %v7119 = vld [vmem:[%s192 + $0x257] sm:$0x1]
        %v7120 = vld [vmem:[%s192 + $0x267] sm:$0x1]
        %v7121 = vld [vmem:[%s192 + $0x277] sm:$0x1]
        %v7122 = vld [vmem:[%s192 + $0x287] sm:$0x1]
        %v7123 = vld [vmem:[%s192 + $0x297] sm:$0x1]
        %v7124 = vld [vmem:[%s192 + $0x2a7] sm:$0x1]
        %v7125 = vld [vmem:[%s192 + $0x2b7] sm:$0x1]
        %v7126 = vld [vmem:[%s192 + $0x2c7] sm:$0x1]
        %v7127 = vld [vmem:[%s192 + $0x2d7] sm:$0x1]
        %v7128 = vld [vmem:[%s192 + $0x2e7] sm:$0x1]
        %v7129 = vld [vmem:[%s192 + $0x2f7] sm:$0x1]
        %v7130 = vld [vmem:[%s192 + $0x307] sm:$0x1]
        %v7131 = vld [vmem:[%s192 + $0x317] sm:$0x1]
        %v7132 = vld [vmem:[%s192 + $0x327] sm:$0x1]
        %v7133 = vld [vmem:[%s192 + $0x337] sm:$0x1]
        %v7134 = vld [vmem:[%s192 + $0x347] sm:$0x1]
        %v7135 = vld [vmem:[%s192 + $0x357] sm:$0x1]
        %v7136 = vld [vmem:[%s192 + $0x367] sm:$0x1]
        %v7137 = vld [vmem:[%s192 + $0x377] sm:$0x1]
        %v7138 = vld [vmem:[%s192 + $0x387] sm:$0x1]
        %v7139 = vld [vmem:[%s192 + $0x397] sm:$0x1]
        %v7140 = vld [vmem:[%s192 + $0x3a7] sm:$0x1]
        %v7141 = vld [vmem:[%s192 + $0x3b7] sm:$0x1]
        %v7142 = vld [vmem:[%s192 + $0x3c7] sm:$0x1]
        %v7143 = vld [vmem:[%s192 + $0x3d7] sm:$0x1]
        %v7144 = vld [vmem:[%s192 + $0x3e7] sm:$0x1]
        %v7145 = vld [vmem:[%s192 + $0x3f7] sm:$0x1]
        %v7146 = vld [vmem:[%s192 + $0x407] sm:$0x1]
        %v7147 = vld [vmem:[%s192 + $0x417] sm:$0x1]
        %v7148 = vld [vmem:[%s192 + $0x427] sm:$0x1]
        %v7149 = vld [vmem:[%s192 + $0x437] sm:$0x1]
        %v7150 = vld [vmem:[%s192 + $0x447] sm:$0x1]
        %v7151 = vld [vmem:[%s192 + $0x457] sm:$0x1]
        %v7152 = vld [vmem:[%s192 + $0x467] sm:$0x1]
        %v7153 = vld [vmem:[%s192 + $0x477] sm:$0x1]
        %v7154 = vld [vmem:[%s192 + $0x487] sm:$0x1]
        %v7155 = vld [vmem:[%s192 + $0x497] sm:$0x1]
        %v7156 = vld [vmem:[%s192 + $0x4a7] sm:$0x1]
        %v7157 = vld [vmem:[%s192 + $0x4b7] sm:$0x1]
        %v7158 = vld [vmem:[%s192 + $0x4c7] sm:$0x1]
        %v7159 = vld [vmem:[%s192 + $0x4d7] sm:$0x1]
        %v7160 = vld [vmem:[%s192 + $0x4e7] sm:$0x1]
        %v7161 = vld [vmem:[%s192 + $0x4f7] sm:$0x1]
        %v7162 = vld [vmem:[%s192 + $0x507] sm:$0x1]
        %v7163 = vld [vmem:[%s192 + $0x517] sm:$0x1]
        %v7164 = vld [vmem:[%s192 + $0x527] sm:$0x1]
        %v7165 = vld [vmem:[%s192 + $0x537] sm:$0x1]
        %v7166 = vld [vmem:[%s192 + $0x547] sm:$0x1]
        %v7167 = vld [vmem:[%s192 + $0x557] sm:$0x1]
        %v7168 = vld [vmem:[%s192 + $0x567] sm:$0x1]
        %v7169 = vld [vmem:[%s192 + $0x577] sm:$0x1]
        %v7170 = vld [vmem:[%s192 + $0x587] sm:$0x1]
        %v7171 = vld [vmem:[%s192 + $0x597] sm:$0x1]
        %v7172 = vld [vmem:[%s192 + $0x5a7] sm:$0x1]
        %v7173 = vld [vmem:[%s192 + $0x5b7] sm:$0x1]
        %v7174 = vld [vmem:[%s192 + $0x5c7] sm:$0x1]
        %v7175 = vld [vmem:[%s192 + $0x5d7] sm:$0x1]
        %v7176 = vld [vmem:[%s192 + $0x5e7] sm:$0x1]
        %v7177 = vld [vmem:[%s192 + $0x5f7] sm:$0x1]
        %v7178 = vld [vmem:[%s192 + $0x607] sm:$0x1]
        %v7179 = vld [vmem:[%s192 + $0x617] sm:$0x1]
        %v7180 = vld [vmem:[%s192 + $0x627] sm:$0x1]
        %v7181 = vld [vmem:[%s192 + $0x637] sm:$0x1]
        %v7182 = vld [vmem:[%s192 + $0x647] sm:$0x1]
        %v7183 = vld [vmem:[%s192 + $0x657] sm:$0x1]
        %v7184 = vld [vmem:[%s192 + $0x667] sm:$0x1]
        %v7185 = vld [vmem:[%s192 + $0x677] sm:$0x1]
        %v7186 = vld [vmem:[%s192 + $0x687] sm:$0x1]
        %v7187 = vld [vmem:[%s192 + $0x697] sm:$0x1]
        %v7188 = vld [vmem:[%s192 + $0x6a7] sm:$0x1]
        %v7189 = vld [vmem:[%s192 + $0x6b7] sm:$0x1]
        %v7190 = vld [vmem:[%s192 + $0x6c7] sm:$0x1]
        %v7191 = vld [vmem:[%s192 + $0x6d7] sm:$0x1]
        %v7192 = vld [vmem:[%s192 + $0x6e7] sm:$0x1]
        %v7193 = vld [vmem:[%s192 + $0x6f7] sm:$0x1]
        %v7194 = vld [vmem:[%s192 + $0x707] sm:$0x1]
        %v7195 = vld [vmem:[%s192 + $0x717] sm:$0x1]
        %v7196 = vld [vmem:[%s192 + $0x727] sm:$0x1]
        %v7197 = vld [vmem:[%s192 + $0x737] sm:$0x1]
        %v7198 = vld [vmem:[%s192 + $0x747] sm:$0x1]
        %v7199 = vld [vmem:[%s192 + $0x757] sm:$0x1]
        %v7200 = vld [vmem:[%s192 + $0x767] sm:$0x1]
        %v7201 = vld [vmem:[%s192 + $0x777] sm:$0x1]
        %v7202 = vld [vmem:[%s192 + $0x787] sm:$0x1]
        %v7203 = vld [vmem:[%s192 + $0x797] sm:$0x1]
        %v7204 = vld [vmem:[%s192 + $0x7a7] sm:$0x1]
        %v7205 = vld [vmem:[%s192 + $0x7b7] sm:$0x1]
        %v7206 = vld [vmem:[%s192 + $0x7c7] sm:$0x1]
        %v7207 = vld [vmem:[%s192 + $0x7d7] sm:$0x1]
        %v7208 = vld [vmem:[%s192 + $0x7e7] sm:$0x1]
        %v7209 = vld [vmem:[%s192 + $0x7f7] sm:$0x1]
        %7210 = vset.pattern.permute.xlu0 7
        %7211 = vperm.xlu0 %7210, %v323
        %v7212 = vpop.permute.xlu0 %7211
        %7214 = vset.pattern.permute.xlu0 7
        %7215 = vperm.xlu0 %7214, %v324
        %v7216 = vpop.permute.xlu0 %7215
        %7218 = vset.pattern.permute.xlu0 7
        %7219 = vperm.xlu0 %7218, %v325
        %v7220 = vpop.permute.xlu0 %7219
        %7222 = vset.pattern.permute.xlu0 7
        %7223 = vperm.xlu0 %7222, %v326
        %v7224 = vpop.permute.xlu0 %7223
        %7226 = vset.pattern.permute.xlu0 7
        %7227 = vperm.xlu0 %7226, %v327
        %v7228 = vpop.permute.xlu0 %7227
        %7230 = vset.pattern.permute.xlu0 7
        %7231 = vperm.xlu0 %7230, %v328
        %v7232 = vpop.permute.xlu0 %7231
        %7234 = vset.pattern.permute.xlu0 7
        %7235 = vperm.xlu0 %7234, %v329
        %v7236 = vpop.permute.xlu0 %7235
        %7238 = vset.pattern.permute.xlu0 7
        %7239 = vperm.xlu0 %7238, %v330
        %v7240 = vpop.permute.xlu0 %7239
        %7242 = vset.pattern.permute.xlu0 7
        %7243 = vperm.xlu0 %7242, %v331
        %v7244 = vpop.permute.xlu0 %7243
        %7246 = vset.pattern.permute.xlu0 7
        %7247 = vperm.xlu0 %7246, %v332
        %v7248 = vpop.permute.xlu0 %7247
        %7250 = vset.pattern.permute.xlu0 7
        %7251 = vperm.xlu0 %7250, %v333
        %v7252 = vpop.permute.xlu0 %7251
        %7254 = vset.pattern.permute.xlu0 7
        %7255 = vperm.xlu0 %7254, %v334
        %v7256 = vpop.permute.xlu0 %7255
        %7258 = vset.pattern.permute.xlu0 7
        %7259 = vperm.xlu0 %7258, %v335
        %v7260 = vpop.permute.xlu0 %7259
        %7262 = vset.pattern.permute.xlu0 7
        %7263 = vperm.xlu0 %7262, %v336
        %v7264 = vpop.permute.xlu0 %7263
        %7266 = vset.pattern.permute.xlu0 7
        %7267 = vperm.xlu0 %7266, %v337
        %v7268 = vpop.permute.xlu0 %7267
        %7270 = vset.pattern.permute.xlu0 7
        %7271 = vperm.xlu0 %7270, %v338
        %v7272 = vpop.permute.xlu0 %7271
        %v7402 = vrot.slane %v7083, 7
        %v7403 = vsel %vm676, %v7402, %v7082
        %v7404 = vrot.slane %v7084, 6
        %v7405 = vsel %vm679, %v7404, %v7403
        %v7406 = vrot.slane %v7085, 5
        %v7407 = vsel %vm682, %v7406, %v7405
        %v7408 = vrot.slane %v7086, 4
        %v7409 = vsel %vm685, %v7408, %v7407
        %v7410 = vrot.slane %v7087, 3
        %v7411 = vsel %vm688, %v7410, %v7409
        %v7412 = vrot.slane %v7088, 2
        %v7413 = vsel %vm691, %v7412, %v7411
        %v7414 = vrot.slane %v7089, 1
        %v7415 = vsel %vm694, %v7414, %v7413
        %v7416 = vrot.slane %v7091, 7
        %v7417 = vsel %vm676, %v7416, %v7090
        %v7418 = vrot.slane %v7092, 6
        %v7419 = vsel %vm679, %v7418, %v7417
        %v7420 = vrot.slane %v7093, 5
        %v7421 = vsel %vm682, %v7420, %v7419
        %v7422 = vrot.slane %v7094, 4
        %v7423 = vsel %vm685, %v7422, %v7421
        %v7424 = vrot.slane %v7095, 3
        %v7425 = vsel %vm688, %v7424, %v7423
        %v7426 = vrot.slane %v7096, 2
        %v7427 = vsel %vm691, %v7426, %v7425
        %v7428 = vrot.slane %v7097, 1
        %v7429 = vsel %vm694, %v7428, %v7427
        %v7430 = vrot.slane %v7099, 7
        %v7431 = vsel %vm676, %v7430, %v7098
        %v7432 = vrot.slane %v7100, 6
        %v7433 = vsel %vm679, %v7432, %v7431
        %v7434 = vrot.slane %v7101, 5
        %v7435 = vsel %vm682, %v7434, %v7433
        %v7436 = vrot.slane %v7102, 4
        %v7437 = vsel %vm685, %v7436, %v7435
        %v7438 = vrot.slane %v7103, 3
        %v7439 = vsel %vm688, %v7438, %v7437
        %v7440 = vrot.slane %v7104, 2
        %v7441 = vsel %vm691, %v7440, %v7439
        %v7442 = vrot.slane %v7105, 1
        %v7443 = vsel %vm694, %v7442, %v7441
        %v7444 = vrot.slane %v7107, 7
        %v7445 = vsel %vm676, %v7444, %v7106
        %v7446 = vrot.slane %v7108, 6
        %v7447 = vsel %vm679, %v7446, %v7445
        %v7448 = vrot.slane %v7109, 5
        %v7449 = vsel %vm682, %v7448, %v7447
        %v7450 = vrot.slane %v7110, 4
        %v7451 = vsel %vm685, %v7450, %v7449
        %v7452 = vrot.slane %v7111, 3
        %v7453 = vsel %vm688, %v7452, %v7451
        %v7454 = vrot.slane %v7112, 2
        %v7455 = vsel %vm691, %v7454, %v7453
        %v7456 = vrot.slane %v7113, 1
        %v7457 = vsel %vm694, %v7456, %v7455
        %v7458 = vrot.slane %v7115, 7
        %v7459 = vsel %vm676, %v7458, %v7114
        %v7460 = vrot.slane %v7116, 6
        %v7461 = vsel %vm679, %v7460, %v7459
        %v7462 = vrot.slane %v7117, 5
        %v7463 = vsel %vm682, %v7462, %v7461
        %v7464 = vrot.slane %v7118, 4
        %v7465 = vsel %vm685, %v7464, %v7463
        %v7466 = vrot.slane %v7119, 3
        %v7467 = vsel %vm688, %v7466, %v7465
        %v7468 = vrot.slane %v7120, 2
        %v7469 = vsel %vm691, %v7468, %v7467
        %v7470 = vrot.slane %v7121, 1
        %v7471 = vsel %vm694, %v7470, %v7469
        %v7472 = vrot.slane %v7123, 7
        %v7473 = vsel %vm676, %v7472, %v7122
        %v7474 = vrot.slane %v7124, 6
        %v7475 = vsel %vm679, %v7474, %v7473
        %v7476 = vrot.slane %v7125, 5
        %v7477 = vsel %vm682, %v7476, %v7475
        %v7478 = vrot.slane %v7126, 4
        %v7479 = vsel %vm685, %v7478, %v7477
        %v7480 = vrot.slane %v7127, 3
        %v7481 = vsel %vm688, %v7480, %v7479
        %v7482 = vrot.slane %v7128, 2
        %v7483 = vsel %vm691, %v7482, %v7481
        %v7484 = vrot.slane %v7129, 1
        %v7485 = vsel %vm694, %v7484, %v7483
        %v7486 = vrot.slane %v7131, 7
        %v7487 = vsel %vm676, %v7486, %v7130
        %v7488 = vrot.slane %v7132, 6
        %v7489 = vsel %vm679, %v7488, %v7487
        %v7490 = vrot.slane %v7133, 5
        %v7491 = vsel %vm682, %v7490, %v7489
        %v7492 = vrot.slane %v7134, 4
        %v7493 = vsel %vm685, %v7492, %v7491
        %v7494 = vrot.slane %v7135, 3
        %v7495 = vsel %vm688, %v7494, %v7493
        %v7496 = vrot.slane %v7136, 2
        %v7497 = vsel %vm691, %v7496, %v7495
        %v7498 = vrot.slane %v7137, 1
        %v7499 = vsel %vm694, %v7498, %v7497
        %v7500 = vrot.slane %v7139, 7
        %v7501 = vsel %vm676, %v7500, %v7138
        %v7502 = vrot.slane %v7140, 6
        %v7503 = vsel %vm679, %v7502, %v7501
        %v7504 = vrot.slane %v7141, 5
        %v7505 = vsel %vm682, %v7504, %v7503
        %v7506 = vrot.slane %v7142, 4
        %v7507 = vsel %vm685, %v7506, %v7505
        %v7508 = vrot.slane %v7143, 3
        %v7509 = vsel %vm688, %v7508, %v7507
        %v7510 = vrot.slane %v7144, 2
        %v7511 = vsel %vm691, %v7510, %v7509
        %v7512 = vrot.slane %v7145, 1
        %v7513 = vsel %vm694, %v7512, %v7511
        %v7514 = vrot.slane %v7147, 7
        %v7515 = vsel %vm676, %v7514, %v7146
        %v7516 = vrot.slane %v7148, 6
        %v7517 = vsel %vm679, %v7516, %v7515
        %v7518 = vrot.slane %v7149, 5
        %v7519 = vsel %vm682, %v7518, %v7517
        %v7520 = vrot.slane %v7150, 4
        %v7521 = vsel %vm685, %v7520, %v7519
        %v7522 = vrot.slane %v7151, 3
        %v7523 = vsel %vm688, %v7522, %v7521
        %v7524 = vrot.slane %v7152, 2
        %v7525 = vsel %vm691, %v7524, %v7523
        %v7526 = vrot.slane %v7153, 1
        %v7527 = vsel %vm694, %v7526, %v7525
        %v7528 = vrot.slane %v7155, 7
        %v7529 = vsel %vm676, %v7528, %v7154
        %v7530 = vrot.slane %v7156, 6
        %v7531 = vsel %vm679, %v7530, %v7529
        %v7532 = vrot.slane %v7157, 5
        %v7533 = vsel %vm682, %v7532, %v7531
        %v7534 = vrot.slane %v7158, 4
        %v7535 = vsel %vm685, %v7534, %v7533
        %v7536 = vrot.slane %v7159, 3
        %v7537 = vsel %vm688, %v7536, %v7535
        %v7538 = vrot.slane %v7160, 2
        %v7539 = vsel %vm691, %v7538, %v7537
        %v7540 = vrot.slane %v7161, 1
        %v7541 = vsel %vm694, %v7540, %v7539
        %v7542 = vrot.slane %v7163, 7
        %v7543 = vsel %vm676, %v7542, %v7162
        %v7544 = vrot.slane %v7164, 6
        %v7545 = vsel %vm679, %v7544, %v7543
        %v7546 = vrot.slane %v7165, 5
        %v7547 = vsel %vm682, %v7546, %v7545
        %v7548 = vrot.slane %v7166, 4
        %v7549 = vsel %vm685, %v7548, %v7547
        %v7550 = vrot.slane %v7167, 3
        %v7551 = vsel %vm688, %v7550, %v7549
        %v7552 = vrot.slane %v7168, 2
        %v7553 = vsel %vm691, %v7552, %v7551
        %v7554 = vrot.slane %v7169, 1
        %v7555 = vsel %vm694, %v7554, %v7553
        %v7556 = vrot.slane %v7171, 7
        %v7557 = vsel %vm676, %v7556, %v7170
        %v7558 = vrot.slane %v7172, 6
        %v7559 = vsel %vm679, %v7558, %v7557
        %v7560 = vrot.slane %v7173, 5
        %v7561 = vsel %vm682, %v7560, %v7559
        %v7562 = vrot.slane %v7174, 4
        %v7563 = vsel %vm685, %v7562, %v7561
        %v7564 = vrot.slane %v7175, 3
        %v7565 = vsel %vm688, %v7564, %v7563
        %v7566 = vrot.slane %v7176, 2
        %v7567 = vsel %vm691, %v7566, %v7565
        %v7568 = vrot.slane %v7177, 1
        %v7569 = vsel %vm694, %v7568, %v7567
        %v7570 = vrot.slane %v7179, 7
        %v7571 = vsel %vm676, %v7570, %v7178
        %v7572 = vrot.slane %v7180, 6
        %v7573 = vsel %vm679, %v7572, %v7571
        %v7574 = vrot.slane %v7181, 5
        %v7575 = vsel %vm682, %v7574, %v7573
        %v7576 = vrot.slane %v7182, 4
        %v7577 = vsel %vm685, %v7576, %v7575
        %v7578 = vrot.slane %v7183, 3
        %v7579 = vsel %vm688, %v7578, %v7577
        %v7580 = vrot.slane %v7184, 2
        %v7581 = vsel %vm691, %v7580, %v7579
        %v7582 = vrot.slane %v7185, 1
        %v7583 = vsel %vm694, %v7582, %v7581
        %v7584 = vrot.slane %v7187, 7
        %v7585 = vsel %vm676, %v7584, %v7186
        %v7586 = vrot.slane %v7188, 6
        %v7587 = vsel %vm679, %v7586, %v7585
        %v7588 = vrot.slane %v7189, 5
        %v7589 = vsel %vm682, %v7588, %v7587
        %v7590 = vrot.slane %v7190, 4
        %v7591 = vsel %vm685, %v7590, %v7589
        %v7592 = vrot.slane %v7191, 3
        %v7593 = vsel %vm688, %v7592, %v7591
        %v7594 = vrot.slane %v7192, 2
        %v7595 = vsel %vm691, %v7594, %v7593
        %v7596 = vrot.slane %v7193, 1
        %v7597 = vsel %vm694, %v7596, %v7595
        %v7598 = vrot.slane %v7195, 7
        %v7599 = vsel %vm676, %v7598, %v7194
        %v7600 = vrot.slane %v7196, 6
        %v7601 = vsel %vm679, %v7600, %v7599
        %v7602 = vrot.slane %v7197, 5
        %v7603 = vsel %vm682, %v7602, %v7601
        %v7604 = vrot.slane %v7198, 4
        %v7605 = vsel %vm685, %v7604, %v7603
        %v7606 = vrot.slane %v7199, 3
        %v7607 = vsel %vm688, %v7606, %v7605
        %v7608 = vrot.slane %v7200, 2
        %v7609 = vsel %vm691, %v7608, %v7607
        %v7610 = vrot.slane %v7201, 1
        %v7611 = vsel %vm694, %v7610, %v7609
        %v7612 = vrot.slane %v7203, 7
        %v7613 = vsel %vm676, %v7612, %v7202
        %v7614 = vrot.slane %v7204, 6
        %v7615 = vsel %vm679, %v7614, %v7613
        %v7616 = vrot.slane %v7205, 5
        %v7617 = vsel %vm682, %v7616, %v7615
        %v7618 = vrot.slane %v7206, 4
        %v7619 = vsel %vm685, %v7618, %v7617
        %v7620 = vrot.slane %v7207, 3
        %v7621 = vsel %vm688, %v7620, %v7619
        %v7622 = vrot.slane %v7208, 2
        %v7623 = vsel %vm691, %v7622, %v7621
        %v7624 = vrot.slane %v7209, 1
        %v7625 = vsel %vm694, %v7624, %v7623
        %v7642 = vmul.f32 %v7212, %v7415
        %v7643 = vmul.f32 %v7216, %v7429
        %v7644 = vmul.f32 %v7220, %v7443
        %v7645 = vmul.f32 %v7224, %v7457
        %v7646 = vmul.f32 %v7228, %v7471
        %v7647 = vmul.f32 %v7232, %v7485
        %v7648 = vmul.f32 %v7236, %v7499
        %v7649 = vmul.f32 %v7240, %v7513
        %v7650 = vmul.f32 %v7244, %v7527
        %v7651 = vmul.f32 %v7248, %v7541
        %v7652 = vmul.f32 %v7252, %v7555
        %v7653 = vmul.f32 %v7256, %v7569
        %v7654 = vmul.f32 %v7260, %v7583
        %v7655 = vmul.f32 %v7264, %v7597
        %v7656 = vmul.f32 %v7268, %v7611
        %v7657 = vmul.f32 %v7272, %v7625
        %v7674 = vrot.slane %v7642, 1
        %v7675 = vrot.slane %v7642, 2
        %v7676 = vrot.slane %v7642, 3
        %v7677 = vrot.slane %v7642, 4
        %v7678 = vrot.slane %v7642, 5
        %v7679 = vrot.slane %v7642, 6
        %v7680 = vrot.slane %v7642, 7
        %v7681 = vrot.slane %v7643, 1
        %v7682 = vrot.slane %v7643, 2
        %v7683 = vrot.slane %v7643, 3
        %v7684 = vrot.slane %v7643, 4
        %v7685 = vrot.slane %v7643, 5
        %v7686 = vrot.slane %v7643, 6
        %v7687 = vrot.slane %v7643, 7
        %v7688 = vrot.slane %v7644, 1
        %v7689 = vrot.slane %v7644, 2
        %v7690 = vrot.slane %v7644, 3
        %v7691 = vrot.slane %v7644, 4
        %v7692 = vrot.slane %v7644, 5
        %v7693 = vrot.slane %v7644, 6
        %v7694 = vrot.slane %v7644, 7
        %v7695 = vrot.slane %v7645, 1
        %v7696 = vrot.slane %v7645, 2
        %v7697 = vrot.slane %v7645, 3
        %v7698 = vrot.slane %v7645, 4
        %v7699 = vrot.slane %v7645, 5
        %v7700 = vrot.slane %v7645, 6
        %v7701 = vrot.slane %v7645, 7
        %v7702 = vrot.slane %v7646, 1
        %v7703 = vrot.slane %v7646, 2
        %v7704 = vrot.slane %v7646, 3
        %v7705 = vrot.slane %v7646, 4
        %v7706 = vrot.slane %v7646, 5
        %v7707 = vrot.slane %v7646, 6
        %v7708 = vrot.slane %v7646, 7
        %v7709 = vrot.slane %v7647, 1
        %v7710 = vrot.slane %v7647, 2
        %v7711 = vrot.slane %v7647, 3
        %v7712 = vrot.slane %v7647, 4
        %v7713 = vrot.slane %v7647, 5
        %v7714 = vrot.slane %v7647, 6
        %v7715 = vrot.slane %v7647, 7
        %v7716 = vrot.slane %v7648, 1
        %v7717 = vrot.slane %v7648, 2
        %v7718 = vrot.slane %v7648, 3
        %v7719 = vrot.slane %v7648, 4
        %v7720 = vrot.slane %v7648, 5
        %v7721 = vrot.slane %v7648, 6
        %v7722 = vrot.slane %v7648, 7
        %v7723 = vrot.slane %v7649, 1
        %v7724 = vrot.slane %v7649, 2
        %v7725 = vrot.slane %v7649, 3
        %v7726 = vrot.slane %v7649, 4
        %v7727 = vrot.slane %v7649, 5
        %v7728 = vrot.slane %v7649, 6
        %v7729 = vrot.slane %v7649, 7
        %v7730 = vrot.slane %v7650, 1
        %v7731 = vrot.slane %v7650, 2
        %v7732 = vrot.slane %v7650, 3
        %v7733 = vrot.slane %v7650, 4
        %v7734 = vrot.slane %v7650, 5
        %v7735 = vrot.slane %v7650, 6
        %v7736 = vrot.slane %v7650, 7
        %v7737 = vrot.slane %v7651, 1
        %v7738 = vrot.slane %v7651, 2
        %v7739 = vrot.slane %v7651, 3
        %v7740 = vrot.slane %v7651, 4
        %v7741 = vrot.slane %v7651, 5
        %v7742 = vrot.slane %v7651, 6
        %v7743 = vrot.slane %v7651, 7
        %v7744 = vrot.slane %v7652, 1
        %v7745 = vrot.slane %v7652, 2
        %v7746 = vrot.slane %v7652, 3
        %v7747 = vrot.slane %v7652, 4
        %v7748 = vrot.slane %v7652, 5
        %v7749 = vrot.slane %v7652, 6
        %v7750 = vrot.slane %v7652, 7
        %v7751 = vrot.slane %v7653, 1
        %v7752 = vrot.slane %v7653, 2
        %v7753 = vrot.slane %v7653, 3
        %v7754 = vrot.slane %v7653, 4
        %v7755 = vrot.slane %v7653, 5
        %v7756 = vrot.slane %v7653, 6
        %v7757 = vrot.slane %v7653, 7
        %v7758 = vrot.slane %v7654, 1
        %v7759 = vrot.slane %v7654, 2
        %v7760 = vrot.slane %v7654, 3
        %v7761 = vrot.slane %v7654, 4
        %v7762 = vrot.slane %v7654, 5
        %v7763 = vrot.slane %v7654, 6
        %v7764 = vrot.slane %v7654, 7
        %v7765 = vrot.slane %v7655, 1
        %v7766 = vrot.slane %v7655, 2
        %v7767 = vrot.slane %v7655, 3
        %v7768 = vrot.slane %v7655, 4
        %v7769 = vrot.slane %v7655, 5
        %v7770 = vrot.slane %v7655, 6
        %v7771 = vrot.slane %v7655, 7
        %v7772 = vrot.slane %v7656, 1
        %v7773 = vrot.slane %v7656, 2
        %v7774 = vrot.slane %v7656, 3
        %v7775 = vrot.slane %v7656, 4
        %v7776 = vrot.slane %v7656, 5
        %v7777 = vrot.slane %v7656, 6
        %v7778 = vrot.slane %v7656, 7
        %v7779 = vrot.slane %v7657, 1
        %v7780 = vrot.slane %v7657, 2
        %v7781 = vrot.slane %v7657, 3
        %v7782 = vrot.slane %v7657, 4
        %v7783 = vrot.slane %v7657, 5
        %v7784 = vrot.slane %v7657, 6
        %v7785 = vrot.slane %v7657, 7
        %v7914 = vadd.f32 %v6954, %v7642
        %v7915 = vadd.f32 %v6955, %v7674
        %v7916 = vadd.f32 %v6956, %v7675
        %v7917 = vadd.f32 %v6957, %v7676
        %v7918 = vadd.f32 %v6958, %v7677
        %v7919 = vadd.f32 %v6959, %v7678
        %v7920 = vadd.f32 %v6960, %v7679
        %v7921 = vadd.f32 %v6961, %v7680
        %v7922 = vadd.f32 %v6962, %v7643
        %v7923 = vadd.f32 %v6963, %v7681
        %v7924 = vadd.f32 %v6964, %v7682
        %v7925 = vadd.f32 %v6965, %v7683
        %v7926 = vadd.f32 %v6966, %v7684
        %v7927 = vadd.f32 %v6967, %v7685
        %v7928 = vadd.f32 %v6968, %v7686
        %v7929 = vadd.f32 %v6969, %v7687
        %v7930 = vadd.f32 %v6970, %v7644
        %v7931 = vadd.f32 %v6971, %v7688
        %v7932 = vadd.f32 %v6972, %v7689
        %v7933 = vadd.f32 %v6973, %v7690
        %v7934 = vadd.f32 %v6974, %v7691
        %v7935 = vadd.f32 %v6975, %v7692
        %v7936 = vadd.f32 %v6976, %v7693
        %v7937 = vadd.f32 %v6977, %v7694
        %v7938 = vadd.f32 %v6978, %v7645
        %v7939 = vadd.f32 %v6979, %v7695
        %v7940 = vadd.f32 %v6980, %v7696
        %v7941 = vadd.f32 %v6981, %v7697
        %v7942 = vadd.f32 %v6982, %v7698
        %v7943 = vadd.f32 %v6983, %v7699
        %v7944 = vadd.f32 %v6984, %v7700
        %v7945 = vadd.f32 %v6985, %v7701
        %v7946 = vadd.f32 %v6986, %v7646
        %v7947 = vadd.f32 %v6987, %v7702
        %v7948 = vadd.f32 %v6988, %v7703
        %v7949 = vadd.f32 %v6989, %v7704
        %v7950 = vadd.f32 %v6990, %v7705
        %v7951 = vadd.f32 %v6991, %v7706
        %v7952 = vadd.f32 %v6992, %v7707
        %v7953 = vadd.f32 %v6993, %v7708
        %v7954 = vadd.f32 %v6994, %v7647
        %v7955 = vadd.f32 %v6995, %v7709
        %v7956 = vadd.f32 %v6996, %v7710
        %v7957 = vadd.f32 %v6997, %v7711
        %v7958 = vadd.f32 %v6998, %v7712
        %v7959 = vadd.f32 %v6999, %v7713
        %v7960 = vadd.f32 %v7000, %v7714
        %v7961 = vadd.f32 %v7001, %v7715
        %v7962 = vadd.f32 %v7002, %v7648
        %v7963 = vadd.f32 %v7003, %v7716
        %v7964 = vadd.f32 %v7004, %v7717
        %v7965 = vadd.f32 %v7005, %v7718
        %v7966 = vadd.f32 %v7006, %v7719
        %v7967 = vadd.f32 %v7007, %v7720
        %v7968 = vadd.f32 %v7008, %v7721
        %v7969 = vadd.f32 %v7009, %v7722
        %v7970 = vadd.f32 %v7010, %v7649
        %v7971 = vadd.f32 %v7011, %v7723
        %v7972 = vadd.f32 %v7012, %v7724
        %v7973 = vadd.f32 %v7013, %v7725
        %v7974 = vadd.f32 %v7014, %v7726
        %v7975 = vadd.f32 %v7015, %v7727
        %v7976 = vadd.f32 %v7016, %v7728
        %v7977 = vadd.f32 %v7017, %v7729
        %v7978 = vadd.f32 %v7018, %v7650
        %v7979 = vadd.f32 %v7019, %v7730
        %v7980 = vadd.f32 %v7020, %v7731
        %v7981 = vadd.f32 %v7021, %v7732
        %v7982 = vadd.f32 %v7022, %v7733
        %v7983 = vadd.f32 %v7023, %v7734
        %v7984 = vadd.f32 %v7024, %v7735
        %v7985 = vadd.f32 %v7025, %v7736
        %v7986 = vadd.f32 %v7026, %v7651
        %v7987 = vadd.f32 %v7027, %v7737
        %v7988 = vadd.f32 %v7028, %v7738
        %v7989 = vadd.f32 %v7029, %v7739
        %v7990 = vadd.f32 %v7030, %v7740
        %v7991 = vadd.f32 %v7031, %v7741
        %v7992 = vadd.f32 %v7032, %v7742
        %v7993 = vadd.f32 %v7033, %v7743
        %v7994 = vadd.f32 %v7034, %v7652
        %v7995 = vadd.f32 %v7035, %v7744
        %v7996 = vadd.f32 %v7036, %v7745
        %v7997 = vadd.f32 %v7037, %v7746
        %v7998 = vadd.f32 %v7038, %v7747
        %v7999 = vadd.f32 %v7039, %v7748
        %v8000 = vadd.f32 %v7040, %v7749
        %v8001 = vadd.f32 %v7041, %v7750
        %v8002 = vadd.f32 %v7042, %v7653
        %v8003 = vadd.f32 %v7043, %v7751
        %v8004 = vadd.f32 %v7044, %v7752
        %v8005 = vadd.f32 %v7045, %v7753
        %v8006 = vadd.f32 %v7046, %v7754
        %v8007 = vadd.f32 %v7047, %v7755
        %v8008 = vadd.f32 %v7048, %v7756
        %v8009 = vadd.f32 %v7049, %v7757
        %v8010 = vadd.f32 %v7050, %v7654
        %v8011 = vadd.f32 %v7051, %v7758
        %v8012 = vadd.f32 %v7052, %v7759
        %v8013 = vadd.f32 %v7053, %v7760
        %v8014 = vadd.f32 %v7054, %v7761
        %v8015 = vadd.f32 %v7055, %v7762
        %v8016 = vadd.f32 %v7056, %v7763
        %v8017 = vadd.f32 %v7057, %v7764
        %v8018 = vadd.f32 %v7058, %v7655
        %v8019 = vadd.f32 %v7059, %v7765
        %v8020 = vadd.f32 %v7060, %v7766
        %v8021 = vadd.f32 %v7061, %v7767
        %v8022 = vadd.f32 %v7062, %v7768
        %v8023 = vadd.f32 %v7063, %v7769
        %v8024 = vadd.f32 %v7064, %v7770
        %v8025 = vadd.f32 %v7065, %v7771
        %v8026 = vadd.f32 %v7066, %v7656
        %v8027 = vadd.f32 %v7067, %v7772
        %v8028 = vadd.f32 %v7068, %v7773
        %v8029 = vadd.f32 %v7069, %v7774
        %v8030 = vadd.f32 %v7070, %v7775
        %v8031 = vadd.f32 %v7071, %v7776
        %v8032 = vadd.f32 %v7072, %v7777
        %v8033 = vadd.f32 %v7073, %v7778
        %v8034 = vadd.f32 %v7074, %v7657
        %v8035 = vadd.f32 %v7075, %v7779
        %v8036 = vadd.f32 %v7076, %v7780
        %v8037 = vadd.f32 %v7077, %v7781
        %v8038 = vadd.f32 %v7078, %v7782
        %v8039 = vadd.f32 %v7079, %v7783
        %v8040 = vadd.f32 %v7080, %v7784
        %v8041 = vadd.f32 %v7081, %v7785
        %v8170 = vrot.slane %v7915, 7
        %v8171 = vsel %vm676, %v8170, %v7914
        %v8172 = vrot.slane %v7916, 6
        %v8173 = vsel %vm679, %v8172, %v8171
        %v8174 = vrot.slane %v7917, 5
        %v8175 = vsel %vm682, %v8174, %v8173
        %v8176 = vrot.slane %v7918, 4
        %v8177 = vsel %vm685, %v8176, %v8175
        %v8178 = vrot.slane %v7919, 3
        %v8179 = vsel %vm688, %v8178, %v8177
        %v8180 = vrot.slane %v7920, 2
        %v8181 = vsel %vm691, %v8180, %v8179
        %v8182 = vrot.slane %v7921, 1
        %v8183 = vsel %vm694, %v8182, %v8181
        %v8184 = vrot.slane %v7923, 7
        %v8185 = vsel %vm676, %v8184, %v7922
        %v8186 = vrot.slane %v7924, 6
        %v8187 = vsel %vm679, %v8186, %v8185
        %v8188 = vrot.slane %v7925, 5
        %v8189 = vsel %vm682, %v8188, %v8187
        %v8190 = vrot.slane %v7926, 4
        %v8191 = vsel %vm685, %v8190, %v8189
        %v8192 = vrot.slane %v7927, 3
        %v8193 = vsel %vm688, %v8192, %v8191
        %v8194 = vrot.slane %v7928, 2
        %v8195 = vsel %vm691, %v8194, %v8193
        %v8196 = vrot.slane %v7929, 1
        %v8197 = vsel %vm694, %v8196, %v8195
        %v8198 = vrot.slane %v7931, 7
        %v8199 = vsel %vm676, %v8198, %v7930
        %v8200 = vrot.slane %v7932, 6
        %v8201 = vsel %vm679, %v8200, %v8199
        %v8202 = vrot.slane %v7933, 5
        %v8203 = vsel %vm682, %v8202, %v8201
        %v8204 = vrot.slane %v7934, 4
        %v8205 = vsel %vm685, %v8204, %v8203
        %v8206 = vrot.slane %v7935, 3
        %v8207 = vsel %vm688, %v8206, %v8205
        %v8208 = vrot.slane %v7936, 2
        %v8209 = vsel %vm691, %v8208, %v8207
        %v8210 = vrot.slane %v7937, 1
        %v8211 = vsel %vm694, %v8210, %v8209
        %v8212 = vrot.slane %v7939, 7
        %v8213 = vsel %vm676, %v8212, %v7938
        %v8214 = vrot.slane %v7940, 6
        %v8215 = vsel %vm679, %v8214, %v8213
        %v8216 = vrot.slane %v7941, 5
        %v8217 = vsel %vm682, %v8216, %v8215
        %v8218 = vrot.slane %v7942, 4
        %v8219 = vsel %vm685, %v8218, %v8217
        %v8220 = vrot.slane %v7943, 3
        %v8221 = vsel %vm688, %v8220, %v8219
        %v8222 = vrot.slane %v7944, 2
        %v8223 = vsel %vm691, %v8222, %v8221
        %v8224 = vrot.slane %v7945, 1
        %v8225 = vsel %vm694, %v8224, %v8223
        %v8226 = vrot.slane %v7947, 7
        %v8227 = vsel %vm676, %v8226, %v7946
        %v8228 = vrot.slane %v7948, 6
        %v8229 = vsel %vm679, %v8228, %v8227
        %v8230 = vrot.slane %v7949, 5
        %v8231 = vsel %vm682, %v8230, %v8229
        %v8232 = vrot.slane %v7950, 4
        %v8233 = vsel %vm685, %v8232, %v8231
        %v8234 = vrot.slane %v7951, 3
        %v8235 = vsel %vm688, %v8234, %v8233
        %v8236 = vrot.slane %v7952, 2
        %v8237 = vsel %vm691, %v8236, %v8235
        %v8238 = vrot.slane %v7953, 1
        %v8239 = vsel %vm694, %v8238, %v8237
        %v8240 = vrot.slane %v7955, 7
        %v8241 = vsel %vm676, %v8240, %v7954
        %v8242 = vrot.slane %v7956, 6
        %v8243 = vsel %vm679, %v8242, %v8241
        %v8244 = vrot.slane %v7957, 5
        %v8245 = vsel %vm682, %v8244, %v8243
        %v8246 = vrot.slane %v7958, 4
        %v8247 = vsel %vm685, %v8246, %v8245
        %v8248 = vrot.slane %v7959, 3
        %v8249 = vsel %vm688, %v8248, %v8247
        %v8250 = vrot.slane %v7960, 2
        %v8251 = vsel %vm691, %v8250, %v8249
        %v8252 = vrot.slane %v7961, 1
        %v8253 = vsel %vm694, %v8252, %v8251
        %v8254 = vrot.slane %v7963, 7
        %v8255 = vsel %vm676, %v8254, %v7962
        %v8256 = vrot.slane %v7964, 6
        %v8257 = vsel %vm679, %v8256, %v8255
        %v8258 = vrot.slane %v7965, 5
        %v8259 = vsel %vm682, %v8258, %v8257
        %v8260 = vrot.slane %v7966, 4
        %v8261 = vsel %vm685, %v8260, %v8259
        %v8262 = vrot.slane %v7967, 3
        %v8263 = vsel %vm688, %v8262, %v8261
        %v8264 = vrot.slane %v7968, 2
        %v8265 = vsel %vm691, %v8264, %v8263
        %v8266 = vrot.slane %v7969, 1
        %v8267 = vsel %vm694, %v8266, %v8265
        %v8268 = vrot.slane %v7971, 7
        %v8269 = vsel %vm676, %v8268, %v7970
        %v8270 = vrot.slane %v7972, 6
        %v8271 = vsel %vm679, %v8270, %v8269
        %v8272 = vrot.slane %v7973, 5
        %v8273 = vsel %vm682, %v8272, %v8271
        %v8274 = vrot.slane %v7974, 4
        %v8275 = vsel %vm685, %v8274, %v8273
        %v8276 = vrot.slane %v7975, 3
        %v8277 = vsel %vm688, %v8276, %v8275
        %v8278 = vrot.slane %v7976, 2
        %v8279 = vsel %vm691, %v8278, %v8277
        %v8280 = vrot.slane %v7977, 1
        %v8281 = vsel %vm694, %v8280, %v8279
        %v8282 = vrot.slane %v7979, 7
        %v8283 = vsel %vm676, %v8282, %v7978
        %v8284 = vrot.slane %v7980, 6
        %v8285 = vsel %vm679, %v8284, %v8283
        %v8286 = vrot.slane %v7981, 5
        %v8287 = vsel %vm682, %v8286, %v8285
        %v8288 = vrot.slane %v7982, 4
        %v8289 = vsel %vm685, %v8288, %v8287
        %v8290 = vrot.slane %v7983, 3
        %v8291 = vsel %vm688, %v8290, %v8289
        %v8292 = vrot.slane %v7984, 2
        %v8293 = vsel %vm691, %v8292, %v8291
        %v8294 = vrot.slane %v7985, 1
        %v8295 = vsel %vm694, %v8294, %v8293
        %v8296 = vrot.slane %v7987, 7
        %v8297 = vsel %vm676, %v8296, %v7986
        %v8298 = vrot.slane %v7988, 6
        %v8299 = vsel %vm679, %v8298, %v8297
        %v8300 = vrot.slane %v7989, 5
        %v8301 = vsel %vm682, %v8300, %v8299
        %v8302 = vrot.slane %v7990, 4
        %v8303 = vsel %vm685, %v8302, %v8301
        %v8304 = vrot.slane %v7991, 3
        %v8305 = vsel %vm688, %v8304, %v8303
        %v8306 = vrot.slane %v7992, 2
        %v8307 = vsel %vm691, %v8306, %v8305
        %v8308 = vrot.slane %v7993, 1
        %v8309 = vsel %vm694, %v8308, %v8307
        %v8310 = vrot.slane %v7995, 7
        %v8311 = vsel %vm676, %v8310, %v7994
        %v8312 = vrot.slane %v7996, 6
        %v8313 = vsel %vm679, %v8312, %v8311
        %v8314 = vrot.slane %v7997, 5
        %v8315 = vsel %vm682, %v8314, %v8313
        %v8316 = vrot.slane %v7998, 4
        %v8317 = vsel %vm685, %v8316, %v8315
        %v8318 = vrot.slane %v7999, 3
        %v8319 = vsel %vm688, %v8318, %v8317
        %v8320 = vrot.slane %v8000, 2
        %v8321 = vsel %vm691, %v8320, %v8319
        %v8322 = vrot.slane %v8001, 1
        %v8323 = vsel %vm694, %v8322, %v8321
        %v8324 = vrot.slane %v8003, 7
        %v8325 = vsel %vm676, %v8324, %v8002
        %v8326 = vrot.slane %v8004, 6
        %v8327 = vsel %vm679, %v8326, %v8325
        %v8328 = vrot.slane %v8005, 5
        %v8329 = vsel %vm682, %v8328, %v8327
        %v8330 = vrot.slane %v8006, 4
        %v8331 = vsel %vm685, %v8330, %v8329
        %v8332 = vrot.slane %v8007, 3
        %v8333 = vsel %vm688, %v8332, %v8331
        %v8334 = vrot.slane %v8008, 2
        %v8335 = vsel %vm691, %v8334, %v8333
        %v8336 = vrot.slane %v8009, 1
        %v8337 = vsel %vm694, %v8336, %v8335
        %v8338 = vrot.slane %v8011, 7
        %v8339 = vsel %vm676, %v8338, %v8010
        %v8340 = vrot.slane %v8012, 6
        %v8341 = vsel %vm679, %v8340, %v8339
        %v8342 = vrot.slane %v8013, 5
        %v8343 = vsel %vm682, %v8342, %v8341
        %v8344 = vrot.slane %v8014, 4
        %v8345 = vsel %vm685, %v8344, %v8343
        %v8346 = vrot.slane %v8015, 3
        %v8347 = vsel %vm688, %v8346, %v8345
        %v8348 = vrot.slane %v8016, 2
        %v8349 = vsel %vm691, %v8348, %v8347
        %v8350 = vrot.slane %v8017, 1
        %v8351 = vsel %vm694, %v8350, %v8349
        %v8352 = vrot.slane %v8019, 7
        %v8353 = vsel %vm676, %v8352, %v8018
        %v8354 = vrot.slane %v8020, 6
        %v8355 = vsel %vm679, %v8354, %v8353
        %v8356 = vrot.slane %v8021, 5
        %v8357 = vsel %vm682, %v8356, %v8355
        %v8358 = vrot.slane %v8022, 4
        %v8359 = vsel %vm685, %v8358, %v8357
        %v8360 = vrot.slane %v8023, 3
        %v8361 = vsel %vm688, %v8360, %v8359
        %v8362 = vrot.slane %v8024, 2
        %v8363 = vsel %vm691, %v8362, %v8361
        %v8364 = vrot.slane %v8025, 1
        %v8365 = vsel %vm694, %v8364, %v8363
        %v8366 = vrot.slane %v8027, 7
        %v8367 = vsel %vm676, %v8366, %v8026
        %v8368 = vrot.slane %v8028, 6
        %v8369 = vsel %vm679, %v8368, %v8367
        %v8370 = vrot.slane %v8029, 5
        %v8371 = vsel %vm682, %v8370, %v8369
        %v8372 = vrot.slane %v8030, 4
        %v8373 = vsel %vm685, %v8372, %v8371
        %v8374 = vrot.slane %v8031, 3
        %v8375 = vsel %vm688, %v8374, %v8373
        %v8376 = vrot.slane %v8032, 2
        %v8377 = vsel %vm691, %v8376, %v8375
        %v8378 = vrot.slane %v8033, 1
        %v8379 = vsel %vm694, %v8378, %v8377
        %v8380 = vrot.slane %v8035, 7
        %v8381 = vsel %vm676, %v8380, %v8034
        %v8382 = vrot.slane %v8036, 6
        %v8383 = vsel %vm679, %v8382, %v8381
        %v8384 = vrot.slane %v8037, 5
        %v8385 = vsel %vm682, %v8384, %v8383
        %v8386 = vrot.slane %v8038, 4
        %v8387 = vsel %vm685, %v8386, %v8385
        %v8388 = vrot.slane %v8039, 3
        %v8389 = vsel %vm688, %v8388, %v8387
        %v8390 = vrot.slane %v8040, 2
        %v8391 = vsel %vm691, %v8390, %v8389
        %v8392 = vrot.slane %v8041, 1
        %v8393 = vsel %vm694, %v8392, %v8391
        %8410 = vst [vmem:[%s177] sm:$0xff] %v8183
        %8411 = vst [vmem:[%s177 + $0x8] sm:$0xff] %v8197
        %8412 = vst [vmem:[%s177 + $0x10] sm:$0xff] %v8211
        %8413 = vst [vmem:[%s177 + $0x18] sm:$0xff] %v8225
        %8414 = vst [vmem:[%s177 + $0x20] sm:$0xff] %v8239
        %8415 = vst [vmem:[%s177 + $0x28] sm:$0xff] %v8253
        %8416 = vst [vmem:[%s177 + $0x30] sm:$0xff] %v8267
        %8417 = vst [vmem:[%s177 + $0x38] sm:$0xff] %v8281
        %8418 = vst [vmem:[%s177 + $0x40] sm:$0xff] %v8295
        %8419 = vst [vmem:[%s177 + $0x48] sm:$0xff] %v8309
        %8420 = vst [vmem:[%s177 + $0x50] sm:$0xff] %v8323
        %8421 = vst [vmem:[%s177 + $0x58] sm:$0xff] %v8337
        %8422 = vst [vmem:[%s177 + $0x60] sm:$0xff] %v8351
        %8423 = vst [vmem:[%s177 + $0x68] sm:$0xff] %v8365
        %8424 = vst [vmem:[%s177 + $0x70] sm:$0xff] %v8379
        %8425 = vst [vmem:[%s177 + $0x78] sm:$0xff] %v8393
        %s8426 = sand.u32 %s92, 1
        %s8427 = scalar_lea.sflag [#allocation3], %s8426
        %s8428 = sand.u32 %s92, 1
        %s8429 = smul.addr %s8428, 128
        %s8430 = scalar_lea.vmem [#allocation2], %s8429
        // Predicated region
        $region29: #{tpu_custom_call.1} parent=27 // pred_check
          %p8431 = pneg %p102
        $region30: #{tpu_custom_call.1} parent=27 // pred_check_branch
          %8433 = sbr.rel (%p8431) target = $region32
        $region31: #{tpu_custom_call.1} parent=27 // pred_region
          %s8434 = smul.u32 16, %s20
          %s8436 = ssub.s32 2048, 2048
          %8437 = vsyncadd %s8427, %s8436
          %s8438 = sadd.s32 %s21, %s8434
          %s8439 = smul.addr %s8438, 128
          %s8440 = scalar_lea.hbm %s2, %s8439
          %s8441 = sshll.u32 %s8430, 4
          %s8442 = int_to_ptr.vmem [resolvable:$true] %s8441
          %8447 = dma.vmem_to_hbm [thread:$0]  %s8442, 2048, %s8440, %s8427, 128, 128, 8
        $region32: #{tpu_custom_call.1} parent=27 // pred_fallthru
          _
      $region28: #{tpu_custom_call.1} parent=5 // pred_fallthru
        _
      %p8448 = scmp.le.s32.totalorder 2, %s11
      // Predicated region
      $region33: #{tpu_custom_call.1} parent=5 // pred_check
        %p8449 = pneg %p8448
      $region34: #{tpu_custom_call.1} parent=5 // pred_check_branch
        %8451 = sbr.rel (%p8449) target = $region36
      $region35: #{tpu_custom_call.1} parent=5 // pred_region
        %s8452 = ssub.s32 %s11, 2
        // Predicated region
        $region37: #{tpu_custom_call.1} parent=35 // pred_check
          %p8453 = pneg %p108
        $region38: #{tpu_custom_call.1} parent=35 // pred_check_branch
          %8455 = sbr.rel (%p8453) target = $region40
        $region39: #{tpu_custom_call.1} parent=35 // pred_region
          %s8456 = sand.u32 %s93, 1
          %s8457 = scalar_lea.sflag [#allocation3], %s8456
          %s8458 = sand.u32 %s93, 1
          %s8459 = smul.addr %s8458, 128
          %s8460 = scalar_lea.vmem [#allocation2], %s8459
          %8461 = dma.done %s8457, 2048
        $region40: #{tpu_custom_call.1} parent=35 // pred_fallthru
          _
      $region36: #{tpu_custom_call.1} parent=5 // pred_fallthru
        _
    $region6: #{tpu_custom_call.1} parent=1 // loop_footer
      %s15 = sadd.s32 1, %s11
    $region7: #{tpu_custom_call.1} parent=1 // loop_footer_branch
      %10 = sbr.rel target = $region3
    $region8: #{tpu_custom_call.1} parent=1 // loop_exit
      _
    %8462 = vsyncpa [#allocation3], 1
    %s8463 = scalar_lea.sflag [#allocation3], 1
    %8464 = vsyncpa %s8463, 1

</llo_original>
